<compile_context>
chip_gen: v7x
topology: tpu7x:2x2x1
jax: 0.10.0
libtpu: 0.0.40
codegen_flags: <defaults>
</compile_context>

<pallas_src>
import math

import jax
import jax.numpy as jnp
import numpy as np
from jax import lax
from jax.experimental import pallas as pl
from jax.experimental.pallas import tpu as pltpu

# ----------------------------- hyper-parameters -----------------------------
D_FEAT = 6            # d_feat
D_MODEL = 8           # d_model
NHEAD = 4
HEAD_DIM = D_MODEL // NHEAD
NUM_LAYERS = 2
DIM_FF = 32           # dim_feedforward (kept small; reference default is 1024)
GRN_HIDDEN = D_MODEL
GRN_OUT = 32
SEQ = 8
BATCH = 2
MAX_LEN = 64
LN_EPS = 1e-5
BN_EPS = 1e-5
NEG_INF = -1e30

LANE = 128
SUBLANE = 8


# ------------------------------- shared math ---------------------------------
def _layer_norm(x, w, b):
    mu = jnp.mean(x, axis=-1, keepdims=True)
    var = jnp.mean((x - mu) ** 2, axis=-1, keepdims=True)
    return (x - mu) * lax.rsqrt(var + LN_EPS) * w + b


def _elu(x):
    # overflow-safe ELU (exp only sees the negative branch)
    return jnp.where(x > 0, x, jnp.exp(jnp.minimum(x, 0.0)) - 1.0)


# ----------------------------- in-kernel forward ------------------------------
def _kernel_forward(p, n, s):
    """Whole-batch forward on flattened tokens.  Returns (N, S)."""
    f32 = jnp.float32
    inv_sqrt_hd = 1.0 / math.sqrt(HEAD_DIM)
    nt_dims = (((1,), (1,)), ((), ()))          # q @ k^T without materializing k.T

    # feature layer; bias + positional encoding pre-folded per token ("fbpe")
    h = jnp.dot(p["x"], p["fw"], preferred_element_type=f32) + p["fbpe"]      # (T, D)

    # TransformerEncoder (post-norm, relu FFN, eval mode)
    for l in range(NUM_LAYERS):
        # fused QKV projection: one (T, D) @ (D, 3D) matmul per layer
        qkv = jnp.dot(h, p[f"wqkv{l}"], preferred_element_type=f32) + p[f"bqkv{l}"]
        heads = []
        for hh in range(NHEAD):
            c0 = hh * HEAD_DIM
            q = qkv[:, c0:c0 + HEAD_DIM]
            k = qkv[:, D_MODEL + c0:D_MODEL + c0 + HEAD_DIM]
            v = qkv[:, 2 * D_MODEL + c0:2 * D_MODEL + c0 + HEAD_DIM]
            # block-diagonal 2-D attention over all T tokens
            sc = lax.dot_general(q, k, nt_dims, preferred_element_type=f32)
            sc = sc * inv_sqrt_hd + p["maskadd"]                # -1e30 across batches
            sc = sc - jnp.max(sc, axis=-1, keepdims=True)
            e = jnp.exp(sc)
            a = e * pl.reciprocal(jnp.sum(e, axis=-1, keepdims=True), approx=True)
            heads.append(jnp.dot(a, v, preferred_element_type=f32))           # (T, HD)
        # concat heads -> single output projection matmul
        attn = jnp.dot(jnp.concatenate(heads, axis=-1), p[f"wo{l}"],
                       preferred_element_type=f32) + p[f"bo{l}"]
        h = _layer_norm(h + attn, p[f"ln1w{l}"], p[f"ln1b{l}"])
        ff = jnp.maximum(
            jnp.dot(h, p[f"w1{l}"], preferred_element_type=f32) + p[f"b1{l}"], 0.0)
        ff = jnp.dot(ff, p[f"w2{l}"], preferred_element_type=f32) + p[f"b2{l}"]
        h = _layer_norm(h + ff, p[f"ln2w{l}"], p[f"ln2b{l}"])

    # GatedResidualNetwork (eval: dropout = identity); fused [skip|fc1] matmul
    hg = jnp.dot(h, p["skg1w"], preferred_element_type=f32) + p["skg1b"]      # (T, 40)
    residual = hg[:, :GRN_OUT]
    g = _elu(hg[:, GRN_OUT:GRN_OUT + GRN_HIDDEN])
    g = jnp.dot(g, p["g2w"], preferred_element_type=f32) + p["g2b"]           # (T, 32)
    # fused GLU: one (T,32)@(32,64) matmul, slice sig/lin halves
    glu = jnp.dot(g, p["gluw"], preferred_element_type=f32) + p["glub"]       # (T, 64)
    sig = pl.reciprocal(1.0 + jnp.exp(-glu[:, :GRN_OUT]), approx=True)
    y = sig * glu[:, GRN_OUT:] + residual                                     # (T, 32)

    # BatchNorm1d (eval) + decoder Linear(32,1) folded into (dwf, dbf);
    # lane reduction keeps the (N, S) output lane-dense.
    return jnp.sum(y.reshape(n, s, GRN_OUT) * p["dwf"][None], axis=-1) + p["dbf"]


# ------------------------------ slab packing ----------------------------------
def _pack_all(params, x, n, s):
    """Pack input x + all (folded) params into one lane-dense (R,128) f32 slab."""
    f32 = jnp.float32
    big, small = [], []

    def add(name, a, read_rows=None, read_cols=None):
        a = jnp.asarray(a, f32)
        r, c = a.shape
        rr = r if read_rows is None else read_rows
        rc = c if read_cols is None else read_cols
        if r == 1 and rr == 1:
            small.append((name, a, rc))
        else:
            big.append((name, a, rr, rc))

    # runtime input, read zero-padded to 8 lanes; fw read zero-padded to 8 rows
    add("x", x, read_cols=D_MODEL)
    add("fw", params["fw"], read_rows=D_MODEL)
    # feature bias + positional encoding, pre-tiled per token -> (N*S, D)
    add("fbpe", jnp.tile(params["fb"] + params["pe"][:s], (n, 1)))
    # additive block-diagonal batch mask for the (T,T) attention scores
    tok = np.repeat(np.arange(n), s)
    add("maskadd",
        np.where(tok[:, None] == tok[None, :], 0.0, NEG_INF).astype(np.float32))

    for l in range(NUM_LAYERS):
        add(f"wqkv{l}", params["wqkv"][l]); add(f"bqkv{l}", params["bqkv"][l])
        add(f"wo{l}", params["wo"][l]);     add(f"bo{l}", params["bo"][l])
        add(f"w1{l}", params["w1"][l]);     add(f"b1{l}", params["b1"][l])
        add(f"w2{l}", params["w2"][l]);     add(f"b2{l}", params["b2"][l])
        add(f"ln1w{l}", params["ln1w"][l]); add(f"ln1b{l}", params["ln1b"][l])
        add(f"ln2w{l}", params["ln2w"][l]); add(f"ln2b{l}", params["ln2b"][l])

    # fused GRN weights: [skip | fc1] and [GLU.fc1 | GLU.fc2]
    add("skg1w", jnp.concatenate([params["skw"], params["g1w"]], axis=1))
    add("skg1b", jnp.concatenate([params["skb"], params["g1b"]], axis=1))
    add("g2w", params["g2w"]); add("g2b", params["g2b"])
    add("gluw", jnp.concatenate([params["glu1w"], params["glu2w"]], axis=1))
    add("glub", jnp.concatenate([params["glu1b"], params["glu2b"]], axis=1))

    # fold BatchNorm1d (eval) + decoder:  ((y-m)*s_bn + b) @ dw + db
    scale = params["bng"] * lax.rsqrt(params["bnv"] + BN_EPS)                 # (1, 32)
    dw_row = params["dw"][:, 0][None, :]                                      # (1, 32)
    add("dwf", scale * dw_row)
    add("dbf", jnp.sum((params["bnb"] - params["bnm"] * scale) * dw_row,
                       axis=-1, keepdims=True) + params["db"])

    layout, blocks, off = {}, [], 0
    for name, a, rr, rc in big:                       # each big entry: 8-aligned block
        r, c = a.shape
        rp = -(-max(r, rr) // SUBLANE) * SUBLANE
        blocks.append(jnp.zeros((rp, LANE), f32).at[:r, :c].set(a))
        layout[name] = (off, rr, rc)
        off += rp
    for i in range(0, len(small), SUBLANE):           # co-pack 1-row entries, 8/block
        grp = small[i:i + SUBLANE]
        blk = jnp.zeros((SUBLANE, LANE), f32)
        for j, (name, a, rc) in enumerate(grp):
            blk = blk.at[j, :a.shape[1]].set(a[0])
            layout[name] = (off + j, 1, rc)
        blocks.append(blk)
        off += SUBLANE
    return jnp.concatenate(blocks, axis=0), layout


# ------------------------------- Pallas kernel --------------------------------
def _make_kernel(layout, n, s):
    def kernel(slab_ref, out_ref):
        p = {name: slab_ref[off:off + r, :c]          # static VMEM slices, no DMA
             for name, (off, r, c) in layout.items()}
        out_ref[...] = _kernel_forward(p, n, s)
    return kernel


@jax.jit
def grnformer_forward(src, params):
    """src: (S, N, d_feat) seq-first (PyTorch convention).  Returns (N, S)."""
    s, n, f = src.shape
    t = n * s
    # flatten tokens batch-major: (N*S, d_feat)
    x = jnp.transpose(src, (1, 0, 2)).reshape(t, f).astype(jnp.float32)
    slab, layout = _pack_all(params, x, n, s)
    kernel = _make_kernel(layout, n, s)

    flops = 2 * t * (D_FEAT * D_MODEL
                     + NUM_LAYERS * (3 * D_MODEL * D_MODEL + 2 * t * D_MODEL
                                     + D_MODEL * D_MODEL + 2 * D_MODEL * DIM_FF)
                     + D_MODEL * (GRN_OUT + GRN_HIDDEN)
                     + GRN_HIDDEN * GRN_OUT + 2 * GRN_OUT * GRN_OUT)
    transcendentals = NUM_LAYERS * NHEAD * t * t + 8 * t * GRN_OUT

    out = pl.pallas_call(
        kernel,
        out_shape=jax.ShapeDtypeStruct((n, s), jnp.float32),
        in_specs=[pl.BlockSpec(memory_space=pltpu.MemorySpace.VMEM)],
        out_specs=pl.BlockSpec(memory_space=pltpu.MemorySpace.VMEM),
        cost_estimate=pl.CostEstimate(
            flops=int(flops),
            transcendentals=int(transcendentals),
            bytes_accessed=int(slab.size * 4 + t * 4)),
    )(slab)
    # matches `output.squeeze()` of the reference for N > 1: (N, S)
    return out


# --------------------------- deterministic params ----------------------------
def init_params(key):
    keys = iter(jax.random.split(key, 64))

    def uniform(shape, fan_in):
        b = 1.0 / math.sqrt(fan_in)
        return jax.random.uniform(next(keys), shape, jnp.float32, -b, b)

    p = {}
    p["fw"] = uniform((D_FEAT, D_MODEL), D_FEAT)          # Linear stored as (in, out)
    p["fb"] = uniform((1, D_MODEL), D_FEAT)
    pos = jnp.arange(MAX_LEN, dtype=jnp.float32)[:, None]
    div = jnp.exp(jnp.arange(0, D_MODEL, 2, dtype=jnp.float32)
                  * (-math.log(10000.0) / D_MODEL))
    pe = jnp.zeros((MAX_LEN, D_MODEL), jnp.float32)
    pe = pe.at[:, 0::2].set(jnp.sin(pos * div))
    pe = pe.at[:, 1::2].set(jnp.cos(pos * div))
    p["pe"] = pe

    wqkv, bqkv, wo, bo = [], [], [], []
    w1, b1, w2, b2 = [], [], [], []
    ln1w, ln1b, ln2w, ln2b = [], [], [], []
    for _ in range(NUM_LAYERS):
        in_w = uniform((3 * D_MODEL, D_MODEL), D_MODEL)   # PyTorch (out, in) layout
        in_b = uniform((3 * D_MODEL,), D_MODEL)
        wqkv.append(in_w.T)                               # fused (D, 3D): [q | k | v]
        bqkv.append(in_b.reshape(1, 3 * D_MODEL))
        wo.append(uniform((D_MODEL, D_MODEL), D_MODEL).T)
        bo.append(uniform((1, D_MODEL), D_MODEL))
        w1.append(uniform((D_MODEL, DIM_FF), D_MODEL))
        b1.append(uniform((1, DIM_FF), D_MODEL))
        w2.append(uniform((DIM_FF, D_MODEL), DIM_FF))
        b2.append(uniform((1, D_MODEL), DIM_FF))
        ln1w.append(jnp.ones((1, D_MODEL), jnp.float32))
        ln1b.append(jnp.zeros((1, D_MODEL), jnp.float32))
        ln2w.append(jnp.ones((1, D_MODEL), jnp.float32))
        ln2b.append(jnp.zeros((1, D_MODEL), jnp.float32))

    p["wqkv"] = jnp.stack(wqkv); p["bqkv"] = jnp.stack(bqkv)
    p["wo"] = jnp.stack(wo);     p["bo"] = jnp.stack(bo)
    p["w1"] = jnp.stack(w1);     p["b1"] = jnp.stack(b1)
    p["w2"] = jnp.stack(w2);     p["b2"] = jnp.stack(b2)
    p["ln1w"] = jnp.stack(ln1w); p["ln1b"] = jnp.stack(ln1b)
    p["ln2w"] = jnp.stack(ln2w); p["ln2b"] = jnp.stack(ln2b)

    # GatedResidualNetwork(input=D_MODEL, hidden=D_MODEL, output=32)
    p["skw"] = uniform((D_MODEL, GRN_OUT), D_MODEL)
    p["skb"] = uniform((1, GRN_OUT), D_MODEL)
    p["g1w"] = uniform((D_MODEL, GRN_HIDDEN), D_MODEL)
    p["g1b"] = uniform((1, GRN_HIDDEN), D_MODEL)
    p["g2w"] = uniform((GRN_HIDDEN, GRN_OUT), GRN_HIDDEN)
    p["g2b"] = uniform((1, GRN_OUT), GRN_HIDDEN)
    p["glu1w"] = uniform((GRN_OUT, GRN_OUT), GRN_OUT)
    p["glu1b"] = uniform((1, GRN_OUT), GRN_OUT)
    p["glu2w"] = uniform((GRN_OUT, GRN_OUT), GRN_OUT)
    p["glu2b"] = uniform((1, GRN_OUT), GRN_OUT)
    p["bng"] = jnp.ones((1, GRN_OUT), jnp.float32)
    p["bnb"] = jnp.zeros((1, GRN_OUT), jnp.float32)
    p["bnm"] = jnp.zeros((1, GRN_OUT), jnp.float32)
    p["bnv"] = jnp.ones((1, GRN_OUT), jnp.float32)
    p["dw"] = uniform((GRN_OUT, 1), GRN_OUT)
    p["db"] = uniform((1, 1), GRN_OUT)
    return p


# --------------------------- pure-JAX reference -------------------------------
def _reference_forward(src, params):
    """Unfused per-batch reference mirroring the PyTorch module (eval mode)."""
    s_len, n_batch, _ = src.shape
    x = jnp.transpose(src, (1, 0, 2)).astype(jnp.float32)
    outs = []
    for nb in range(n_batch):
        h = jnp.dot(x[nb], params["fw"]) + params["fb"] + params["pe"][:s_len]
        for l in range(NUM_LAYERS):
            wqkv = params["wqkv"][l]; bqkv = params["bqkv"][l]
            q = jnp.dot(h, wqkv[:, :D_MODEL]) + bqkv[:, :D_MODEL]
            k = jnp.dot(h, wqkv[:, D_MODEL:2 * D_MODEL]) + bqkv[:, D_MODEL:2 * D_MODEL]
            v = jnp.dot(h, wqkv[:, 2 * D_MODEL:]) + bqkv[:, 2 * D_MODEL:]
            heads = []
            for hh in range(NHEAD):
                sl = slice(hh * HEAD_DIM, (hh + 1) * HEAD_DIM)
                sc = jnp.dot(q[:, sl], k[:, sl].T) / math.sqrt(HEAD_DIM)
                sc = sc - jnp.max(sc, axis=-1, keepdims=True)
                e = jnp.exp(sc)
                a = e / jnp.sum(e, axis=-1, keepdims=True)
                heads.append(jnp.dot(a, v[:, sl]))
            attn = jnp.dot(jnp.concatenate(heads, axis=-1), params["wo"][l]) + params["bo"][l]
            h = _layer_norm(h + attn, params["ln1w"][l], params["ln1b"][l])
            ff = jnp.maximum(jnp.dot(h, params["w1"][l]) + params["b1"][l], 0.0)
            ff = jnp.dot(ff, params["w2"][l]) + params["b2"][l]
            h = _layer_norm(h + ff, params["ln2w"][l], params["ln2b"][l])
        residual = jnp.dot(h, params["skw"]) + params["skb"]
        g = _elu(jnp.dot(h, params["g1w"]) + params["g1b"])
        g = jnp.dot(g, params["g2w"]) + params["g2b"]
        sig = 1.0 / (1.0 + jnp.exp(-(jnp.dot(g, params["glu1w"]) + params["glu1b"])))
        lin = jnp.dot(g, params["glu2w"]) + params["glu2b"]
        y = sig * lin + residual
        y = (y - params["bnm"]) * lax.rsqrt(params["bnv"] + BN_EPS) * params["bng"] + params["bnb"]
        out = jnp.dot(y, params["dw"]) + params["db"]          # (S, 1)
        outs.append(out[:, 0])
    return jnp.stack(outs, axis=0)                              # (N, S)


# ------------------------------------ main ------------------------------------
if __name__ == "__main__":
    key = jax.random.PRNGKey(0)
    k_param, k_x = jax.random.split(key)
    params = init_params(k_param)
    # seq-first input like the PyTorch module: (S, N, d_feat)
    src = jax.random.normal(k_x, (SEQ, BATCH, D_FEAT), dtype=jnp.float32)

    out = jax.block_until_ready(grnformer_forward(src, params))
    assert out.shape == (BATCH, SEQ), out.shape

    with jax.default_matmul_precision("highest"):
        ref = jax.block_until_ready(_reference_forward(src, params))
    # slightly relaxed tolerance: kernel uses EUP approx reciprocals (softmax / GLU)
    np.testing.assert_allclose(np.asarray(out), np.asarray(ref), rtol=1e-2, atol=1e-2)

    print("KERNEL_OK")
</pallas_src>

<mosaic_0001>
module attributes {stable_mosaic.version = 11 : i64} {
  func.func @kernel(%arg0: memref<240x128xf32, #tpu.memory_space<vmem>>, %arg1: memref<2x8xf32, #tpu.memory_space<vmem>>) attributes {dimension_semantics = [], scalar_prefetch = 0 : i64, scratch_operands = 0 : i64, tpu.core_type = #tpu.core_type<tc>} {
    %c0 = arith.constant 0 : index
    %c0_0 = arith.constant 0 : index
    %0 = vector.load %arg0[%c0, %c0_0] : memref<240x128xf32, #tpu.memory_space<vmem>>, vector<16x8xf32>
    %c16 = arith.constant 16 : index
    %c0_1 = arith.constant 0 : index
    %1 = vector.load %arg0[%c16, %c0_1] : memref<240x128xf32, #tpu.memory_space<vmem>>, vector<8x8xf32>
    %c24 = arith.constant 24 : index
    %c0_2 = arith.constant 0 : index
    %2 = vector.load %arg0[%c24, %c0_2] : memref<240x128xf32, #tpu.memory_space<vmem>>, vector<16x8xf32>
    %c40 = arith.constant 40 : index
    %c0_3 = arith.constant 0 : index
    %3 = vector.load %arg0[%c40, %c0_3] : memref<240x128xf32, #tpu.memory_space<vmem>>, vector<16x16xf32>
    %c56 = arith.constant 56 : index
    %c0_4 = arith.constant 0 : index
    %4 = vector.load %arg0[%c56, %c0_4] : memref<240x128xf32, #tpu.memory_space<vmem>>, vector<8x24xf32>
    %c64 = arith.constant 64 : index
    %c0_5 = arith.constant 0 : index
    %5 = vector.load %arg0[%c64, %c0_5] : memref<240x128xf32, #tpu.memory_space<vmem>>, vector<8x8xf32>
    %c72 = arith.constant 72 : index
    %c0_6 = arith.constant 0 : index
    %6 = vector.load %arg0[%c72, %c0_6] : memref<240x128xf32, #tpu.memory_space<vmem>>, vector<8x32xf32>
    %c80 = arith.constant 80 : index
    %c0_7 = arith.constant 0 : index
    %7 = vector.load %arg0[%c80, %c0_7] : memref<240x128xf32, #tpu.memory_space<vmem>>, vector<32x8xf32>
    %c112 = arith.constant 112 : index
    %c0_8 = arith.constant 0 : index
    %8 = vector.load %arg0[%c112, %c0_8] : memref<240x128xf32, #tpu.memory_space<vmem>>, vector<8x24xf32>
    %c120 = arith.constant 120 : index
    %c0_9 = arith.constant 0 : index
    %9 = vector.load %arg0[%c120, %c0_9] : memref<240x128xf32, #tpu.memory_space<vmem>>, vector<8x8xf32>
    %c128 = arith.constant 128 : index
    %c0_10 = arith.constant 0 : index
    %10 = vector.load %arg0[%c128, %c0_10] : memref<240x128xf32, #tpu.memory_space<vmem>>, vector<8x32xf32>
    %c136 = arith.constant 136 : index
    %c0_11 = arith.constant 0 : index
    %11 = vector.load %arg0[%c136, %c0_11] : memref<240x128xf32, #tpu.memory_space<vmem>>, vector<32x8xf32>
    %c168 = arith.constant 168 : index
    %c0_12 = arith.constant 0 : index
    %12 = vector.load %arg0[%c168, %c0_12] : memref<240x128xf32, #tpu.memory_space<vmem>>, vector<8x40xf32>
    %c176 = arith.constant 176 : index
    %c0_13 = arith.constant 0 : index
    %13 = vector.load %arg0[%c176, %c0_13] : memref<240x128xf32, #tpu.memory_space<vmem>>, vector<8x32xf32>
    %c184 = arith.constant 184 : index
    %c0_14 = arith.constant 0 : index
    %14 = vector.load %arg0[%c184, %c0_14] : memref<240x128xf32, #tpu.memory_space<vmem>>, vector<32x64xf32>
    %c216 = arith.constant 216 : index
    %c0_15 = arith.constant 0 : index
    %15 = vector.load %arg0[%c216, %c0_15] : memref<240x128xf32, #tpu.memory_space<vmem>>, vector<1x24xf32>
    %c217 = arith.constant 217 : index
    %c0_16 = arith.constant 0 : index
    %16 = vector.load %arg0[%c217, %c0_16] : memref<240x128xf32, #tpu.memory_space<vmem>>, vector<1x8xf32>
    %c218 = arith.constant 218 : index
    %c0_17 = arith.constant 0 : index
    %17 = vector.load %arg0[%c218, %c0_17] : memref<240x128xf32, #tpu.memory_space<vmem>>, vector<1x32xf32>
    %c219 = arith.constant 219 : index
    %c0_18 = arith.constant 0 : index
    %18 = vector.load %arg0[%c219, %c0_18] : memref<240x128xf32, #tpu.memory_space<vmem>>, vector<1x8xf32>
    %c220 = arith.constant 220 : index
    %c0_19 = arith.constant 0 : index
    %19 = vector.load %arg0[%c220, %c0_19] : memref<240x128xf32, #tpu.memory_space<vmem>>, vector<1x8xf32>
    %c221 = arith.constant 221 : index
    %c0_20 = arith.constant 0 : index
    %20 = vector.load %arg0[%c221, %c0_20] : memref<240x128xf32, #tpu.memory_space<vmem>>, vector<1x8xf32>
    %c222 = arith.constant 222 : index
    %c0_21 = arith.constant 0 : index
    %21 = vector.load %arg0[%c222, %c0_21] : memref<240x128xf32, #tpu.memory_space<vmem>>, vector<1x8xf32>
    %c223 = arith.constant 223 : index
    %c0_22 = arith.constant 0 : index
    %22 = vector.load %arg0[%c223, %c0_22] : memref<240x128xf32, #tpu.memory_space<vmem>>, vector<1x8xf32>
    %c224 = arith.constant 224 : index
    %c0_23 = arith.constant 0 : index
    %23 = vector.load %arg0[%c224, %c0_23] : memref<240x128xf32, #tpu.memory_space<vmem>>, vector<1x24xf32>
    %c225 = arith.constant 225 : index
    %c0_24 = arith.constant 0 : index
    %24 = vector.load %arg0[%c225, %c0_24] : memref<240x128xf32, #tpu.memory_space<vmem>>, vector<1x8xf32>
    %c226 = arith.constant 226 : index
    %c0_25 = arith.constant 0 : index
    %25 = vector.load %arg0[%c226, %c0_25] : memref<240x128xf32, #tpu.memory_space<vmem>>, vector<1x32xf32>
    %c227 = arith.constant 227 : index
    %c0_26 = arith.constant 0 : index
    %26 = vector.load %arg0[%c227, %c0_26] : memref<240x128xf32, #tpu.memory_space<vmem>>, vector<1x8xf32>
    %c228 = arith.constant 228 : index
    %c0_27 = arith.constant 0 : index
    %27 = vector.load %arg0[%c228, %c0_27] : memref<240x128xf32, #tpu.memory_space<vmem>>, vector<1x8xf32>
    %c229 = arith.constant 229 : index
    %c0_28 = arith.constant 0 : index
    %28 = vector.load %arg0[%c229, %c0_28] : memref<240x128xf32, #tpu.memory_space<vmem>>, vector<1x8xf32>
    %c230 = arith.constant 230 : index
    %c0_29 = arith.constant 0 : index
    %29 = vector.load %arg0[%c230, %c0_29] : memref<240x128xf32, #tpu.memory_space<vmem>>, vector<1x8xf32>
    %c231 = arith.constant 231 : index
    %c0_30 = arith.constant 0 : index
    %30 = vector.load %arg0[%c231, %c0_30] : memref<240x128xf32, #tpu.memory_space<vmem>>, vector<1x8xf32>
    %c232 = arith.constant 232 : index
    %c0_31 = arith.constant 0 : index
    %31 = vector.load %arg0[%c232, %c0_31] : memref<240x128xf32, #tpu.memory_space<vmem>>, vector<1x40xf32>
    %c233 = arith.constant 233 : index
    %c0_32 = arith.constant 0 : index
    %32 = vector.load %arg0[%c233, %c0_32] : memref<240x128xf32, #tpu.memory_space<vmem>>, vector<1x32xf32>
    %c234 = arith.constant 234 : index
    %c0_33 = arith.constant 0 : index
    %33 = vector.load %arg0[%c234, %c0_33] : memref<240x128xf32, #tpu.memory_space<vmem>>, vector<1x64xf32>
    %c235 = arith.constant 235 : index
    %c0_34 = arith.constant 0 : index
    %34 = vector.load %arg0[%c235, %c0_34] : memref<240x128xf32, #tpu.memory_space<vmem>>, vector<1x32xf32>
    %c236 = arith.constant 236 : index
    %c0_35 = arith.constant 0 : index
    %35 = vector.load %arg0[%c236, %c0_35] : memref<240x128xf32, #tpu.memory_space<vmem>>, vector<1x1xf32>
    %cst = arith.constant dense<0.000000e+00> : vector<16x8xf32>
    %36 = tpu.matmul %0, %1, %cst {dimension_numbers = #tpu.dot_dimension_numbers<[1], [0], [0], [1], [0, 0, 1, 1], [], []>} : vector<16x8xf32>, vector<8x8xf32>, vector<16x8xf32> -> vector<16x8xf32>
    %37 = arith.addf %36, %2 : vector<16x8xf32>
    %cst_36 = arith.constant dense<0.000000e+00> : vector<16x24xf32>
    %38 = tpu.matmul %37, %4, %cst_36 {dimension_numbers = #tpu.dot_dimension_numbers<[1], [0], [0], [1], [0, 0, 1, 1], [], []>} : vector<16x8xf32>, vector<8x24xf32>, vector<16x24xf32> -> vector<16x24xf32>
    %39 = vector.broadcast %15 : vector<1x24xf32> to vector<16x24xf32>
    %40 = arith.addf %38, %39 : vector<16x24xf32>
    %41 = vector.extract_strided_slice %40 {offsets = [0, 0], sizes = [16, 2], strides = [1, 1]} : vector<16x24xf32> to vector<16x2xf32>
    %42 = vector.extract_strided_slice %40 {offsets = [0, 8], sizes = [16, 2], strides = [1, 1]} : vector<16x24xf32> to vector<16x2xf32>
    %43 = vector.extract_strided_slice %40 {offsets = [0, 16], sizes = [16, 2], strides = [1, 1]} : vector<16x24xf32> to vector<16x2xf32>
    %cst_37 = arith.constant dense<0.000000e+00> : vector<16x16xf32>
    %44 = tpu.matmul %41, %42, %cst_37 {dimension_numbers = #tpu.dot_dimension_numbers<[1], [1], [0], [0], [0, 0, 1, 0], [], []>} : vector<16x2xf32>, vector<16x2xf32>, vector<16x16xf32> -> vector<16x16xf32>
    %cst_38 = arith.constant 0.707106769 : f32
    %45 = vector.broadcast %cst_38 : f32 to vector<16x16xf32>
    %46 = arith.mulf %44, %45 : vector<16x16xf32>
    %47 = arith.addf %46, %3 : vector<16x16xf32>
    %cst_39 = arith.constant dense<0xFF800000> : vector<16xf32>
    %48 = vector.multi_reduction <maximumf>, %47, %cst_39 [1] : vector<16x16xf32> to vector<16xf32>
    %49 = vector.shape_cast %48 : vector<16xf32> to vector<16x1xf32>
    %50 = vector.broadcast %49 : vector<16x1xf32> to vector<16x16xf32>
    %51 = arith.subf %47, %50 : vector<16x16xf32>
    %52 = math.exp %51 : vector<16x16xf32>
    %cst_40 = arith.constant dense<0.000000e+00> : vector<16xf32>
    %53 = vector.multi_reduction <add>, %52, %cst_40 [1] : vector<16x16xf32> to vector<16xf32>
    %54 = vector.shape_cast %53 : vector<16xf32> to vector<16x1xf32>
    %55 = tpu.reciprocal %54 {approx = true} : vector<16x1xf32> -> vector<16x1xf32>
    %56 = vector.broadcast %55 : vector<16x1xf32> to vector<16x16xf32>
    %57 = arith.mulf %52, %56 : vector<16x16xf32>
    %cst_41 = arith.constant dense<0.000000e+00> : vector<16x2xf32>
    %58 = tpu.matmul %57, %43, %cst_41 {dimension_numbers = #tpu.dot_dimension_numbers<[1], [0], [0], [1], [0, 0, 1, 1], [], []>} : vector<16x16xf32>, vector<16x2xf32>, vector<16x2xf32> -> vector<16x2xf32>
    %59 = vector.extract_strided_slice %40 {offsets = [0, 2], sizes = [16, 2], strides = [1, 1]} : vector<16x24xf32> to vector<16x2xf32>
    %60 = vector.extract_strided_slice %40 {offsets = [0, 10], sizes = [16, 2], strides = [1, 1]} : vector<16x24xf32> to vector<16x2xf32>
    %61 = vector.extract_strided_slice %40 {offsets = [0, 18], sizes = [16, 2], strides = [1, 1]} : vector<16x24xf32> to vector<16x2xf32>
    %cst_42 = arith.constant dense<0.000000e+00> : vector<16x16xf32>
    %62 = tpu.matmul %59, %60, %cst_42 {dimension_numbers = #tpu.dot_dimension_numbers<[1], [1], [0], [0], [0, 0, 1, 0], [], []>} : vector<16x2xf32>, vector<16x2xf32>, vector<16x16xf32> -> vector<16x16xf32>
    %cst_43 = arith.constant 0.707106769 : f32
    %63 = vector.broadcast %cst_43 : f32 to vector<16x16xf32>
    %64 = arith.mulf %62, %63 : vector<16x16xf32>
    %65 = arith.addf %64, %3 : vector<16x16xf32>
    %cst_44 = arith.constant dense<0xFF800000> : vector<16xf32>
    %66 = vector.multi_reduction <maximumf>, %65, %cst_44 [1] : vector<16x16xf32> to vector<16xf32>
    %67 = vector.shape_cast %66 : vector<16xf32> to vector<16x1xf32>
    %68 = vector.broadcast %67 : vector<16x1xf32> to vector<16x16xf32>
    %69 = arith.subf %65, %68 : vector<16x16xf32>
    %70 = math.exp %69 : vector<16x16xf32>
    %cst_45 = arith.constant dense<0.000000e+00> : vector<16xf32>
    %71 = vector.multi_reduction <add>, %70, %cst_45 [1] : vector<16x16xf32> to vector<16xf32>
    %72 = vector.shape_cast %71 : vector<16xf32> to vector<16x1xf32>
    %73 = tpu.reciprocal %72 {approx = true} : vector<16x1xf32> -> vector<16x1xf32>
    %74 = vector.broadcast %73 : vector<16x1xf32> to vector<16x16xf32>
    %75 = arith.mulf %70, %74 : vector<16x16xf32>
    %cst_46 = arith.constant dense<0.000000e+00> : vector<16x2xf32>
    %76 = tpu.matmul %75, %61, %cst_46 {dimension_numbers = #tpu.dot_dimension_numbers<[1], [0], [0], [1], [0, 0, 1, 1], [], []>} : vector<16x16xf32>, vector<16x2xf32>, vector<16x2xf32> -> vector<16x2xf32>
    %77 = vector.extract_strided_slice %40 {offsets = [0, 4], sizes = [16, 2], strides = [1, 1]} : vector<16x24xf32> to vector<16x2xf32>
    %78 = vector.extract_strided_slice %40 {offsets = [0, 12], sizes = [16, 2], strides = [1, 1]} : vector<16x24xf32> to vector<16x2xf32>
    %79 = vector.extract_strided_slice %40 {offsets = [0, 20], sizes = [16, 2], strides = [1, 1]} : vector<16x24xf32> to vector<16x2xf32>
    %cst_47 = arith.constant dense<0.000000e+00> : vector<16x16xf32>
    %80 = tpu.matmul %77, %78, %cst_47 {dimension_numbers = #tpu.dot_dimension_numbers<[1], [1], [0], [0], [0, 0, 1, 0], [], []>} : vector<16x2xf32>, vector<16x2xf32>, vector<16x16xf32> -> vector<16x16xf32>
    %cst_48 = arith.constant 0.707106769 : f32
    %81 = vector.broadcast %cst_48 : f32 to vector<16x16xf32>
    %82 = arith.mulf %80, %81 : vector<16x16xf32>
    %83 = arith.addf %82, %3 : vector<16x16xf32>
    %cst_49 = arith.constant dense<0xFF800000> : vector<16xf32>
    %84 = vector.multi_reduction <maximumf>, %83, %cst_49 [1] : vector<16x16xf32> to vector<16xf32>
    %85 = vector.shape_cast %84 : vector<16xf32> to vector<16x1xf32>
    %86 = vector.broadcast %85 : vector<16x1xf32> to vector<16x16xf32>
    %87 = arith.subf %83, %86 : vector<16x16xf32>
    %88 = math.exp %87 : vector<16x16xf32>
    %cst_50 = arith.constant dense<0.000000e+00> : vector<16xf32>
    %89 = vector.multi_reduction <add>, %88, %cst_50 [1] : vector<16x16xf32> to vector<16xf32>
    %90 = vector.shape_cast %89 : vector<16xf32> to vector<16x1xf32>
    %91 = tpu.reciprocal %90 {approx = true} : vector<16x1xf32> -> vector<16x1xf32>
    %92 = vector.broadcast %91 : vector<16x1xf32> to vector<16x16xf32>
    %93 = arith.mulf %88, %92 : vector<16x16xf32>
    %cst_51 = arith.constant dense<0.000000e+00> : vector<16x2xf32>
    %94 = tpu.matmul %93, %79, %cst_51 {dimension_numbers = #tpu.dot_dimension_numbers<[1], [0], [0], [1], [0, 0, 1, 1], [], []>} : vector<16x16xf32>, vector<16x2xf32>, vector<16x2xf32> -> vector<16x2xf32>
    %95 = vector.extract_strided_slice %40 {offsets = [0, 6], sizes = [16, 2], strides = [1, 1]} : vector<16x24xf32> to vector<16x2xf32>
    %96 = vector.extract_strided_slice %40 {offsets = [0, 14], sizes = [16, 2], strides = [1, 1]} : vector<16x24xf32> to vector<16x2xf32>
    %97 = vector.extract_strided_slice %40 {offsets = [0, 22], sizes = [16, 2], strides = [1, 1]} : vector<16x24xf32> to vector<16x2xf32>
    %cst_52 = arith.constant dense<0.000000e+00> : vector<16x16xf32>
    %98 = tpu.matmul %95, %96, %cst_52 {dimension_numbers = #tpu.dot_dimension_numbers<[1], [1], [0], [0], [0, 0, 1, 0], [], []>} : vector<16x2xf32>, vector<16x2xf32>, vector<16x16xf32> -> vector<16x16xf32>
    %cst_53 = arith.constant 0.707106769 : f32
    %99 = vector.broadcast %cst_53 : f32 to vector<16x16xf32>
    %100 = arith.mulf %98, %99 : vector<16x16xf32>
    %101 = arith.addf %100, %3 : vector<16x16xf32>
    %cst_54 = arith.constant dense<0xFF800000> : vector<16xf32>
    %102 = vector.multi_reduction <maximumf>, %101, %cst_54 [1] : vector<16x16xf32> to vector<16xf32>
    %103 = vector.shape_cast %102 : vector<16xf32> to vector<16x1xf32>
    %104 = vector.broadcast %103 : vector<16x1xf32> to vector<16x16xf32>
    %105 = arith.subf %101, %104 : vector<16x16xf32>
    %106 = math.exp %105 : vector<16x16xf32>
    %cst_55 = arith.constant dense<0.000000e+00> : vector<16xf32>
    %107 = vector.multi_reduction <add>, %106, %cst_55 [1] : vector<16x16xf32> to vector<16xf32>
    %108 = vector.shape_cast %107 : vector<16xf32> to vector<16x1xf32>
    %109 = tpu.reciprocal %108 {approx = true} : vector<16x1xf32> -> vector<16x1xf32>
    %110 = vector.broadcast %109 : vector<16x1xf32> to vector<16x16xf32>
    %111 = arith.mulf %106, %110 : vector<16x16xf32>
    %cst_56 = arith.constant dense<0.000000e+00> : vector<16x2xf32>
    %112 = tpu.matmul %111, %97, %cst_56 {dimension_numbers = #tpu.dot_dimension_numbers<[1], [0], [0], [1], [0, 0, 1, 1], [], []>} : vector<16x16xf32>, vector<16x2xf32>, vector<16x2xf32> -> vector<16x2xf32>
    %113 = tpu.concatenate %58, %76, %94, %112 in 1 : vector<16x2xf32>, vector<16x2xf32>, vector<16x2xf32>, vector<16x2xf32> -> vector<16x8xf32>
    %cst_57 = arith.constant dense<0.000000e+00> : vector<16x8xf32>
    %114 = tpu.matmul %113, %5, %cst_57 {dimension_numbers = #tpu.dot_dimension_numbers<[1], [0], [0], [1], [0, 0, 1, 1], [], []>} : vector<16x8xf32>, vector<8x8xf32>, vector<16x8xf32> -> vector<16x8xf32>
    %115 = vector.broadcast %16 : vector<1x8xf32> to vector<16x8xf32>
    %116 = arith.addf %114, %115 : vector<16x8xf32>
    %117 = arith.addf %37, %116 : vector<16x8xf32>
    %cst_58 = arith.constant dense<0.000000e+00> : vector<16xf32>
    %118 = vector.multi_reduction <add>, %117, %cst_58 [1] : vector<16x8xf32> to vector<16xf32>
    %119 = vector.shape_cast %118 : vector<16xf32> to vector<16x1xf32>
    %cst_59 = arith.constant 8.000000e+00 : f32
    %120 = vector.broadcast %cst_59 : f32 to vector<16x1xf32>
    %121 = arith.divf %119, %120 : vector<16x1xf32>
    %122 = vector.broadcast %121 : vector<16x1xf32> to vector<16x8xf32>
    %123 = arith.subf %117, %122 : vector<16x8xf32>
    %124 = arith.mulf %123, %123 : vector<16x8xf32>
    %cst_60 = arith.constant dense<0.000000e+00> : vector<16xf32>
    %125 = vector.multi_reduction <add>, %124, %cst_60 [1] : vector<16x8xf32> to vector<16xf32>
    %126 = vector.shape_cast %125 : vector<16xf32> to vector<16x1xf32>
    %cst_61 = arith.constant 8.000000e+00 : f32
    %127 = vector.broadcast %cst_61 : f32 to vector<16x1xf32>
    %128 = arith.divf %126, %127 : vector<16x1xf32>
    %129 = vector.broadcast %121 : vector<16x1xf32> to vector<16x8xf32>
    %130 = arith.subf %117, %129 : vector<16x8xf32>
    %cst_62 = arith.constant 9.99999974E-6 : f32
    %131 = vector.broadcast %cst_62 : f32 to vector<16x1xf32>
    %132 = arith.addf %128, %131 : vector<16x1xf32>
    %133 = math.rsqrt %132 : vector<16x1xf32>
    %134 = vector.broadcast %133 : vector<16x1xf32> to vector<16x8xf32>
    %135 = arith.mulf %130, %134 : vector<16x8xf32>
    %136 = vector.broadcast %19 : vector<1x8xf32> to vector<16x8xf32>
    %137 = arith.mulf %135, %136 : vector<16x8xf32>
    %138 = vector.broadcast %20 : vector<1x8xf32> to vector<16x8xf32>
    %139 = arith.addf %137, %138 : vector<16x8xf32>
    %cst_63 = arith.constant dense<0.000000e+00> : vector<16x32xf32>
    %140 = tpu.matmul %139, %6, %cst_63 {dimension_numbers = #tpu.dot_dimension_numbers<[1], [0], [0], [1], [0, 0, 1, 1], [], []>} : vector<16x8xf32>, vector<8x32xf32>, vector<16x32xf32> -> vector<16x32xf32>
    %141 = vector.broadcast %17 : vector<1x32xf32> to vector<16x32xf32>
    %142 = arith.addf %140, %141 : vector<16x32xf32>
    %cst_64 = arith.constant 0.000000e+00 : f32
    %143 = vector.broadcast %cst_64 : f32 to vector<16x32xf32>
    %144 = arith.maximumf %142, %143 : vector<16x32xf32>
    %cst_65 = arith.constant dense<0.000000e+00> : vector<16x8xf32>
    %145 = tpu.matmul %144, %7, %cst_65 {dimension_numbers = #tpu.dot_dimension_numbers<[1], [0], [0], [1], [0, 0, 1, 1], [], []>} : vector<16x32xf32>, vector<32x8xf32>, vector<16x8xf32> -> vector<16x8xf32>
    %146 = vector.broadcast %18 : vector<1x8xf32> to vector<16x8xf32>
    %147 = arith.addf %145, %146 : vector<16x8xf32>
    %148 = arith.addf %139, %147 : vector<16x8xf32>
    %cst_66 = arith.constant dense<0.000000e+00> : vector<16xf32>
    %149 = vector.multi_reduction <add>, %148, %cst_66 [1] : vector<16x8xf32> to vector<16xf32>
    %150 = vector.shape_cast %149 : vector<16xf32> to vector<16x1xf32>
    %cst_67 = arith.constant 8.000000e+00 : f32
    %151 = vector.broadcast %cst_67 : f32 to vector<16x1xf32>
    %152 = arith.divf %150, %151 : vector<16x1xf32>
    %153 = vector.broadcast %152 : vector<16x1xf32> to vector<16x8xf32>
    %154 = arith.subf %148, %153 : vector<16x8xf32>
    %155 = arith.mulf %154, %154 : vector<16x8xf32>
    %cst_68 = arith.constant dense<0.000000e+00> : vector<16xf32>
    %156 = vector.multi_reduction <add>, %155, %cst_68 [1] : vector<16x8xf32> to vector<16xf32>
    %157 = vector.shape_cast %156 : vector<16xf32> to vector<16x1xf32>
    %cst_69 = arith.constant 8.000000e+00 : f32
    %158 = vector.broadcast %cst_69 : f32 to vector<16x1xf32>
    %159 = arith.divf %157, %158 : vector<16x1xf32>
    %160 = vector.broadcast %152 : vector<16x1xf32> to vector<16x8xf32>
    %161 = arith.subf %148, %160 : vector<16x8xf32>
    %cst_70 = arith.constant 9.99999974E-6 : f32
    %162 = vector.broadcast %cst_70 : f32 to vector<16x1xf32>
    %163 = arith.addf %159, %162 : vector<16x1xf32>
    %164 = math.rsqrt %163 : vector<16x1xf32>
    %165 = vector.broadcast %164 : vector<16x1xf32> to vector<16x8xf32>
    %166 = arith.mulf %161, %165 : vector<16x8xf32>
    %167 = vector.broadcast %21 : vector<1x8xf32> to vector<16x8xf32>
    %168 = arith.mulf %166, %167 : vector<16x8xf32>
    %169 = vector.broadcast %22 : vector<1x8xf32> to vector<16x8xf32>
    %170 = arith.addf %168, %169 : vector<16x8xf32>
    %cst_71 = arith.constant dense<0.000000e+00> : vector<16x24xf32>
    %171 = tpu.matmul %170, %8, %cst_71 {dimension_numbers = #tpu.dot_dimension_numbers<[1], [0], [0], [1], [0, 0, 1, 1], [], []>} : vector<16x8xf32>, vector<8x24xf32>, vector<16x24xf32> -> vector<16x24xf32>
    %172 = vector.broadcast %23 : vector<1x24xf32> to vector<16x24xf32>
    %173 = arith.addf %171, %172 : vector<16x24xf32>
    %174 = vector.extract_strided_slice %173 {offsets = [0, 0], sizes = [16, 2], strides = [1, 1]} : vector<16x24xf32> to vector<16x2xf32>
    %175 = vector.extract_strided_slice %173 {offsets = [0, 8], sizes = [16, 2], strides = [1, 1]} : vector<16x24xf32> to vector<16x2xf32>
    %176 = vector.extract_strided_slice %173 {offsets = [0, 16], sizes = [16, 2], strides = [1, 1]} : vector<16x24xf32> to vector<16x2xf32>
    %cst_72 = arith.constant dense<0.000000e+00> : vector<16x16xf32>
    %177 = tpu.matmul %174, %175, %cst_72 {dimension_numbers = #tpu.dot_dimension_numbers<[1], [1], [0], [0], [0, 0, 1, 0], [], []>} : vector<16x2xf32>, vector<16x2xf32>, vector<16x16xf32> -> vector<16x16xf32>
    %cst_73 = arith.constant 0.707106769 : f32
    %178 = vector.broadcast %cst_73 : f32 to vector<16x16xf32>
    %179 = arith.mulf %177, %178 : vector<16x16xf32>
    %180 = arith.addf %179, %3 : vector<16x16xf32>
    %cst_74 = arith.constant dense<0xFF800000> : vector<16xf32>
    %181 = vector.multi_reduction <maximumf>, %180, %cst_74 [1] : vector<16x16xf32> to vector<16xf32>
    %182 = vector.shape_cast %181 : vector<16xf32> to vector<16x1xf32>
    %183 = vector.broadcast %182 : vector<16x1xf32> to vector<16x16xf32>
    %184 = arith.subf %180, %183 : vector<16x16xf32>
    %185 = math.exp %184 : vector<16x16xf32>
    %cst_75 = arith.constant dense<0.000000e+00> : vector<16xf32>
    %186 = vector.multi_reduction <add>, %185, %cst_75 [1] : vector<16x16xf32> to vector<16xf32>
    %187 = vector.shape_cast %186 : vector<16xf32> to vector<16x1xf32>
    %188 = tpu.reciprocal %187 {approx = true} : vector<16x1xf32> -> vector<16x1xf32>
    %189 = vector.broadcast %188 : vector<16x1xf32> to vector<16x16xf32>
    %190 = arith.mulf %185, %189 : vector<16x16xf32>
    %cst_76 = arith.constant dense<0.000000e+00> : vector<16x2xf32>
    %191 = tpu.matmul %190, %176, %cst_76 {dimension_numbers = #tpu.dot_dimension_numbers<[1], [0], [0], [1], [0, 0, 1, 1], [], []>} : vector<16x16xf32>, vector<16x2xf32>, vector<16x2xf32> -> vector<16x2xf32>
    %192 = vector.extract_strided_slice %173 {offsets = [0, 2], sizes = [16, 2], strides = [1, 1]} : vector<16x24xf32> to vector<16x2xf32>
    %193 = vector.extract_strided_slice %173 {offsets = [0, 10], sizes = [16, 2], strides = [1, 1]} : vector<16x24xf32> to vector<16x2xf32>
    %194 = vector.extract_strided_slice %173 {offsets = [0, 18], sizes = [16, 2], strides = [1, 1]} : vector<16x24xf32> to vector<16x2xf32>
    %cst_77 = arith.constant dense<0.000000e+00> : vector<16x16xf32>
    %195 = tpu.matmul %192, %193, %cst_77 {dimension_numbers = #tpu.dot_dimension_numbers<[1], [1], [0], [0], [0, 0, 1, 0], [], []>} : vector<16x2xf32>, vector<16x2xf32>, vector<16x16xf32> -> vector<16x16xf32>
    %cst_78 = arith.constant 0.707106769 : f32
    %196 = vector.broadcast %cst_78 : f32 to vector<16x16xf32>
    %197 = arith.mulf %195, %196 : vector<16x16xf32>
    %198 = arith.addf %197, %3 : vector<16x16xf32>
    %cst_79 = arith.constant dense<0xFF800000> : vector<16xf32>
    %199 = vector.multi_reduction <maximumf>, %198, %cst_79 [1] : vector<16x16xf32> to vector<16xf32>
    %200 = vector.shape_cast %199 : vector<16xf32> to vector<16x1xf32>
    %201 = vector.broadcast %200 : vector<16x1xf32> to vector<16x16xf32>
    %202 = arith.subf %198, %201 : vector<16x16xf32>
    %203 = math.exp %202 : vector<16x16xf32>
    %cst_80 = arith.constant dense<0.000000e+00> : vector<16xf32>
    %204 = vector.multi_reduction <add>, %203, %cst_80 [1] : vector<16x16xf32> to vector<16xf32>
    %205 = vector.shape_cast %204 : vector<16xf32> to vector<16x1xf32>
    %206 = tpu.reciprocal %205 {approx = true} : vector<16x1xf32> -> vector<16x1xf32>
    %207 = vector.broadcast %206 : vector<16x1xf32> to vector<16x16xf32>
    %208 = arith.mulf %203, %207 : vector<16x16xf32>
    %cst_81 = arith.constant dense<0.000000e+00> : vector<16x2xf32>
    %209 = tpu.matmul %208, %194, %cst_81 {dimension_numbers = #tpu.dot_dimension_numbers<[1], [0], [0], [1], [0, 0, 1, 1], [], []>} : vector<16x16xf32>, vector<16x2xf32>, vector<16x2xf32> -> vector<16x2xf32>
    %210 = vector.extract_strided_slice %173 {offsets = [0, 4], sizes = [16, 2], strides = [1, 1]} : vector<16x24xf32> to vector<16x2xf32>
    %211 = vector.extract_strided_slice %173 {offsets = [0, 12], sizes = [16, 2], strides = [1, 1]} : vector<16x24xf32> to vector<16x2xf32>
    %212 = vector.extract_strided_slice %173 {offsets = [0, 20], sizes = [16, 2], strides = [1, 1]} : vector<16x24xf32> to vector<16x2xf32>
    %cst_82 = arith.constant dense<0.000000e+00> : vector<16x16xf32>
    %213 = tpu.matmul %210, %211, %cst_82 {dimension_numbers = #tpu.dot_dimension_numbers<[1], [1], [0], [0], [0, 0, 1, 0], [], []>} : vector<16x2xf32>, vector<16x2xf32>, vector<16x16xf32> -> vector<16x16xf32>
    %cst_83 = arith.constant 0.707106769 : f32
    %214 = vector.broadcast %cst_83 : f32 to vector<16x16xf32>
    %215 = arith.mulf %213, %214 : vector<16x16xf32>
    %216 = arith.addf %215, %3 : vector<16x16xf32>
    %cst_84 = arith.constant dense<0xFF800000> : vector<16xf32>
    %217 = vector.multi_reduction <maximumf>, %216, %cst_84 [1] : vector<16x16xf32> to vector<16xf32>
    %218 = vector.shape_cast %217 : vector<16xf32> to vector<16x1xf32>
    %219 = vector.broadcast %218 : vector<16x1xf32> to vector<16x16xf32>
    %220 = arith.subf %216, %219 : vector<16x16xf32>
    %221 = math.exp %220 : vector<16x16xf32>
    %cst_85 = arith.constant dense<0.000000e+00> : vector<16xf32>
    %222 = vector.multi_reduction <add>, %221, %cst_85 [1] : vector<16x16xf32> to vector<16xf32>
    %223 = vector.shape_cast %222 : vector<16xf32> to vector<16x1xf32>
    %224 = tpu.reciprocal %223 {approx = true} : vector<16x1xf32> -> vector<16x1xf32>
    %225 = vector.broadcast %224 : vector<16x1xf32> to vector<16x16xf32>
    %226 = arith.mulf %221, %225 : vector<16x16xf32>
    %cst_86 = arith.constant dense<0.000000e+00> : vector<16x2xf32>
    %227 = tpu.matmul %226, %212, %cst_86 {dimension_numbers = #tpu.dot_dimension_numbers<[1], [0], [0], [1], [0, 0, 1, 1], [], []>} : vector<16x16xf32>, vector<16x2xf32>, vector<16x2xf32> -> vector<16x2xf32>
    %228 = vector.extract_strided_slice %173 {offsets = [0, 6], sizes = [16, 2], strides = [1, 1]} : vector<16x24xf32> to vector<16x2xf32>
    %229 = vector.extract_strided_slice %173 {offsets = [0, 14], sizes = [16, 2], strides = [1, 1]} : vector<16x24xf32> to vector<16x2xf32>
    %230 = vector.extract_strided_slice %173 {offsets = [0, 22], sizes = [16, 2], strides = [1, 1]} : vector<16x24xf32> to vector<16x2xf32>
    %cst_87 = arith.constant dense<0.000000e+00> : vector<16x16xf32>
    %231 = tpu.matmul %228, %229, %cst_87 {dimension_numbers = #tpu.dot_dimension_numbers<[1], [1], [0], [0], [0, 0, 1, 0], [], []>} : vector<16x2xf32>, vector<16x2xf32>, vector<16x16xf32> -> vector<16x16xf32>
    %cst_88 = arith.constant 0.707106769 : f32
    %232 = vector.broadcast %cst_88 : f32 to vector<16x16xf32>
    %233 = arith.mulf %231, %232 : vector<16x16xf32>
    %234 = arith.addf %233, %3 : vector<16x16xf32>
    %cst_89 = arith.constant dense<0xFF800000> : vector<16xf32>
    %235 = vector.multi_reduction <maximumf>, %234, %cst_89 [1] : vector<16x16xf32> to vector<16xf32>
    %236 = vector.shape_cast %235 : vector<16xf32> to vector<16x1xf32>
    %237 = vector.broadcast %236 : vector<16x1xf32> to vector<16x16xf32>
    %238 = arith.subf %234, %237 : vector<16x16xf32>
    %239 = math.exp %238 : vector<16x16xf32>
    %cst_90 = arith.constant dense<0.000000e+00> : vector<16xf32>
    %240 = vector.multi_reduction <add>, %239, %cst_90 [1] : vector<16x16xf32> to vector<16xf32>
    %241 = vector.shape_cast %240 : vector<16xf32> to vector<16x1xf32>
    %242 = tpu.reciprocal %241 {approx = true} : vector<16x1xf32> -> vector<16x1xf32>
    %243 = vector.broadcast %242 : vector<16x1xf32> to vector<16x16xf32>
    %244 = arith.mulf %239, %243 : vector<16x16xf32>
    %cst_91 = arith.constant dense<0.000000e+00> : vector<16x2xf32>
    %245 = tpu.matmul %244, %230, %cst_91 {dimension_numbers = #tpu.dot_dimension_numbers<[1], [0], [0], [1], [0, 0, 1, 1], [], []>} : vector<16x16xf32>, vector<16x2xf32>, vector<16x2xf32> -> vector<16x2xf32>
    %246 = tpu.concatenate %191, %209, %227, %245 in 1 : vector<16x2xf32>, vector<16x2xf32>, vector<16x2xf32>, vector<16x2xf32> -> vector<16x8xf32>
    %cst_92 = arith.constant dense<0.000000e+00> : vector<16x8xf32>
    %247 = tpu.matmul %246, %9, %cst_92 {dimension_numbers = #tpu.dot_dimension_numbers<[1], [0], [0], [1], [0, 0, 1, 1], [], []>} : vector<16x8xf32>, vector<8x8xf32>, vector<16x8xf32> -> vector<16x8xf32>
    %248 = vector.broadcast %24 : vector<1x8xf32> to vector<16x8xf32>
    %249 = arith.addf %247, %248 : vector<16x8xf32>
    %250 = arith.addf %170, %249 : vector<16x8xf32>
    %cst_93 = arith.constant dense<0.000000e+00> : vector<16xf32>
    %251 = vector.multi_reduction <add>, %250, %cst_93 [1] : vector<16x8xf32> to vector<16xf32>
    %252 = vector.shape_cast %251 : vector<16xf32> to vector<16x1xf32>
    %cst_94 = arith.constant 8.000000e+00 : f32
    %253 = vector.broadcast %cst_94 : f32 to vector<16x1xf32>
    %254 = arith.divf %252, %253 : vector<16x1xf32>
    %255 = vector.broadcast %254 : vector<16x1xf32> to vector<16x8xf32>
    %256 = arith.subf %250, %255 : vector<16x8xf32>
    %257 = arith.mulf %256, %256 : vector<16x8xf32>
    %cst_95 = arith.constant dense<0.000000e+00> : vector<16xf32>
    %258 = vector.multi_reduction <add>, %257, %cst_95 [1] : vector<16x8xf32> to vector<16xf32>
    %259 = vector.shape_cast %258 : vector<16xf32> to vector<16x1xf32>
    %cst_96 = arith.constant 8.000000e+00 : f32
    %260 = vector.broadcast %cst_96 : f32 to vector<16x1xf32>
    %261 = arith.divf %259, %260 : vector<16x1xf32>
    %262 = vector.broadcast %254 : vector<16x1xf32> to vector<16x8xf32>
    %263 = arith.subf %250, %262 : vector<16x8xf32>
    %cst_97 = arith.constant 9.99999974E-6 : f32
    %264 = vector.broadcast %cst_97 : f32 to vector<16x1xf32>
    %265 = arith.addf %261, %264 : vector<16x1xf32>
    %266 = math.rsqrt %265 : vector<16x1xf32>
    %267 = vector.broadcast %266 : vector<16x1xf32> to vector<16x8xf32>
    %268 = arith.mulf %263, %267 : vector<16x8xf32>
    %269 = vector.broadcast %27 : vector<1x8xf32> to vector<16x8xf32>
    %270 = arith.mulf %268, %269 : vector<16x8xf32>
    %271 = vector.broadcast %28 : vector<1x8xf32> to vector<16x8xf32>
    %272 = arith.addf %270, %271 : vector<16x8xf32>
    %cst_98 = arith.constant dense<0.000000e+00> : vector<16x32xf32>
    %273 = tpu.matmul %272, %10, %cst_98 {dimension_numbers = #tpu.dot_dimension_numbers<[1], [0], [0], [1], [0, 0, 1, 1], [], []>} : vector<16x8xf32>, vector<8x32xf32>, vector<16x32xf32> -> vector<16x32xf32>
    %274 = vector.broadcast %25 : vector<1x32xf32> to vector<16x32xf32>
    %275 = arith.addf %273, %274 : vector<16x32xf32>
    %cst_99 = arith.constant 0.000000e+00 : f32
    %276 = vector.broadcast %cst_99 : f32 to vector<16x32xf32>
    %277 = arith.maximumf %275, %276 : vector<16x32xf32>
    %cst_100 = arith.constant dense<0.000000e+00> : vector<16x8xf32>
    %278 = tpu.matmul %277, %11, %cst_100 {dimension_numbers = #tpu.dot_dimension_numbers<[1], [0], [0], [1], [0, 0, 1, 1], [], []>} : vector<16x32xf32>, vector<32x8xf32>, vector<16x8xf32> -> vector<16x8xf32>
    %279 = vector.broadcast %26 : vector<1x8xf32> to vector<16x8xf32>
    %280 = arith.addf %278, %279 : vector<16x8xf32>
    %281 = arith.addf %272, %280 : vector<16x8xf32>
    %cst_101 = arith.constant dense<0.000000e+00> : vector<16xf32>
    %282 = vector.multi_reduction <add>, %281, %cst_101 [1] : vector<16x8xf32> to vector<16xf32>
    %283 = vector.shape_cast %282 : vector<16xf32> to vector<16x1xf32>
    %cst_102 = arith.constant 8.000000e+00 : f32
    %284 = vector.broadcast %cst_102 : f32 to vector<16x1xf32>
    %285 = arith.divf %283, %284 : vector<16x1xf32>
    %286 = vector.broadcast %285 : vector<16x1xf32> to vector<16x8xf32>
    %287 = arith.subf %281, %286 : vector<16x8xf32>
    %288 = arith.mulf %287, %287 : vector<16x8xf32>
    %cst_103 = arith.constant dense<0.000000e+00> : vector<16xf32>
    %289 = vector.multi_reduction <add>, %288, %cst_103 [1] : vector<16x8xf32> to vector<16xf32>
    %290 = vector.shape_cast %289 : vector<16xf32> to vector<16x1xf32>
    %cst_104 = arith.constant 8.000000e+00 : f32
    %291 = vector.broadcast %cst_104 : f32 to vector<16x1xf32>
    %292 = arith.divf %290, %291 : vector<16x1xf32>
    %293 = vector.broadcast %285 : vector<16x1xf32> to vector<16x8xf32>
    %294 = arith.subf %281, %293 : vector<16x8xf32>
    %cst_105 = arith.constant 9.99999974E-6 : f32
    %295 = vector.broadcast %cst_105 : f32 to vector<16x1xf32>
    %296 = arith.addf %292, %295 : vector<16x1xf32>
    %297 = math.rsqrt %296 : vector<16x1xf32>
    %298 = vector.broadcast %297 : vector<16x1xf32> to vector<16x8xf32>
    %299 = arith.mulf %294, %298 : vector<16x8xf32>
    %300 = vector.broadcast %29 : vector<1x8xf32> to vector<16x8xf32>
    %301 = arith.mulf %299, %300 : vector<16x8xf32>
    %302 = vector.broadcast %30 : vector<1x8xf32> to vector<16x8xf32>
    %303 = arith.addf %301, %302 : vector<16x8xf32>
    %cst_106 = arith.constant dense<0.000000e+00> : vector<16x40xf32>
    %304 = tpu.matmul %303, %12, %cst_106 {dimension_numbers = #tpu.dot_dimension_numbers<[1], [0], [0], [1], [0, 0, 1, 1], [], []>} : vector<16x8xf32>, vector<8x40xf32>, vector<16x40xf32> -> vector<16x40xf32>
    %305 = vector.broadcast %31 : vector<1x40xf32> to vector<16x40xf32>
    %306 = arith.addf %304, %305 : vector<16x40xf32>
    %307 = vector.extract_strided_slice %306 {offsets = [0, 0], sizes = [16, 32], strides = [1, 1]} : vector<16x40xf32> to vector<16x32xf32>
    %308 = vector.extract_strided_slice %306 {offsets = [0, 32], sizes = [16, 8], strides = [1, 1]} : vector<16x40xf32> to vector<16x8xf32>
    %cst_107 = arith.constant 0.000000e+00 : f32
    %309 = vector.broadcast %cst_107 : f32 to vector<16x8xf32>
    %310 = arith.cmpf ogt, %308, %309 : vector<16x8xf32>
    %cst_108 = arith.constant 0.000000e+00 : f32
    %311 = vector.broadcast %cst_108 : f32 to vector<16x8xf32>
    %312 = arith.minimumf %308, %311 : vector<16x8xf32>
    %313 = math.exp %312 : vector<16x8xf32>
    %cst_109 = arith.constant 1.000000e+00 : f32
    %314 = vector.broadcast %cst_109 : f32 to vector<16x8xf32>
    %315 = arith.subf %313, %314 : vector<16x8xf32>
    %316 = arith.select %310, %308, %315 : vector<16x8xi1>, vector<16x8xf32>
    %cst_110 = arith.constant dense<0.000000e+00> : vector<16x32xf32>
    %317 = tpu.matmul %316, %13, %cst_110 {dimension_numbers = #tpu.dot_dimension_numbers<[1], [0], [0], [1], [0, 0, 1, 1], [], []>} : vector<16x8xf32>, vector<8x32xf32>, vector<16x32xf32> -> vector<16x32xf32>
    %318 = vector.broadcast %32 : vector<1x32xf32> to vector<16x32xf32>
    %319 = arith.addf %317, %318 : vector<16x32xf32>
    %cst_111 = arith.constant dense<0.000000e+00> : vector<16x64xf32>
    %320 = tpu.matmul %319, %14, %cst_111 {dimension_numbers = #tpu.dot_dimension_numbers<[1], [0], [0], [1], [0, 0, 1, 1], [], []>} : vector<16x32xf32>, vector<32x64xf32>, vector<16x64xf32> -> vector<16x64xf32>
    %321 = vector.broadcast %33 : vector<1x64xf32> to vector<16x64xf32>
    %322 = arith.addf %320, %321 : vector<16x64xf32>
    %323 = vector.extract_strided_slice %322 {offsets = [0, 0], sizes = [16, 32], strides = [1, 1]} : vector<16x64xf32> to vector<16x32xf32>
    %cst_112 = arith.constant 0.000000e+00 : f32
    %324 = vector.broadcast %cst_112 : f32 to vector<16x32xf32>
    %325 = arith.subf %324, %323 : vector<16x32xf32>
    %326 = math.exp %325 : vector<16x32xf32>
    %cst_113 = arith.constant 1.000000e+00 : f32
    %327 = vector.broadcast %cst_113 : f32 to vector<16x32xf32>
    %328 = arith.addf %327, %326 : vector<16x32xf32>
    %329 = tpu.reciprocal %328 {approx = true} : vector<16x32xf32> -> vector<16x32xf32>
    %330 = vector.extract_strided_slice %322 {offsets = [0, 32], sizes = [16, 32], strides = [1, 1]} : vector<16x64xf32> to vector<16x32xf32>
    %331 = arith.mulf %329, %330 : vector<16x32xf32>
    %332 = arith.addf %331, %307 : vector<16x32xf32>
    %333 = vector.shape_cast %332 : vector<16x32xf32> to vector<2x8x32xf32>
    %334 = vector.shape_cast %34 : vector<1x32xf32> to vector<1x1x32xf32>
    %335 = vector.broadcast %334 : vector<1x1x32xf32> to vector<2x8x32xf32>
    %336 = arith.mulf %333, %335 : vector<2x8x32xf32>
    %cst_114 = arith.constant dense<0.000000e+00> : vector<2x8xf32>
    %337 = vector.multi_reduction <add>, %336, %cst_114 [2] : vector<2x8x32xf32> to vector<2x8xf32>
    %338 = vector.broadcast %35 : vector<1x1xf32> to vector<2x8xf32>
    %339 = arith.addf %337, %338 : vector<2x8xf32>
    %c0_115 = arith.constant 0 : index
    %c0_116 = arith.constant 0 : index
    %340 = vector.load %arg1[%c0_115, %c0_116] : memref<2x8xf32, #tpu.memory_space<vmem>>, vector<2x8xf32>
    tpu.vector_store %arg1[%c0_115, %c0_116], %339 {strides = array<i32>} : memref<2x8xf32, #tpu.memory_space<vmem>>, vector<2x8xf32>,
    return
  }
}

</mosaic_0001>

<llo_original>
// kernel: grnformer_forward.1
$region0: #{grnformer_forward.1}
  #allocation0 [shape = 'u32[]', space=smem, size = 0x4, offset = 0x4, fixed_abs, tag = 'smem constant byte address 0x4 - core index']
  #allocation1 [shape = 'u32[144,128]{1,0:T(1,128)}', space=vmem, size = 0x12000, scoped, tag = 'internal scratch']
  %s0 = inlined_call_operand.vmem [shape: f32[240,128], index: 0, kind: input, shape index: {}]
  %s1 = inlined_call_operand.hbm [shape: f32[2,8], index: 1, kind: output, shape index: {}]
  %s2 = sld [smem:[#allocation0]]
  $region14: #{grnformer_forward.1} parent=0
    _
  %s4 = ssub.s32 1, %s2
  %s5 = scalar_select 0, %s4, %s2
  $region1: #{grnformer_forward.1} parent=0
    #allocation2 [shape = 'u8[1024]{0}', space=vmem, size = 0x400, scoped, tag = 'output window, operand 0, single buffered']
    #allocation3 [shape = 's32[1]{0}', space=sflag, size = 0x4, scoped, tag = 'scoped memory for grnformer_forward.1']
    %6 = vsyncpa [#allocation3], 0
    // Predicated region
    $region2: #{grnformer_forward.1} parent=1 // pred_check
      _
    $region3: #{grnformer_forward.1} parent=1 // pred_check_branch
      %8 = sbr.rel (0) target = $region5
    $region4: #{grnformer_forward.1} parent=1 // pred_region
      _
    $region5: #{grnformer_forward.1} parent=1 // pred_fallthru
      _
    %v9 = vld [vmem:[%s0] sm:$0xff]
    %v10 = vld [vmem:[%s0 + $0x8] sm:$0xff]
    %v11 = vld [vmem:[%s0 + $0x10] sm:$0xff]
    %v12 = vld [vmem:[%s0 + $0x18] sm:$0xff]
    %v13 = vld [vmem:[%s0 + $0x20] sm:$0xff]
    %v14 = vld [vmem:[%s0 + $0x28] sm:$0xff]
    %v15 = vld [vmem:[%s0 + $0x30] sm:$0xff]
    %v16 = vld [vmem:[%s0 + $0x38] sm:$0xff]
    %v17 = vld [vmem:[%s0 + $0x40] sm:$0xff]
    %v18 = vld [vmem:[%s0 + $0x48] sm:$0xff]
    %v19 = vld [vmem:[%s0 + $0x50] sm:$0xff]
    %v20 = vld [vmem:[%s0 + $0x58] sm:$0xff]
    %v21 = vld [vmem:[%s0 + $0x60] sm:$0xff]
    %v22 = vld [vmem:[%s0 + $0x68] sm:$0xff]
    %v23 = vld [vmem:[%s0 + $0x70] sm:$0xff]
    %v24 = vld [vmem:[%s0 + $0x78] sm:$0xff]
    %v25 = vld [vmem:[%s0 + $0x80] sm:$0xff]
    %v26 = vld [vmem:[%s0 + $0x88] sm:$0xff]
    %v27 = vld [vmem:[%s0 + $0x90] sm:$0xff]
    %v28 = vld [vmem:[%s0 + $0x98] sm:$0xff]
    %v29 = vld [vmem:[%s0 + $0xa0] sm:$0xff]
    %v30 = vld [vmem:[%s0 + $0xa8] sm:$0xff]
    %v31 = vld [vmem:[%s0 + $0xb0] sm:$0xff]
    %v32 = vld [vmem:[%s0 + $0xb8] sm:$0xff]
    %v33 = vld [vmem:[%s0 + $0xc0] sm:$0xff]
    %v34 = vld [vmem:[%s0 + $0xc8] sm:$0xff]
    %v35 = vld [vmem:[%s0 + $0xd0] sm:$0xff]
    %v36 = vld [vmem:[%s0 + $0xd8] sm:$0x1]
    %v37 = vld [vmem:[%s0 + $0xd9] sm:$0x1]
    %v38 = vld [vmem:[%s0 + $0xda] sm:$0x1]
    %v39 = vld [vmem:[%s0 + $0xdb] sm:$0x1]
    %v40 = vld [vmem:[%s0 + $0xdc] sm:$0x1]
    %v41 = vld [vmem:[%s0 + $0xdd] sm:$0x1]
    %v42 = vld [vmem:[%s0 + $0xde] sm:$0x1]
    %v43 = vld [vmem:[%s0 + $0xdf] sm:$0x1]
    %v44 = vld [vmem:[%s0 + $0xe0] sm:$0x1]
    %v45 = vld [vmem:[%s0 + $0xe1] sm:$0x1]
    %v46 = vld [vmem:[%s0 + $0xe2] sm:$0x1]
    %v47 = vld [vmem:[%s0 + $0xe3] sm:$0x1]
    %v48 = vld [vmem:[%s0 + $0xe4] sm:$0x1]
    %v49 = vld [vmem:[%s0 + $0xe5] sm:$0x1]
    %v50 = vld [vmem:[%s0 + $0xe6] sm:$0x1]
    %v51 = vld [vmem:[%s0 + $0xe7] sm:$0x1]
    %v52 = vld [vmem:[%s0 + $0xe8] sm:$0x1]
    %v53 = vld [vmem:[%s0 + $0xe9] sm:$0x1]
    %v54 = vld [vmem:[%s0 + $0xea] sm:$0x1]
    %v55 = vld [vmem:[%s0 + $0xeb] sm:$0x1]
    %v56 = vld [vmem:[%s0 + $0xec] sm:$0x1]
    %vm57 = vcmask 64512
    %v59 = vsel %vm57, %v9, 0
    %v62 = vsel %vm57, %v10, 0
    %64 = vmatprep.subr.mxu0 0.0
    %65 = vmatpush1.msra.mxu0 %v11
    %66 = vmatprep.subr.mxu0 0.0
    %67 = vmatpush1.msra.mxu0 0.0
    %68 = vmatprep.subr.mxu0 0.0
    %69 = vmatpush1.msra.mxu0 0.0
    %70 = vmatprep.subr.mxu0 0.0
    %71 = vmatpush1.msra.mxu0 0.0
    %72 = vmatprep.subr.mxu0 0.0
    %73 = vmatpush1.msra.mxu0 0.0
    %74 = vmatprep.subr.mxu0 0.0
    %75 = vmatpush1.msra.mxu0 0.0
    %76 = vmatprep.subr.mxu0 0.0
    %77 = vmatpush1.msra.mxu0 0.0
    %78 = vmatprep.subr.mxu0 0.0
    %79 = vmatpush1.msra.mxu0 0.0
    %80 = vmatprep.subr.mxu0 0.0
    %81 = vmatpush1.msra.mxu0 0.0
    %82 = vmatprep.subr.mxu0 0.0
    %83 = vmatpush1.msra.mxu0 0.0
    %84 = vmatprep.subr.mxu0 0.0
    %85 = vmatpush1.msra.mxu0 0.0
    %86 = vmatprep.subr.mxu0 0.0
    %87 = vmatpush1.msra.mxu0 0.0
    %88 = vmatprep.subr.mxu0 0.0
    %89 = vmatpush1.msra.mxu0 0.0
    %90 = vmatprep.subr.mxu0 0.0
    %91 = vmatpush1.msra.mxu0 0.0
    %92 = vmatprep.subr.mxu0 0.0
    %93 = vmatpush1.msra.mxu0 0.0
    %94 = vmatprep.subr.mxu0 0.0
    %95 = vmatpush1.msra.mxu0 0.0
    %96 = vmatprep.subr.mxu0 0.0
    %97 = vmatpush1.msra.mxu0 0.0
    %98 = vmatprep.subr.mxu0 0.0
    %99 = vmatpush1.msra.mxu0 0.0
    %100 = vmatprep.subr.mxu0 0.0
    %101 = vmatpush1.msra.mxu0 0.0
    %102 = vmatprep.subr.mxu0 0.0
    %103 = vmatpush1.msra.mxu0 0.0
    %104 = vmatprep.subr.mxu0 0.0
    %105 = vmatpush1.msra.mxu0 0.0
    %106 = vmatprep.subr.mxu0 0.0
    %107 = vmatpush1.msra.mxu0 0.0
    %108 = vmatprep.subr.mxu0 0.0
    %109 = vmatpush1.msra.mxu0 0.0
    %110 = vmatprep.subr.mxu0 0.0
    %111 = vmatpush1.msra.mxu0 0.0
    %112 = vmatprep.subr.mxu0 0.0
    %113 = vmatpush1.msra.mxu0 0.0
    %114 = vmatprep.subr.mxu0 0.0
    %115 = vmatpush1.msra.mxu0 0.0
    %116 = vmatprep.subr.mxu0 0.0
    %117 = vmatpush1.msra.mxu0 0.0
    %118 = vmatprep.subr.mxu0 0.0
    %119 = vmatpush1.msra.mxu0 0.0
    %120 = vmatprep.subr.mxu0 0.0
    %121 = vmatpush1.msra.mxu0 0.0
    %122 = vmatprep.subr.mxu0 0.0
    %123 = vmatpush1.msra.mxu0 0.0
    %124 = vmatprep.subr.mxu0 0.0
    %125 = vmatpush1.msra.mxu0 0.0
    %126 = vmatprep.subr.mxu0 0.0
    %127 = vmatpush1.msra.mxu0 0.0
    %128 = vmatprep.mubr.f32.mxu0 0.0
    %129 = vmatmul.mubr.f32.gmra.mrb[0].mxu0 %v59
    %v130 = vpop.f32.mrb[0].mxu0
    %v131 = vadd.f32 %v12, %v130
    %v132 = vpop.f32.mrb[0].mxu0
    %133 = vmatprep.mubr.f32.mxu0 0.0
    %134 = vmatmul.mubr.f32.gmra.mrb[0].mxu0 %v62
    %v135 = vpop.f32.mrb[0].mxu0
    %v136 = vadd.f32 %v13, %v135
    %v137 = vpop.f32.mrb[0].mxu0
    %138 = vdwg.mxu0
    %v139 = vlaneseq
    %v140 = vshrl.u32 %v139, 7
    %v141 = vsub.s32 0, %v140
    %v142 = vrot.slane %v36, %v141
    %v144 = vsel %vm57, %v131, 0
    %v147 = vsel %vm57, %v136, 0
    %149 = vmatprep.subr.mxu0 0.0
    %150 = vmatpush1.msra.mxu0 %v16
    %151 = vmatprep.subr.mxu0 0.0
    %152 = vmatpush1.msra.mxu0 0.0
    %153 = vmatprep.subr.mxu0 0.0
    %154 = vmatpush1.msra.mxu0 0.0
    %155 = vmatprep.subr.mxu0 0.0
    %156 = vmatpush1.msra.mxu0 0.0
    %157 = vmatprep.subr.mxu0 0.0
    %158 = vmatpush1.msra.mxu0 0.0
    %159 = vmatprep.subr.mxu0 0.0
    %160 = vmatpush1.msra.mxu0 0.0
    %161 = vmatprep.subr.mxu0 0.0
    %162 = vmatpush1.msra.mxu0 0.0
    %163 = vmatprep.subr.mxu0 0.0
    %164 = vmatpush1.msra.mxu0 0.0
    %165 = vmatprep.subr.mxu0 0.0
    %166 = vmatpush1.msra.mxu0 0.0
    %167 = vmatprep.subr.mxu0 0.0
    %168 = vmatpush1.msra.mxu0 0.0
    %169 = vmatprep.subr.mxu0 0.0
    %170 = vmatpush1.msra.mxu0 0.0
    %171 = vmatprep.subr.mxu0 0.0
    %172 = vmatpush1.msra.mxu0 0.0
    %173 = vmatprep.subr.mxu0 0.0
    %174 = vmatpush1.msra.mxu0 0.0
    %175 = vmatprep.subr.mxu0 0.0
    %176 = vmatpush1.msra.mxu0 0.0
    %177 = vmatprep.subr.mxu0 0.0
    %178 = vmatpush1.msra.mxu0 0.0
    %179 = vmatprep.subr.mxu0 0.0
    %180 = vmatpush1.msra.mxu0 0.0
    %181 = vmatprep.subr.mxu0 0.0
    %182 = vmatpush1.msra.mxu0 0.0
    %183 = vmatprep.subr.mxu0 0.0
    %184 = vmatpush1.msra.mxu0 0.0
    %185 = vmatprep.subr.mxu0 0.0
    %186 = vmatpush1.msra.mxu0 0.0
    %187 = vmatprep.subr.mxu0 0.0
    %188 = vmatpush1.msra.mxu0 0.0
    %189 = vmatprep.subr.mxu0 0.0
    %190 = vmatpush1.msra.mxu0 0.0
    %191 = vmatprep.subr.mxu0 0.0
    %192 = vmatpush1.msra.mxu0 0.0
    %193 = vmatprep.subr.mxu0 0.0
    %194 = vmatpush1.msra.mxu0 0.0
    %195 = vmatprep.subr.mxu0 0.0
    %196 = vmatpush1.msra.mxu0 0.0
    %197 = vmatprep.subr.mxu0 0.0
    %198 = vmatpush1.msra.mxu0 0.0
    %199 = vmatprep.subr.mxu0 0.0
    %200 = vmatpush1.msra.mxu0 0.0
    %201 = vmatprep.subr.mxu0 0.0
    %202 = vmatpush1.msra.mxu0 0.0
    %203 = vmatprep.subr.mxu0 0.0
    %204 = vmatpush1.msra.mxu0 0.0
    %205 = vmatprep.subr.mxu0 0.0
    %206 = vmatpush1.msra.mxu0 0.0
    %207 = vmatprep.subr.mxu0 0.0
    %208 = vmatpush1.msra.mxu0 0.0
    %209 = vmatprep.subr.mxu0 0.0
    %210 = vmatpush1.msra.mxu0 0.0
    %211 = vmatprep.subr.mxu0 0.0
    %212 = vmatpush1.msra.mxu0 0.0
    %213 = vmatprep.mubr.f32.mxu0 0.0
    %214 = vmatmul.mubr.f32.gmra.mrb[0].mxu0 %v144
    %v215 = vpop.f32.mrb[0].mxu0
    %v216 = vadd.f32 %v142, %v215
    %v217 = vpop.f32.mrb[0].mxu0
    %218 = vmatprep.mubr.f32.mxu0 0.0
    %219 = vmatmul.mubr.f32.gmra.mrb[0].mxu0 %v147
    %v220 = vpop.f32.mrb[0].mxu0
    %v221 = vadd.f32 %v142, %v220
    %v222 = vpop.f32.mrb[0].mxu0
    %223 = vdwg.mxu0
    %226 = vrot.lane.b32.xlu0 %v216, 120
    %v227 = vpop.permute.xlu0 %226
    %228 = vrot.lane.b32.xlu0 %v221, 120
    %v229 = vpop.permute.xlu0 %228
    %vm230 = vcmask 15360
    %v231 = vsel %vm230, %v216, 0
    %v233 = vsel %vm230, %v221, 0
    %v235 = vsel %vm230, %v227, 0
    %v237 = vsel %vm230, %v229, 0
    %239 = vmatprep.subr.mxu0 0.0
    %240 = vmatpush1.xpose.msra.mxu0 %v235
    %241 = vmatprep.subr.mxu0 0.0
    %242 = vmatpush1.xpose.msra.mxu0 %v237
    %243 = vmatprep.subr.mxu0 0.0
    %244 = vmatpush1.xpose.msra.mxu0 0.0
    %245 = vmatprep.subr.mxu0 0.0
    %246 = vmatpush1.xpose.msra.mxu0 0.0
    %247 = vmatprep.subr.mxu0 0.0
    %248 = vmatpush1.xpose.msra.mxu0 0.0
    %249 = vmatprep.subr.mxu0 0.0
    %250 = vmatpush1.xpose.msra.mxu0 0.0
    %251 = vmatprep.subr.mxu0 0.0
    %252 = vmatpush1.xpose.msra.mxu0 0.0
    %253 = vmatprep.subr.mxu0 0.0
    %254 = vmatpush1.xpose.msra.mxu0 0.0
    %255 = vmatprep.subr.mxu0 0.0
    %256 = vmatpush1.xpose.msra.mxu0 0.0
    %257 = vmatprep.subr.mxu0 0.0
    %258 = vmatpush1.xpose.msra.mxu0 0.0
    %259 = vmatprep.subr.mxu0 0.0
    %260 = vmatpush1.xpose.msra.mxu0 0.0
    %261 = vmatprep.subr.mxu0 0.0
    %262 = vmatpush1.xpose.msra.mxu0 0.0
    %263 = vmatprep.subr.mxu0 0.0
    %264 = vmatpush1.xpose.msra.mxu0 0.0
    %265 = vmatprep.subr.mxu0 0.0
    %266 = vmatpush1.xpose.msra.mxu0 0.0
    %267 = vmatprep.subr.mxu0 0.0
    %268 = vmatpush1.xpose.msra.mxu0 0.0
    %269 = vmatprep.subr.mxu0 0.0
    %270 = vmatpush1.xpose.msra.mxu0 0.0
    %271 = vmatprep.subr.mxu0 0.0
    %272 = vmatpush1.xpose.msra.mxu0 0.0
    %273 = vmatprep.subr.mxu0 0.0
    %274 = vmatpush1.xpose.msra.mxu0 0.0
    %275 = vmatprep.subr.mxu0 0.0
    %276 = vmatpush1.xpose.msra.mxu0 0.0
    %277 = vmatprep.subr.mxu0 0.0
    %278 = vmatpush1.xpose.msra.mxu0 0.0
    %279 = vmatprep.subr.mxu0 0.0
    %280 = vmatpush1.xpose.msra.mxu0 0.0
    %281 = vmatprep.subr.mxu0 0.0
    %282 = vmatpush1.xpose.msra.mxu0 0.0
    %283 = vmatprep.subr.mxu0 0.0
    %284 = vmatpush1.xpose.msra.mxu0 0.0
    %285 = vmatprep.subr.mxu0 0.0
    %286 = vmatpush1.xpose.msra.mxu0 0.0
    %287 = vmatprep.subr.mxu0 0.0
    %288 = vmatpush1.xpose.msra.mxu0 0.0
    %289 = vmatprep.subr.mxu0 0.0
    %290 = vmatpush1.xpose.msra.mxu0 0.0
    %291 = vmatprep.subr.mxu0 0.0
    %292 = vmatpush1.xpose.msra.mxu0 0.0
    %293 = vmatprep.subr.mxu0 0.0
    %294 = vmatpush1.xpose.msra.mxu0 0.0
    %295 = vmatprep.subr.mxu0 0.0
    %296 = vmatpush1.xpose.msra.mxu0 0.0
    %297 = vmatprep.subr.mxu0 0.0
    %298 = vmatpush1.xpose.msra.mxu0 0.0
    %299 = vmatprep.subr.mxu0 0.0
    %300 = vmatpush1.xpose.msra.mxu0 0.0
    %301 = vmatprep.subr.mxu0 0.0
    %302 = vmatpush1.xpose.msra.mxu0 0.0
    %303 = vmatprep.mubr.f32.mxu0 0.0
    %304 = vmatmul.mubr.f32.gmra.mrb[0].mxu0 %v231
    %v305 = vpop.f32.mrb[0].mxu0
    %v306 = vadd.f32 0.0, %v305
    %v307 = vpop.f32.mrb[0].mxu0
    %308 = vmatprep.mubr.f32.mxu0 0.0
    %309 = vmatmul.mubr.f32.gmra.mrb[0].mxu0 %v233
    %v310 = vpop.f32.mrb[0].mxu0
    %v311 = vadd.f32 0.0, %v310
    %v312 = vpop.f32.mrb[0].mxu0
    %313 = vdwg.mxu0
    %v314 = vmul.f32 %v306, 0.70710677
    %v315 = vmul.f32 %v311, 0.70710677
    %v316 = vadd.f32 %v314, %v14
    %v317 = vadd.f32 %v315, %v15
    %vm318 = vcmask 130048
    %v319 = vsel %vm318, %v316, -inf
    %320 = vmax.xlane.f32.xlu0 %v319
    %v321 = vpop.xlane.xlu0 %320
    %v322 = vsel %vm318, %v317, -inf
    %323 = vmax.xlane.f32.xlu0 %v322
    %v324 = vpop.xlane.xlu0 %323
    %v325 = vsub.f32 %v316, %v321
    %v326 = vsub.f32 %v317, %v324
    %v327 = vmul.f32 %v325, 1.442695
    %v328 = vpow.pop %v327
    %v329 = vmul.f32 %v326, 1.442695
    %v330 = vpow.pop %v329
    %v331 = vsel %vm318, %v328, 0.0
    %332 = vadd.xlane.f32.xlu0 %v331
    %v333 = vpop.xlane.xlu0 %332
    %v334 = vsel %vm318, %v330, 0.0
    %335 = vadd.xlane.f32.xlu0 %v334
    %v336 = vpop.xlane.xlu0 %335
    %v337 = vrcp.pop %v333
    %v338 = vrcp.pop %v336
    %v339 = vmul.f32 %v328, %v337
    %v340 = vmul.f32 %v330, %v338
    %341 = vrot.lane.b32.xlu0 %v216, 112
    %v342 = vpop.permute.xlu0 %341
    %343 = vrot.lane.b32.xlu0 %v221, 112
    %v344 = vpop.permute.xlu0 %343
    %v348 = vsel %vm318, %v339, 0
    %v351 = vsel %vm318, %v340, 0
    %353 = vmatprep.subr.mxu0 0.0
    %354 = vmatpush1.msra.mxu0 %v342
    %355 = vmatprep.subr.mxu0 0.0
    %356 = vmatpush1.msra.mxu0 %v344
    %357 = vmatprep.subr.mxu0 0.0
    %358 = vmatpush1.msra.mxu0 0.0
    %359 = vmatprep.subr.mxu0 0.0
    %360 = vmatpush1.msra.mxu0 0.0
    %361 = vmatprep.subr.mxu0 0.0
    %362 = vmatpush1.msra.mxu0 0.0
    %363 = vmatprep.subr.mxu0 0.0
    %364 = vmatpush1.msra.mxu0 0.0
    %365 = vmatprep.subr.mxu0 0.0
    %366 = vmatpush1.msra.mxu0 0.0
    %367 = vmatprep.subr.mxu0 0.0
    %368 = vmatpush1.msra.mxu0 0.0
    %369 = vmatprep.subr.mxu0 0.0
    %370 = vmatpush1.msra.mxu0 0.0
    %371 = vmatprep.subr.mxu0 0.0
    %372 = vmatpush1.msra.mxu0 0.0
    %373 = vmatprep.subr.mxu0 0.0
    %374 = vmatpush1.msra.mxu0 0.0
    %375 = vmatprep.subr.mxu0 0.0
    %376 = vmatpush1.msra.mxu0 0.0
    %377 = vmatprep.subr.mxu0 0.0
    %378 = vmatpush1.msra.mxu0 0.0
    %379 = vmatprep.subr.mxu0 0.0
    %380 = vmatpush1.msra.mxu0 0.0
    %381 = vmatprep.subr.mxu0 0.0
    %382 = vmatpush1.msra.mxu0 0.0
    %383 = vmatprep.subr.mxu0 0.0
    %384 = vmatpush1.msra.mxu0 0.0
    %385 = vmatprep.subr.mxu0 0.0
    %386 = vmatpush1.msra.mxu0 0.0
    %387 = vmatprep.subr.mxu0 0.0
    %388 = vmatpush1.msra.mxu0 0.0
    %389 = vmatprep.subr.mxu0 0.0
    %390 = vmatpush1.msra.mxu0 0.0
    %391 = vmatprep.subr.mxu0 0.0
    %392 = vmatpush1.msra.mxu0 0.0
    %393 = vmatprep.subr.mxu0 0.0
    %394 = vmatpush1.msra.mxu0 0.0
    %395 = vmatprep.subr.mxu0 0.0
    %396 = vmatpush1.msra.mxu0 0.0
    %397 = vmatprep.subr.mxu0 0.0
    %398 = vmatpush1.msra.mxu0 0.0
    %399 = vmatprep.subr.mxu0 0.0
    %400 = vmatpush1.msra.mxu0 0.0
    %401 = vmatprep.subr.mxu0 0.0
    %402 = vmatpush1.msra.mxu0 0.0
    %403 = vmatprep.subr.mxu0 0.0
    %404 = vmatpush1.msra.mxu0 0.0
    %405 = vmatprep.subr.mxu0 0.0
    %406 = vmatpush1.msra.mxu0 0.0
    %407 = vmatprep.subr.mxu0 0.0
    %408 = vmatpush1.msra.mxu0 0.0
    %409 = vmatprep.subr.mxu0 0.0
    %410 = vmatpush1.msra.mxu0 0.0
    %411 = vmatprep.subr.mxu0 0.0
    %412 = vmatpush1.msra.mxu0 0.0
    %413 = vmatprep.subr.mxu0 0.0
    %414 = vmatpush1.msra.mxu0 0.0
    %415 = vmatprep.subr.mxu0 0.0
    %416 = vmatpush1.msra.mxu0 0.0
    %417 = vmatprep.mubr.f32.mxu0 0.0
    %418 = vmatmul.mubr.f32.gmra.mrb[0].mxu0 %v348
    %v419 = vpop.f32.mrb[0].mxu0
    %v420 = vadd.f32 0.0, %v419
    %v421 = vpop.f32.mrb[0].mxu0
    %422 = vmatprep.mubr.f32.mxu0 0.0
    %423 = vmatmul.mubr.f32.gmra.mrb[0].mxu0 %v351
    %v424 = vpop.f32.mrb[0].mxu0
    %v425 = vadd.f32 0.0, %v424
    %v426 = vpop.f32.mrb[0].mxu0
    %427 = vdwg.mxu0
    %428 = vrot.lane.b32.xlu0 %v216, 126
    %v429 = vpop.permute.xlu0 %428
    %430 = vrot.lane.b32.xlu0 %v221, 126
    %v431 = vpop.permute.xlu0 %430
    %432 = vrot.lane.b32.xlu0 %v216, 118
    %v433 = vpop.permute.xlu0 %432
    %434 = vrot.lane.b32.xlu0 %v221, 118
    %v435 = vpop.permute.xlu0 %434
    %v436 = vsel %vm230, %v429, 0
    %v438 = vsel %vm230, %v431, 0
    %v440 = vsel %vm230, %v433, 0
    %v442 = vsel %vm230, %v435, 0
    %444 = vmatprep.subr.mxu0 0.0
    %445 = vmatpush1.xpose.msra.mxu0 %v440
    %446 = vmatprep.subr.mxu0 0.0
    %447 = vmatpush1.xpose.msra.mxu0 %v442
    %448 = vmatprep.subr.mxu0 0.0
    %449 = vmatpush1.xpose.msra.mxu0 0.0
    %450 = vmatprep.subr.mxu0 0.0
    %451 = vmatpush1.xpose.msra.mxu0 0.0
    %452 = vmatprep.subr.mxu0 0.0
    %453 = vmatpush1.xpose.msra.mxu0 0.0
    %454 = vmatprep.subr.mxu0 0.0
    %455 = vmatpush1.xpose.msra.mxu0 0.0
    %456 = vmatprep.subr.mxu0 0.0
    %457 = vmatpush1.xpose.msra.mxu0 0.0
    %458 = vmatprep.subr.mxu0 0.0
    %459 = vmatpush1.xpose.msra.mxu0 0.0
    %460 = vmatprep.subr.mxu0 0.0
    %461 = vmatpush1.xpose.msra.mxu0 0.0
    %462 = vmatprep.subr.mxu0 0.0
    %463 = vmatpush1.xpose.msra.mxu0 0.0
    %464 = vmatprep.subr.mxu0 0.0
    %465 = vmatpush1.xpose.msra.mxu0 0.0
    %466 = vmatprep.subr.mxu0 0.0
    %467 = vmatpush1.xpose.msra.mxu0 0.0
    %468 = vmatprep.subr.mxu0 0.0
    %469 = vmatpush1.xpose.msra.mxu0 0.0
    %470 = vmatprep.subr.mxu0 0.0
    %471 = vmatpush1.xpose.msra.mxu0 0.0
    %472 = vmatprep.subr.mxu0 0.0
    %473 = vmatpush1.xpose.msra.mxu0 0.0
    %474 = vmatprep.subr.mxu0 0.0
    %475 = vmatpush1.xpose.msra.mxu0 0.0
    %476 = vmatprep.subr.mxu0 0.0
    %477 = vmatpush1.xpose.msra.mxu0 0.0
    %478 = vmatprep.subr.mxu0 0.0
    %479 = vmatpush1.xpose.msra.mxu0 0.0
    %480 = vmatprep.subr.mxu0 0.0
    %481 = vmatpush1.xpose.msra.mxu0 0.0
    %482 = vmatprep.subr.mxu0 0.0
    %483 = vmatpush1.xpose.msra.mxu0 0.0
    %484 = vmatprep.subr.mxu0 0.0
    %485 = vmatpush1.xpose.msra.mxu0 0.0
    %486 = vmatprep.subr.mxu0 0.0
    %487 = vmatpush1.xpose.msra.mxu0 0.0
    %488 = vmatprep.subr.mxu0 0.0
    %489 = vmatpush1.xpose.msra.mxu0 0.0
    %490 = vmatprep.subr.mxu0 0.0
    %491 = vmatpush1.xpose.msra.mxu0 0.0
    %492 = vmatprep.subr.mxu0 0.0
    %493 = vmatpush1.xpose.msra.mxu0 0.0
    %494 = vmatprep.subr.mxu0 0.0
    %495 = vmatpush1.xpose.msra.mxu0 0.0
    %496 = vmatprep.subr.mxu0 0.0
    %497 = vmatpush1.xpose.msra.mxu0 0.0
    %498 = vmatprep.subr.mxu0 0.0
    %499 = vmatpush1.xpose.msra.mxu0 0.0
    %500 = vmatprep.subr.mxu0 0.0
    %501 = vmatpush1.xpose.msra.mxu0 0.0
    %502 = vmatprep.subr.mxu0 0.0
    %503 = vmatpush1.xpose.msra.mxu0 0.0
    %504 = vmatprep.subr.mxu0 0.0
    %505 = vmatpush1.xpose.msra.mxu0 0.0
    %506 = vmatprep.subr.mxu0 0.0
    %507 = vmatpush1.xpose.msra.mxu0 0.0
    %508 = vmatprep.mubr.f32.mxu0 0.0
    %509 = vmatmul.mubr.f32.gmra.mrb[0].mxu0 %v436
    %v510 = vpop.f32.mrb[0].mxu0
    %v511 = vadd.f32 0.0, %v510
    %v512 = vpop.f32.mrb[0].mxu0
    %513 = vmatprep.mubr.f32.mxu0 0.0
    %514 = vmatmul.mubr.f32.gmra.mrb[0].mxu0 %v438
    %v515 = vpop.f32.mrb[0].mxu0
    %v516 = vadd.f32 0.0, %v515
    %v517 = vpop.f32.mrb[0].mxu0
    %518 = vdwg.mxu0
    %v519 = vmul.f32 %v511, 0.70710677
    %v520 = vmul.f32 %v516, 0.70710677
    %v521 = vadd.f32 %v519, %v14
    %v522 = vadd.f32 %v520, %v15
    %v523 = vsel %vm318, %v521, -inf
    %524 = vmax.xlane.f32.xlu0 %v523
    %v525 = vpop.xlane.xlu0 %524
    %v526 = vsel %vm318, %v522, -inf
    %527 = vmax.xlane.f32.xlu0 %v526
    %v528 = vpop.xlane.xlu0 %527
    %v529 = vsub.f32 %v521, %v525
    %v530 = vsub.f32 %v522, %v528
    %v531 = vmul.f32 %v529, 1.442695
    %v532 = vpow.pop %v531
    %v533 = vmul.f32 %v530, 1.442695
    %v534 = vpow.pop %v533
    %v535 = vsel %vm318, %v532, 0.0
    %536 = vadd.xlane.f32.xlu0 %v535
    %v537 = vpop.xlane.xlu0 %536
    %v538 = vsel %vm318, %v534, 0.0
    %539 = vadd.xlane.f32.xlu0 %v538
    %v540 = vpop.xlane.xlu0 %539
    %v541 = vrcp.pop %v537
    %v542 = vrcp.pop %v540
    %v543 = vmul.f32 %v532, %v541
    %v544 = vmul.f32 %v534, %v542
    %545 = vrot.lane.b32.xlu0 %v216, 110
    %v546 = vpop.permute.xlu0 %545
    %547 = vrot.lane.b32.xlu0 %v221, 110
    %v548 = vpop.permute.xlu0 %547
    %v552 = vsel %vm318, %v543, 0
    %v555 = vsel %vm318, %v544, 0
    %557 = vmatprep.subr.mxu0 0.0
    %558 = vmatpush1.msra.mxu0 %v546
    %559 = vmatprep.subr.mxu0 0.0
    %560 = vmatpush1.msra.mxu0 %v548
    %561 = vmatprep.subr.mxu0 0.0
    %562 = vmatpush1.msra.mxu0 0.0
    %563 = vmatprep.subr.mxu0 0.0
    %564 = vmatpush1.msra.mxu0 0.0
    %565 = vmatprep.subr.mxu0 0.0
    %566 = vmatpush1.msra.mxu0 0.0
    %567 = vmatprep.subr.mxu0 0.0
    %568 = vmatpush1.msra.mxu0 0.0
    %569 = vmatprep.subr.mxu0 0.0
    %570 = vmatpush1.msra.mxu0 0.0
    %571 = vmatprep.subr.mxu0 0.0
    %572 = vmatpush1.msra.mxu0 0.0
    %573 = vmatprep.subr.mxu0 0.0
    %574 = vmatpush1.msra.mxu0 0.0
    %575 = vmatprep.subr.mxu0 0.0
    %576 = vmatpush1.msra.mxu0 0.0
    %577 = vmatprep.subr.mxu0 0.0
    %578 = vmatpush1.msra.mxu0 0.0
    %579 = vmatprep.subr.mxu0 0.0
    %580 = vmatpush1.msra.mxu0 0.0
    %581 = vmatprep.subr.mxu0 0.0
    %582 = vmatpush1.msra.mxu0 0.0
    %583 = vmatprep.subr.mxu0 0.0
    %584 = vmatpush1.msra.mxu0 0.0
    %585 = vmatprep.subr.mxu0 0.0
    %586 = vmatpush1.msra.mxu0 0.0
    %587 = vmatprep.subr.mxu0 0.0
    %588 = vmatpush1.msra.mxu0 0.0
    %589 = vmatprep.subr.mxu0 0.0
    %590 = vmatpush1.msra.mxu0 0.0
    %591 = vmatprep.subr.mxu0 0.0
    %592 = vmatpush1.msra.mxu0 0.0
    %593 = vmatprep.subr.mxu0 0.0
    %594 = vmatpush1.msra.mxu0 0.0
    %595 = vmatprep.subr.mxu0 0.0
    %596 = vmatpush1.msra.mxu0 0.0
    %597 = vmatprep.subr.mxu0 0.0
    %598 = vmatpush1.msra.mxu0 0.0
    %599 = vmatprep.subr.mxu0 0.0
    %600 = vmatpush1.msra.mxu0 0.0
    %601 = vmatprep.subr.mxu0 0.0
    %602 = vmatpush1.msra.mxu0 0.0
    %603 = vmatprep.subr.mxu0 0.0
    %604 = vmatpush1.msra.mxu0 0.0
    %605 = vmatprep.subr.mxu0 0.0
    %606 = vmatpush1.msra.mxu0 0.0
    %607 = vmatprep.subr.mxu0 0.0
    %608 = vmatpush1.msra.mxu0 0.0
    %609 = vmatprep.subr.mxu0 0.0
    %610 = vmatpush1.msra.mxu0 0.0
    %611 = vmatprep.subr.mxu0 0.0
    %612 = vmatpush1.msra.mxu0 0.0
    %613 = vmatprep.subr.mxu0 0.0
    %614 = vmatpush1.msra.mxu0 0.0
    %615 = vmatprep.subr.mxu0 0.0
    %616 = vmatpush1.msra.mxu0 0.0
    %617 = vmatprep.subr.mxu0 0.0
    %618 = vmatpush1.msra.mxu0 0.0
    %619 = vmatprep.subr.mxu0 0.0
    %620 = vmatpush1.msra.mxu0 0.0
    %621 = vmatprep.mubr.f32.mxu0 0.0
    %622 = vmatmul.mubr.f32.gmra.mrb[0].mxu0 %v552
    %v623 = vpop.f32.mrb[0].mxu0
    %v624 = vadd.f32 0.0, %v623
    %v625 = vpop.f32.mrb[0].mxu0
    %626 = vmatprep.mubr.f32.mxu0 0.0
    %627 = vmatmul.mubr.f32.gmra.mrb[0].mxu0 %v555
    %v628 = vpop.f32.mrb[0].mxu0
    %v629 = vadd.f32 0.0, %v628
    %v630 = vpop.f32.mrb[0].mxu0
    %631 = vdwg.mxu0
    %632 = vrot.lane.b32.xlu0 %v216, 124
    %v633 = vpop.permute.xlu0 %632
    %634 = vrot.lane.b32.xlu0 %v221, 124
    %v635 = vpop.permute.xlu0 %634
    %636 = vrot.lane.b32.xlu0 %v216, 116
    %v637 = vpop.permute.xlu0 %636
    %638 = vrot.lane.b32.xlu0 %v221, 116
    %v639 = vpop.permute.xlu0 %638
    %v640 = vsel %vm230, %v633, 0
    %v642 = vsel %vm230, %v635, 0
    %v644 = vsel %vm230, %v637, 0
    %v646 = vsel %vm230, %v639, 0
    %648 = vmatprep.subr.mxu0 0.0
    %649 = vmatpush1.xpose.msra.mxu0 %v644
    %650 = vmatprep.subr.mxu0 0.0
    %651 = vmatpush1.xpose.msra.mxu0 %v646
    %652 = vmatprep.subr.mxu0 0.0
    %653 = vmatpush1.xpose.msra.mxu0 0.0
    %654 = vmatprep.subr.mxu0 0.0
    %655 = vmatpush1.xpose.msra.mxu0 0.0
    %656 = vmatprep.subr.mxu0 0.0
    %657 = vmatpush1.xpose.msra.mxu0 0.0
    %658 = vmatprep.subr.mxu0 0.0
    %659 = vmatpush1.xpose.msra.mxu0 0.0
    %660 = vmatprep.subr.mxu0 0.0
    %661 = vmatpush1.xpose.msra.mxu0 0.0
    %662 = vmatprep.subr.mxu0 0.0
    %663 = vmatpush1.xpose.msra.mxu0 0.0
    %664 = vmatprep.subr.mxu0 0.0
    %665 = vmatpush1.xpose.msra.mxu0 0.0
    %666 = vmatprep.subr.mxu0 0.0
    %667 = vmatpush1.xpose.msra.mxu0 0.0
    %668 = vmatprep.subr.mxu0 0.0
    %669 = vmatpush1.xpose.msra.mxu0 0.0
    %670 = vmatprep.subr.mxu0 0.0
    %671 = vmatpush1.xpose.msra.mxu0 0.0
    %672 = vmatprep.subr.mxu0 0.0
    %673 = vmatpush1.xpose.msra.mxu0 0.0
    %674 = vmatprep.subr.mxu0 0.0
    %675 = vmatpush1.xpose.msra.mxu0 0.0
    %676 = vmatprep.subr.mxu0 0.0
    %677 = vmatpush1.xpose.msra.mxu0 0.0
    %678 = vmatprep.subr.mxu0 0.0
    %679 = vmatpush1.xpose.msra.mxu0 0.0
    %680 = vmatprep.subr.mxu0 0.0
    %681 = vmatpush1.xpose.msra.mxu0 0.0
    %682 = vmatprep.subr.mxu0 0.0
    %683 = vmatpush1.xpose.msra.mxu0 0.0
    %684 = vmatprep.subr.mxu0 0.0
    %685 = vmatpush1.xpose.msra.mxu0 0.0
    %686 = vmatprep.subr.mxu0 0.0
    %687 = vmatpush1.xpose.msra.mxu0 0.0
    %688 = vmatprep.subr.mxu0 0.0
    %689 = vmatpush1.xpose.msra.mxu0 0.0
    %690 = vmatprep.subr.mxu0 0.0
    %691 = vmatpush1.xpose.msra.mxu0 0.0
    %692 = vmatprep.subr.mxu0 0.0
    %693 = vmatpush1.xpose.msra.mxu0 0.0
    %694 = vmatprep.subr.mxu0 0.0
    %695 = vmatpush1.xpose.msra.mxu0 0.0
    %696 = vmatprep.subr.mxu0 0.0
    %697 = vmatpush1.xpose.msra.mxu0 0.0
    %698 = vmatprep.subr.mxu0 0.0
    %699 = vmatpush1.xpose.msra.mxu0 0.0
    %700 = vmatprep.subr.mxu0 0.0
    %701 = vmatpush1.xpose.msra.mxu0 0.0
    %702 = vmatprep.subr.mxu0 0.0
    %703 = vmatpush1.xpose.msra.mxu0 0.0
    %704 = vmatprep.subr.mxu0 0.0
    %705 = vmatpush1.xpose.msra.mxu0 0.0
    %706 = vmatprep.subr.mxu0 0.0
    %707 = vmatpush1.xpose.msra.mxu0 0.0
    %708 = vmatprep.subr.mxu0 0.0
    %709 = vmatpush1.xpose.msra.mxu0 0.0
    %710 = vmatprep.subr.mxu0 0.0
    %711 = vmatpush1.xpose.msra.mxu0 0.0
    %712 = vmatprep.mubr.f32.mxu0 0.0
    %713 = vmatmul.mubr.f32.gmra.mrb[0].mxu0 %v640
    %v714 = vpop.f32.mrb[0].mxu0
    %v715 = vadd.f32 0.0, %v714
    %v716 = vpop.f32.mrb[0].mxu0
    %717 = vmatprep.mubr.f32.mxu0 0.0
    %718 = vmatmul.mubr.f32.gmra.mrb[0].mxu0 %v642
    %v719 = vpop.f32.mrb[0].mxu0
    %v720 = vadd.f32 0.0, %v719
    %v721 = vpop.f32.mrb[0].mxu0
    %722 = vdwg.mxu0
    %v723 = vmul.f32 %v715, 0.70710677
    %v724 = vmul.f32 %v720, 0.70710677
    %v725 = vadd.f32 %v723, %v14
    %v726 = vadd.f32 %v724, %v15
    %v727 = vsel %vm318, %v725, -inf
    %728 = vmax.xlane.f32.xlu0 %v727
    %v729 = vpop.xlane.xlu0 %728
    %v730 = vsel %vm318, %v726, -inf
    %731 = vmax.xlane.f32.xlu0 %v730
    %v732 = vpop.xlane.xlu0 %731
    %v733 = vsub.f32 %v725, %v729
    %v734 = vsub.f32 %v726, %v732
    %v735 = vmul.f32 %v733, 1.442695
    %v736 = vpow.pop %v735
    %v737 = vmul.f32 %v734, 1.442695
    %v738 = vpow.pop %v737
    %v739 = vsel %vm318, %v736, 0.0
    %740 = vadd.xlane.f32.xlu0 %v739
    %v741 = vpop.xlane.xlu0 %740
    %v742 = vsel %vm318, %v738, 0.0
    %743 = vadd.xlane.f32.xlu0 %v742
    %v744 = vpop.xlane.xlu0 %743
    %v745 = vrcp.pop %v741
    %v746 = vrcp.pop %v744
    %v747 = vmul.f32 %v736, %v745
    %v748 = vmul.f32 %v738, %v746
    %749 = vrot.lane.b32.xlu0 %v216, 108
    %v750 = vpop.permute.xlu0 %749
    %751 = vrot.lane.b32.xlu0 %v221, 108
    %v752 = vpop.permute.xlu0 %751
    %v756 = vsel %vm318, %v747, 0
    %v759 = vsel %vm318, %v748, 0
    %761 = vmatprep.subr.mxu0 0.0
    %762 = vmatpush1.msra.mxu0 %v750
    %763 = vmatprep.subr.mxu0 0.0
    %764 = vmatpush1.msra.mxu0 %v752
    %765 = vmatprep.subr.mxu0 0.0
    %766 = vmatpush1.msra.mxu0 0.0
    %767 = vmatprep.subr.mxu0 0.0
    %768 = vmatpush1.msra.mxu0 0.0
    %769 = vmatprep.subr.mxu0 0.0
    %770 = vmatpush1.msra.mxu0 0.0
    %771 = vmatprep.subr.mxu0 0.0
    %772 = vmatpush1.msra.mxu0 0.0
    %773 = vmatprep.subr.mxu0 0.0
    %774 = vmatpush1.msra.mxu0 0.0
    %775 = vmatprep.subr.mxu0 0.0
    %776 = vmatpush1.msra.mxu0 0.0
    %777 = vmatprep.subr.mxu0 0.0
    %778 = vmatpush1.msra.mxu0 0.0
    %779 = vmatprep.subr.mxu0 0.0
    %780 = vmatpush1.msra.mxu0 0.0
    %781 = vmatprep.subr.mxu0 0.0
    %782 = vmatpush1.msra.mxu0 0.0
    %783 = vmatprep.subr.mxu0 0.0
    %784 = vmatpush1.msra.mxu0 0.0
    %785 = vmatprep.subr.mxu0 0.0
    %786 = vmatpush1.msra.mxu0 0.0
    %787 = vmatprep.subr.mxu0 0.0
    %788 = vmatpush1.msra.mxu0 0.0
    %789 = vmatprep.subr.mxu0 0.0
    %790 = vmatpush1.msra.mxu0 0.0
    %791 = vmatprep.subr.mxu0 0.0
    %792 = vmatpush1.msra.mxu0 0.0
    %793 = vmatprep.subr.mxu0 0.0
    %794 = vmatpush1.msra.mxu0 0.0
    %795 = vmatprep.subr.mxu0 0.0
    %796 = vmatpush1.msra.mxu0 0.0
    %797 = vmatprep.subr.mxu0 0.0
    %798 = vmatpush1.msra.mxu0 0.0
    %799 = vmatprep.subr.mxu0 0.0
    %800 = vmatpush1.msra.mxu0 0.0
    %801 = vmatprep.subr.mxu0 0.0
    %802 = vmatpush1.msra.mxu0 0.0
    %803 = vmatprep.subr.mxu0 0.0
    %804 = vmatpush1.msra.mxu0 0.0
    %805 = vmatprep.subr.mxu0 0.0
    %806 = vmatpush1.msra.mxu0 0.0
    %807 = vmatprep.subr.mxu0 0.0
    %808 = vmatpush1.msra.mxu0 0.0
    %809 = vmatprep.subr.mxu0 0.0
    %810 = vmatpush1.msra.mxu0 0.0
    %811 = vmatprep.subr.mxu0 0.0
    %812 = vmatpush1.msra.mxu0 0.0
    %813 = vmatprep.subr.mxu0 0.0
    %814 = vmatpush1.msra.mxu0 0.0
    %815 = vmatprep.subr.mxu0 0.0
    %816 = vmatpush1.msra.mxu0 0.0
    %817 = vmatprep.subr.mxu0 0.0
    %818 = vmatpush1.msra.mxu0 0.0
    %819 = vmatprep.subr.mxu0 0.0
    %820 = vmatpush1.msra.mxu0 0.0
    %821 = vmatprep.subr.mxu0 0.0
    %822 = vmatpush1.msra.mxu0 0.0
    %823 = vmatprep.subr.mxu0 0.0
    %824 = vmatpush1.msra.mxu0 0.0
    %825 = vmatprep.mubr.f32.mxu0 0.0
    %826 = vmatmul.mubr.f32.gmra.mrb[0].mxu0 %v756
    %v827 = vpop.f32.mrb[0].mxu0
    %v828 = vadd.f32 0.0, %v827
    %v829 = vpop.f32.mrb[0].mxu0
    %830 = vmatprep.mubr.f32.mxu0 0.0
    %831 = vmatmul.mubr.f32.gmra.mrb[0].mxu0 %v759
    %v832 = vpop.f32.mrb[0].mxu0
    %v833 = vadd.f32 0.0, %v832
    %v834 = vpop.f32.mrb[0].mxu0
    %835 = vdwg.mxu0
    %836 = vrot.lane.b32.xlu0 %v216, 122
    %v837 = vpop.permute.xlu0 %836
    %838 = vrot.lane.b32.xlu0 %v221, 122
    %v839 = vpop.permute.xlu0 %838
    %840 = vrot.lane.b32.xlu0 %v216, 114
    %v841 = vpop.permute.xlu0 %840
    %842 = vrot.lane.b32.xlu0 %v221, 114
    %v843 = vpop.permute.xlu0 %842
    %v844 = vsel %vm230, %v837, 0
    %v846 = vsel %vm230, %v839, 0
    %v848 = vsel %vm230, %v841, 0
    %v850 = vsel %vm230, %v843, 0
    %852 = vmatprep.subr.mxu0 0.0
    %853 = vmatpush1.xpose.msra.mxu0 %v848
    %854 = vmatprep.subr.mxu0 0.0
    %855 = vmatpush1.xpose.msra.mxu0 %v850
    %856 = vmatprep.subr.mxu0 0.0
    %857 = vmatpush1.xpose.msra.mxu0 0.0
    %858 = vmatprep.subr.mxu0 0.0
    %859 = vmatpush1.xpose.msra.mxu0 0.0
    %860 = vmatprep.subr.mxu0 0.0
    %861 = vmatpush1.xpose.msra.mxu0 0.0
    %862 = vmatprep.subr.mxu0 0.0
    %863 = vmatpush1.xpose.msra.mxu0 0.0
    %864 = vmatprep.subr.mxu0 0.0
    %865 = vmatpush1.xpose.msra.mxu0 0.0
    %866 = vmatprep.subr.mxu0 0.0
    %867 = vmatpush1.xpose.msra.mxu0 0.0
    %868 = vmatprep.subr.mxu0 0.0
    %869 = vmatpush1.xpose.msra.mxu0 0.0
    %870 = vmatprep.subr.mxu0 0.0
    %871 = vmatpush1.xpose.msra.mxu0 0.0
    %872 = vmatprep.subr.mxu0 0.0
    %873 = vmatpush1.xpose.msra.mxu0 0.0
    %874 = vmatprep.subr.mxu0 0.0
    %875 = vmatpush1.xpose.msra.mxu0 0.0
    %876 = vmatprep.subr.mxu0 0.0
    %877 = vmatpush1.xpose.msra.mxu0 0.0
    %878 = vmatprep.subr.mxu0 0.0
    %879 = vmatpush1.xpose.msra.mxu0 0.0
    %880 = vmatprep.subr.mxu0 0.0
    %881 = vmatpush1.xpose.msra.mxu0 0.0
    %882 = vmatprep.subr.mxu0 0.0
    %883 = vmatpush1.xpose.msra.mxu0 0.0
    %884 = vmatprep.subr.mxu0 0.0
    %885 = vmatpush1.xpose.msra.mxu0 0.0
    %886 = vmatprep.subr.mxu0 0.0
    %887 = vmatpush1.xpose.msra.mxu0 0.0
    %888 = vmatprep.subr.mxu0 0.0
    %889 = vmatpush1.xpose.msra.mxu0 0.0
    %890 = vmatprep.subr.mxu0 0.0
    %891 = vmatpush1.xpose.msra.mxu0 0.0
    %892 = vmatprep.subr.mxu0 0.0
    %893 = vmatpush1.xpose.msra.mxu0 0.0
    %894 = vmatprep.subr.mxu0 0.0
    %895 = vmatpush1.xpose.msra.mxu0 0.0
    %896 = vmatprep.subr.mxu0 0.0
    %897 = vmatpush1.xpose.msra.mxu0 0.0
    %898 = vmatprep.subr.mxu0 0.0
    %899 = vmatpush1.xpose.msra.mxu0 0.0
    %900 = vmatprep.subr.mxu0 0.0
    %901 = vmatpush1.xpose.msra.mxu0 0.0
    %902 = vmatprep.subr.mxu0 0.0
    %903 = vmatpush1.xpose.msra.mxu0 0.0
    %904 = vmatprep.subr.mxu0 0.0
    %905 = vmatpush1.xpose.msra.mxu0 0.0
    %906 = vmatprep.subr.mxu0 0.0
    %907 = vmatpush1.xpose.msra.mxu0 0.0
    %908 = vmatprep.subr.mxu0 0.0
    %909 = vmatpush1.xpose.msra.mxu0 0.0
    %910 = vmatprep.subr.mxu0 0.0
    %911 = vmatpush1.xpose.msra.mxu0 0.0
    %912 = vmatprep.subr.mxu0 0.0
    %913 = vmatpush1.xpose.msra.mxu0 0.0
    %914 = vmatprep.subr.mxu0 0.0
    %915 = vmatpush1.xpose.msra.mxu0 0.0
    %916 = vmatprep.mubr.f32.mxu0 0.0
    %917 = vmatmul.mubr.f32.gmra.mrb[0].mxu0 %v844
    %v918 = vpop.f32.mrb[0].mxu0
    %v919 = vadd.f32 0.0, %v918
    %v920 = vpop.f32.mrb[0].mxu0
    %921 = vmatprep.mubr.f32.mxu0 0.0
    %922 = vmatmul.mubr.f32.gmra.mrb[0].mxu0 %v846
    %v923 = vpop.f32.mrb[0].mxu0
    %v924 = vadd.f32 0.0, %v923
    %v925 = vpop.f32.mrb[0].mxu0
    %926 = vdwg.mxu0
    %v927 = vmul.f32 %v919, 0.70710677
    %v928 = vmul.f32 %v924, 0.70710677
    %v929 = vadd.f32 %v927, %v14
    %v930 = vadd.f32 %v928, %v15
    %v931 = vsel %vm318, %v929, -inf
    %932 = vmax.xlane.f32.xlu0 %v931
    %v933 = vpop.xlane.xlu0 %932
    %v934 = vsel %vm318, %v930, -inf
    %935 = vmax.xlane.f32.xlu0 %v934
    %v936 = vpop.xlane.xlu0 %935
    %v937 = vsub.f32 %v929, %v933
    %v938 = vsub.f32 %v930, %v936
    %v939 = vmul.f32 %v937, 1.442695
    %v940 = vpow.pop %v939
    %v941 = vmul.f32 %v938, 1.442695
    %v942 = vpow.pop %v941
    %v943 = vsel %vm318, %v940, 0.0
    %944 = vadd.xlane.f32.xlu0 %v943
    %v945 = vpop.xlane.xlu0 %944
    %v946 = vsel %vm318, %v942, 0.0
    %947 = vadd.xlane.f32.xlu0 %v946
    %v948 = vpop.xlane.xlu0 %947
    %v949 = vrcp.pop %v945
    %v950 = vrcp.pop %v948
    %v951 = vmul.f32 %v940, %v949
    %v952 = vmul.f32 %v942, %v950
    %953 = vrot.lane.b32.xlu0 %v216, 106
    %v954 = vpop.permute.xlu0 %953
    %955 = vrot.lane.b32.xlu0 %v221, 106
    %v956 = vpop.permute.xlu0 %955
    %v960 = vsel %vm318, %v951, 0
    %v963 = vsel %vm318, %v952, 0
    %965 = vmatprep.subr.mxu0 0.0
    %966 = vmatpush1.msra.mxu0 %v954
    %967 = vmatprep.subr.mxu0 0.0
    %968 = vmatpush1.msra.mxu0 %v956
    %969 = vmatprep.subr.mxu0 0.0
    %970 = vmatpush1.msra.mxu0 0.0
    %971 = vmatprep.subr.mxu0 0.0
    %972 = vmatpush1.msra.mxu0 0.0
    %973 = vmatprep.subr.mxu0 0.0
    %974 = vmatpush1.msra.mxu0 0.0
    %975 = vmatprep.subr.mxu0 0.0
    %976 = vmatpush1.msra.mxu0 0.0
    %977 = vmatprep.subr.mxu0 0.0
    %978 = vmatpush1.msra.mxu0 0.0
    %979 = vmatprep.subr.mxu0 0.0
    %980 = vmatpush1.msra.mxu0 0.0
    %981 = vmatprep.subr.mxu0 0.0
    %982 = vmatpush1.msra.mxu0 0.0
    %983 = vmatprep.subr.mxu0 0.0
    %984 = vmatpush1.msra.mxu0 0.0
    %985 = vmatprep.subr.mxu0 0.0
    %986 = vmatpush1.msra.mxu0 0.0
    %987 = vmatprep.subr.mxu0 0.0
    %988 = vmatpush1.msra.mxu0 0.0
    %989 = vmatprep.subr.mxu0 0.0
    %990 = vmatpush1.msra.mxu0 0.0
    %991 = vmatprep.subr.mxu0 0.0
    %992 = vmatpush1.msra.mxu0 0.0
    %993 = vmatprep.subr.mxu0 0.0
    %994 = vmatpush1.msra.mxu0 0.0
    %995 = vmatprep.subr.mxu0 0.0
    %996 = vmatpush1.msra.mxu0 0.0
    %997 = vmatprep.subr.mxu0 0.0
    %998 = vmatpush1.msra.mxu0 0.0
    %999 = vmatprep.subr.mxu0 0.0
    %1000 = vmatpush1.msra.mxu0 0.0
    %1001 = vmatprep.subr.mxu0 0.0
    %1002 = vmatpush1.msra.mxu0 0.0
    %1003 = vmatprep.subr.mxu0 0.0
    %1004 = vmatpush1.msra.mxu0 0.0
    %1005 = vmatprep.subr.mxu0 0.0
    %1006 = vmatpush1.msra.mxu0 0.0
    %1007 = vmatprep.subr.mxu0 0.0
    %1008 = vmatpush1.msra.mxu0 0.0
    %1009 = vmatprep.subr.mxu0 0.0
    %1010 = vmatpush1.msra.mxu0 0.0
    %1011 = vmatprep.subr.mxu0 0.0
    %1012 = vmatpush1.msra.mxu0 0.0
    %1013 = vmatprep.subr.mxu0 0.0
    %1014 = vmatpush1.msra.mxu0 0.0
    %1015 = vmatprep.subr.mxu0 0.0
    %1016 = vmatpush1.msra.mxu0 0.0
    %1017 = vmatprep.subr.mxu0 0.0
    %1018 = vmatpush1.msra.mxu0 0.0
    %1019 = vmatprep.subr.mxu0 0.0
    %1020 = vmatpush1.msra.mxu0 0.0
    %1021 = vmatprep.subr.mxu0 0.0
    %1022 = vmatpush1.msra.mxu0 0.0
    %1023 = vmatprep.subr.mxu0 0.0
    %1024 = vmatpush1.msra.mxu0 0.0
    %1025 = vmatprep.subr.mxu0 0.0
    %1026 = vmatpush1.msra.mxu0 0.0
    %1027 = vmatprep.subr.mxu0 0.0
    %1028 = vmatpush1.msra.mxu0 0.0
    %1029 = vmatprep.mubr.f32.mxu0 0.0
    %1030 = vmatmul.mubr.f32.gmra.mrb[0].mxu0 %v960
    %v1031 = vpop.f32.mrb[0].mxu0
    %v1032 = vadd.f32 0.0, %v1031
    %v1033 = vpop.f32.mrb[0].mxu0
    %1034 = vmatprep.mubr.f32.mxu0 0.0
    %1035 = vmatmul.mubr.f32.gmra.mrb[0].mxu0 %v963
    %v1036 = vpop.f32.mrb[0].mxu0
    %v1037 = vadd.f32 0.0, %v1036
    %v1038 = vpop.f32.mrb[0].mxu0
    %1039 = vdwg.mxu0
    %1042 = vrot.lane.b32.xlu0 %v624, 2
    %v1043 = vpop.permute.xlu0 %1042
    %1044 = vrot.lane.b32.xlu0 %v629, 2
    %v1045 = vpop.permute.xlu0 %1044
    %1050 = vrot.lane.b32.xlu0 %v828, 4
    %v1051 = vpop.permute.xlu0 %1050
    %1052 = vrot.lane.b32.xlu0 %v833, 4
    %v1053 = vpop.permute.xlu0 %1052
    %1058 = vrot.lane.b32.xlu0 %v1032, 6
    %v1059 = vpop.permute.xlu0 %1058
    %1060 = vrot.lane.b32.xlu0 %v1037, 6
    %v1061 = vpop.permute.xlu0 %1060
    %v1064 = vsel %vm230, %v420, %v1043
    %v1065 = vsel %vm230, %v425, %v1045
    %vm1066 = vcmask 31744
    %v1067 = vsel %vm1066, %v1064, %v1051
    %v1068 = vsel %vm1066, %v1065, %v1053
    %vm1069 = vcmask 48128
    %v1070 = vsel %vm1069, %v1067, %v1059
    %v1071 = vsel %vm1069, %v1068, %v1061
    %v1072 = vlaneseq
    %v1073 = vshrl.u32 %v1072, 7
    %v1074 = vsub.s32 0, %v1073
    %v1075 = vrot.slane %v37, %v1074
    %v1077 = vsel %vm57, %v1070, 0
    %v1080 = vsel %vm57, %v1071, 0
    %1082 = vmatprep.subr.mxu0 0.0
    %1083 = vmatpush1.msra.mxu0 %v17
    %1084 = vmatprep.subr.mxu0 0.0
    %1085 = vmatpush1.msra.mxu0 0.0
    %1086 = vmatprep.subr.mxu0 0.0
    %1087 = vmatpush1.msra.mxu0 0.0
    %1088 = vmatprep.subr.mxu0 0.0
    %1089 = vmatpush1.msra.mxu0 0.0
    %1090 = vmatprep.subr.mxu0 0.0
    %1091 = vmatpush1.msra.mxu0 0.0
    %1092 = vmatprep.subr.mxu0 0.0
    %1093 = vmatpush1.msra.mxu0 0.0
    %1094 = vmatprep.subr.mxu0 0.0
    %1095 = vmatpush1.msra.mxu0 0.0
    %1096 = vmatprep.subr.mxu0 0.0
    %1097 = vmatpush1.msra.mxu0 0.0
    %1098 = vmatprep.subr.mxu0 0.0
    %1099 = vmatpush1.msra.mxu0 0.0
    %1100 = vmatprep.subr.mxu0 0.0
    %1101 = vmatpush1.msra.mxu0 0.0
    %1102 = vmatprep.subr.mxu0 0.0
    %1103 = vmatpush1.msra.mxu0 0.0
    %1104 = vmatprep.subr.mxu0 0.0
    %1105 = vmatpush1.msra.mxu0 0.0
    %1106 = vmatprep.subr.mxu0 0.0
    %1107 = vmatpush1.msra.mxu0 0.0
    %1108 = vmatprep.subr.mxu0 0.0
    %1109 = vmatpush1.msra.mxu0 0.0
    %1110 = vmatprep.subr.mxu0 0.0
    %1111 = vmatpush1.msra.mxu0 0.0
    %1112 = vmatprep.subr.mxu0 0.0
    %1113 = vmatpush1.msra.mxu0 0.0
    %1114 = vmatprep.subr.mxu0 0.0
    %1115 = vmatpush1.msra.mxu0 0.0
    %1116 = vmatprep.subr.mxu0 0.0
    %1117 = vmatpush1.msra.mxu0 0.0
    %1118 = vmatprep.subr.mxu0 0.0
    %1119 = vmatpush1.msra.mxu0 0.0
    %1120 = vmatprep.subr.mxu0 0.0
    %1121 = vmatpush1.msra.mxu0 0.0
    %1122 = vmatprep.subr.mxu0 0.0
    %1123 = vmatpush1.msra.mxu0 0.0
    %1124 = vmatprep.subr.mxu0 0.0
    %1125 = vmatpush1.msra.mxu0 0.0
    %1126 = vmatprep.subr.mxu0 0.0
    %1127 = vmatpush1.msra.mxu0 0.0
    %1128 = vmatprep.subr.mxu0 0.0
    %1129 = vmatpush1.msra.mxu0 0.0
    %1130 = vmatprep.subr.mxu0 0.0
    %1131 = vmatpush1.msra.mxu0 0.0
    %1132 = vmatprep.subr.mxu0 0.0
    %1133 = vmatpush1.msra.mxu0 0.0
    %1134 = vmatprep.subr.mxu0 0.0
    %1135 = vmatpush1.msra.mxu0 0.0
    %1136 = vmatprep.subr.mxu0 0.0
    %1137 = vmatpush1.msra.mxu0 0.0
    %1138 = vmatprep.subr.mxu0 0.0
    %1139 = vmatpush1.msra.mxu0 0.0
    %1140 = vmatprep.subr.mxu0 0.0
    %1141 = vmatpush1.msra.mxu0 0.0
    %1142 = vmatprep.subr.mxu0 0.0
    %1143 = vmatpush1.msra.mxu0 0.0
    %1144 = vmatprep.subr.mxu0 0.0
    %1145 = vmatpush1.msra.mxu0 0.0
    %1146 = vmatprep.mubr.f32.mxu0 0.0
    %1147 = vmatmul.mubr.f32.gmra.mrb[0].mxu0 %v1077
    %v1148 = vpop.f32.mrb[0].mxu0
    %v1149 = vadd.f32 %v1075, %v1148
    %v1150 = vpop.f32.mrb[0].mxu0
    %1151 = vmatprep.mubr.f32.mxu0 0.0
    %1152 = vmatmul.mubr.f32.gmra.mrb[0].mxu0 %v1080
    %v1153 = vpop.f32.mrb[0].mxu0
    %v1154 = vadd.f32 %v1075, %v1153
    %v1155 = vpop.f32.mrb[0].mxu0
    %1156 = vdwg.mxu0
    %v1157 = vadd.f32 %v131, %v1149
    %v1158 = vadd.f32 %v136, %v1154
    %v1159 = vsel %vm57, %v1157, 0.0
    %1160 = vadd.xlane.f32.xlu0 %v1159
    %v1161 = vpop.xlane.xlu0 %1160
    %v1162 = vsel %vm57, %v1158, 0.0
    %1163 = vadd.xlane.f32.xlu0 %v1162
    %v1164 = vpop.xlane.xlu0 %1163
    %v1165 = vrcp.pop 8.0
    %v1166 = vmul.f32 %v1161, %v1165
    %v1167 = vmul.f32 %v1164, %v1165
    %v1168 = vsub.f32 %v1157, %v1166
    %v1169 = vsub.f32 %v1158, %v1167
    %v1170 = vmul.f32 %v1168, %v1168
    %v1171 = vmul.f32 %v1169, %v1169
    %v1172 = vsel %vm57, %v1170, 0.0
    %1173 = vadd.xlane.f32.xlu0 %v1172
    %v1174 = vpop.xlane.xlu0 %1173
    %v1175 = vsel %vm57, %v1171, 0.0
    %1176 = vadd.xlane.f32.xlu0 %v1175
    %v1177 = vpop.xlane.xlu0 %1176
    %v1178 = vmul.f32 %v1174, %v1165
    %v1179 = vmul.f32 %v1177, %v1165
    %v1180 = vadd.f32 %v1178, 1e-05
    %v1181 = vadd.f32 %v1179, 1e-05
    %v1182 = vrsqrt.pop %v1180
    %v1183 = vrsqrt.pop %v1181
    %v1184 = vmul.f32 %v1168, %v1182
    %v1185 = vmul.f32 %v1169, %v1183
    %v1186 = vlaneseq
    %v1187 = vshrl.u32 %v1186, 7
    %v1188 = vsub.s32 0, %v1187
    %v1189 = vrot.slane %v40, %v1188
    %v1190 = vmul.f32 %v1184, %v1189
    %v1191 = vmul.f32 %v1185, %v1189
    %v1192 = vlaneseq
    %v1193 = vshrl.u32 %v1192, 7
    %v1194 = vsub.s32 0, %v1193
    %v1195 = vrot.slane %v41, %v1194
    %v1196 = vadd.f32 %v1190, %v1195
    %v1197 = vadd.f32 %v1191, %v1195
    %v1198 = vlaneseq
    %v1199 = vshrl.u32 %v1198, 7
    %v1200 = vsub.s32 0, %v1199
    %v1201 = vrot.slane %v38, %v1200
    %v1203 = vsel %vm57, %v1196, 0
    %v1206 = vsel %vm57, %v1197, 0
    %1208 = vmatprep.subr.mxu0 0.0
    %1209 = vmatpush1.msra.mxu0 %v18
    %1210 = vmatprep.subr.mxu0 0.0
    %1211 = vmatpush1.msra.mxu0 0.0
    %1212 = vmatprep.subr.mxu0 0.0
    %1213 = vmatpush1.msra.mxu0 0.0
    %1214 = vmatprep.subr.mxu0 0.0
    %1215 = vmatpush1.msra.mxu0 0.0
    %1216 = vmatprep.subr.mxu0 0.0
    %1217 = vmatpush1.msra.mxu0 0.0
    %1218 = vmatprep.subr.mxu0 0.0
    %1219 = vmatpush1.msra.mxu0 0.0
    %1220 = vmatprep.subr.mxu0 0.0
    %1221 = vmatpush1.msra.mxu0 0.0
    %1222 = vmatprep.subr.mxu0 0.0
    %1223 = vmatpush1.msra.mxu0 0.0
    %1224 = vmatprep.subr.mxu0 0.0
    %1225 = vmatpush1.msra.mxu0 0.0
    %1226 = vmatprep.subr.mxu0 0.0
    %1227 = vmatpush1.msra.mxu0 0.0
    %1228 = vmatprep.subr.mxu0 0.0
    %1229 = vmatpush1.msra.mxu0 0.0
    %1230 = vmatprep.subr.mxu0 0.0
    %1231 = vmatpush1.msra.mxu0 0.0
    %1232 = vmatprep.subr.mxu0 0.0
    %1233 = vmatpush1.msra.mxu0 0.0
    %1234 = vmatprep.subr.mxu0 0.0
    %1235 = vmatpush1.msra.mxu0 0.0
    %1236 = vmatprep.subr.mxu0 0.0
    %1237 = vmatpush1.msra.mxu0 0.0
    %1238 = vmatprep.subr.mxu0 0.0
    %1239 = vmatpush1.msra.mxu0 0.0
    %1240 = vmatprep.subr.mxu0 0.0
    %1241 = vmatpush1.msra.mxu0 0.0
    %1242 = vmatprep.subr.mxu0 0.0
    %1243 = vmatpush1.msra.mxu0 0.0
    %1244 = vmatprep.subr.mxu0 0.0
    %1245 = vmatpush1.msra.mxu0 0.0
    %1246 = vmatprep.subr.mxu0 0.0
    %1247 = vmatpush1.msra.mxu0 0.0
    %1248 = vmatprep.subr.mxu0 0.0
    %1249 = vmatpush1.msra.mxu0 0.0
    %1250 = vmatprep.subr.mxu0 0.0
    %1251 = vmatpush1.msra.mxu0 0.0
    %1252 = vmatprep.subr.mxu0 0.0
    %1253 = vmatpush1.msra.mxu0 0.0
    %1254 = vmatprep.subr.mxu0 0.0
    %1255 = vmatpush1.msra.mxu0 0.0
    %1256 = vmatprep.subr.mxu0 0.0
    %1257 = vmatpush1.msra.mxu0 0.0
    %1258 = vmatprep.subr.mxu0 0.0
    %1259 = vmatpush1.msra.mxu0 0.0
    %1260 = vmatprep.subr.mxu0 0.0
    %1261 = vmatpush1.msra.mxu0 0.0
    %1262 = vmatprep.subr.mxu0 0.0
    %1263 = vmatpush1.msra.mxu0 0.0
    %1264 = vmatprep.subr.mxu0 0.0
    %1265 = vmatpush1.msra.mxu0 0.0
    %1266 = vmatprep.subr.mxu0 0.0
    %1267 = vmatpush1.msra.mxu0 0.0
    %1268 = vmatprep.subr.mxu0 0.0
    %1269 = vmatpush1.msra.mxu0 0.0
    %1270 = vmatprep.subr.mxu0 0.0
    %1271 = vmatpush1.msra.mxu0 0.0
    %1272 = vmatprep.mubr.f32.mxu0 0.0
    %1273 = vmatmul.mubr.f32.gmra.mrb[0].mxu0 %v1203
    %v1274 = vpop.f32.mrb[0].mxu0
    %v1275 = vadd.f32 %v1201, %v1274
    %v1276 = vpop.f32.mrb[0].mxu0
    %1277 = vmatprep.mubr.f32.mxu0 0.0
    %1278 = vmatmul.mubr.f32.gmra.mrb[0].mxu0 %v1206
    %v1279 = vpop.f32.mrb[0].mxu0
    %v1280 = vadd.f32 %v1201, %v1279
    %v1281 = vpop.f32.mrb[0].mxu0
    %1282 = vdwg.mxu0
    %v1283 = vmax.f32 %v1275, 0.0
    %v1284 = vmax.f32 %v1280, 0.0
    %v1285 = vlaneseq
    %v1286 = vshrl.u32 %v1285, 7
    %v1287 = vsub.s32 0, %v1286
    %v1288 = vrot.slane %v39, %v1287
    %vm1289 = vcmask 261120
    %v1291 = vsel %vm1289, %v1283, 0
    %v1294 = vsel %vm1289, %v1284, 0
    %1296 = vmatprep.subr.mxu0 0.0
    %1297 = vmatpush1.msra.mxu0 %v19
    %1298 = vmatprep.subr.mxu0 0.0
    %1299 = vmatpush1.msra.mxu0 %v20
    %1300 = vmatprep.subr.mxu0 0.0
    %1301 = vmatpush1.msra.mxu0 %v21
    %1302 = vmatprep.subr.mxu0 0.0
    %1303 = vmatpush1.msra.mxu0 %v22
    %1304 = vmatprep.subr.mxu0 0.0
    %1305 = vmatpush1.msra.mxu0 0.0
    %1306 = vmatprep.subr.mxu0 0.0
    %1307 = vmatpush1.msra.mxu0 0.0
    %1308 = vmatprep.subr.mxu0 0.0
    %1309 = vmatpush1.msra.mxu0 0.0
    %1310 = vmatprep.subr.mxu0 0.0
    %1311 = vmatpush1.msra.mxu0 0.0
    %1312 = vmatprep.subr.mxu0 0.0
    %1313 = vmatpush1.msra.mxu0 0.0
    %1314 = vmatprep.subr.mxu0 0.0
    %1315 = vmatpush1.msra.mxu0 0.0
    %1316 = vmatprep.subr.mxu0 0.0
    %1317 = vmatpush1.msra.mxu0 0.0
    %1318 = vmatprep.subr.mxu0 0.0
    %1319 = vmatpush1.msra.mxu0 0.0
    %1320 = vmatprep.subr.mxu0 0.0
    %1321 = vmatpush1.msra.mxu0 0.0
    %1322 = vmatprep.subr.mxu0 0.0
    %1323 = vmatpush1.msra.mxu0 0.0
    %1324 = vmatprep.subr.mxu0 0.0
    %1325 = vmatpush1.msra.mxu0 0.0
    %1326 = vmatprep.subr.mxu0 0.0
    %1327 = vmatpush1.msra.mxu0 0.0
    %1328 = vmatprep.subr.mxu0 0.0
    %1329 = vmatpush1.msra.mxu0 0.0
    %1330 = vmatprep.subr.mxu0 0.0
    %1331 = vmatpush1.msra.mxu0 0.0
    %1332 = vmatprep.subr.mxu0 0.0
    %1333 = vmatpush1.msra.mxu0 0.0
    %1334 = vmatprep.subr.mxu0 0.0
    %1335 = vmatpush1.msra.mxu0 0.0
    %1336 = vmatprep.subr.mxu0 0.0
    %1337 = vmatpush1.msra.mxu0 0.0
    %1338 = vmatprep.subr.mxu0 0.0
    %1339 = vmatpush1.msra.mxu0 0.0
    %1340 = vmatprep.subr.mxu0 0.0
    %1341 = vmatpush1.msra.mxu0 0.0
    %1342 = vmatprep.subr.mxu0 0.0
    %1343 = vmatpush1.msra.mxu0 0.0
    %1344 = vmatprep.subr.mxu0 0.0
    %1345 = vmatpush1.msra.mxu0 0.0
    %1346 = vmatprep.subr.mxu0 0.0
    %1347 = vmatpush1.msra.mxu0 0.0
    %1348 = vmatprep.subr.mxu0 0.0
    %1349 = vmatpush1.msra.mxu0 0.0
    %1350 = vmatprep.subr.mxu0 0.0
    %1351 = vmatpush1.msra.mxu0 0.0
    %1352 = vmatprep.subr.mxu0 0.0
    %1353 = vmatpush1.msra.mxu0 0.0
    %1354 = vmatprep.subr.mxu0 0.0
    %1355 = vmatpush1.msra.mxu0 0.0
    %1356 = vmatprep.subr.mxu0 0.0
    %1357 = vmatpush1.msra.mxu0 0.0
    %1358 = vmatprep.subr.mxu0 0.0
    %1359 = vmatpush1.msra.mxu0 0.0
    %1360 = vmatprep.mubr.f32.mxu0 0.0
    %1361 = vmatmul.mubr.f32.gmra.mrb[0].mxu0 %v1291
    %v1362 = vpop.f32.mrb[0].mxu0
    %v1363 = vadd.f32 %v1288, %v1362
    %v1364 = vpop.f32.mrb[0].mxu0
    %1365 = vmatprep.mubr.f32.mxu0 0.0
    %1366 = vmatmul.mubr.f32.gmra.mrb[0].mxu0 %v1294
    %v1367 = vpop.f32.mrb[0].mxu0
    %v1368 = vadd.f32 %v1288, %v1367
    %v1369 = vpop.f32.mrb[0].mxu0
    %1370 = vdwg.mxu0
    %v1371 = vadd.f32 %v1196, %v1363
    %v1372 = vadd.f32 %v1197, %v1368
    %v1373 = vsel %vm57, %v1371, 0.0
    %1374 = vadd.xlane.f32.xlu0 %v1373
    %v1375 = vpop.xlane.xlu0 %1374
    %v1376 = vsel %vm57, %v1372, 0.0
    %1377 = vadd.xlane.f32.xlu0 %v1376
    %v1378 = vpop.xlane.xlu0 %1377
    %v1379 = vmul.f32 %v1375, %v1165
    %v1380 = vmul.f32 %v1378, %v1165
    %v1381 = vsub.f32 %v1371, %v1379
    %v1382 = vsub.f32 %v1372, %v1380
    %v1383 = vmul.f32 %v1381, %v1381
    %v1384 = vmul.f32 %v1382, %v1382
    %v1385 = vsel %vm57, %v1383, 0.0
    %1386 = vadd.xlane.f32.xlu0 %v1385
    %v1387 = vpop.xlane.xlu0 %1386
    %v1388 = vsel %vm57, %v1384, 0.0
    %1389 = vadd.xlane.f32.xlu0 %v1388
    %v1390 = vpop.xlane.xlu0 %1389
    %v1391 = vmul.f32 %v1387, %v1165
    %v1392 = vmul.f32 %v1390, %v1165
    %v1393 = vadd.f32 %v1391, 1e-05
    %v1394 = vadd.f32 %v1392, 1e-05
    %v1395 = vrsqrt.pop %v1393
    %v1396 = vrsqrt.pop %v1394
    %v1397 = vmul.f32 %v1381, %v1395
    %v1398 = vmul.f32 %v1382, %v1396
    %v1399 = vlaneseq
    %v1400 = vshrl.u32 %v1399, 7
    %v1401 = vsub.s32 0, %v1400
    %v1402 = vrot.slane %v42, %v1401
    %v1403 = vmul.f32 %v1397, %v1402
    %v1404 = vmul.f32 %v1398, %v1402
    %v1405 = vlaneseq
    %v1406 = vshrl.u32 %v1405, 7
    %v1407 = vsub.s32 0, %v1406
    %v1408 = vrot.slane %v43, %v1407
    %v1409 = vadd.f32 %v1403, %v1408
    %v1410 = vadd.f32 %v1404, %v1408
    %v1411 = vlaneseq
    %v1412 = vshrl.u32 %v1411, 7
    %v1413 = vsub.s32 0, %v1412
    %v1414 = vrot.slane %v44, %v1413
    %v1416 = vsel %vm57, %v1409, 0
    %v1419 = vsel %vm57, %v1410, 0
    %1421 = vmatprep.subr.mxu0 0.0
    %1422 = vmatpush1.msra.mxu0 %v23
    %1423 = vmatprep.subr.mxu0 0.0
    %1424 = vmatpush1.msra.mxu0 0.0
    %1425 = vmatprep.subr.mxu0 0.0
    %1426 = vmatpush1.msra.mxu0 0.0
    %1427 = vmatprep.subr.mxu0 0.0
    %1428 = vmatpush1.msra.mxu0 0.0
    %1429 = vmatprep.subr.mxu0 0.0
    %1430 = vmatpush1.msra.mxu0 0.0
    %1431 = vmatprep.subr.mxu0 0.0
    %1432 = vmatpush1.msra.mxu0 0.0
    %1433 = vmatprep.subr.mxu0 0.0
    %1434 = vmatpush1.msra.mxu0 0.0
    %1435 = vmatprep.subr.mxu0 0.0
    %1436 = vmatpush1.msra.mxu0 0.0
    %1437 = vmatprep.subr.mxu0 0.0
    %1438 = vmatpush1.msra.mxu0 0.0
    %1439 = vmatprep.subr.mxu0 0.0
    %1440 = vmatpush1.msra.mxu0 0.0
    %1441 = vmatprep.subr.mxu0 0.0
    %1442 = vmatpush1.msra.mxu0 0.0
    %1443 = vmatprep.subr.mxu0 0.0
    %1444 = vmatpush1.msra.mxu0 0.0
    %1445 = vmatprep.subr.mxu0 0.0
    %1446 = vmatpush1.msra.mxu0 0.0
    %1447 = vmatprep.subr.mxu0 0.0
    %1448 = vmatpush1.msra.mxu0 0.0
    %1449 = vmatprep.subr.mxu0 0.0
    %1450 = vmatpush1.msra.mxu0 0.0
    %1451 = vmatprep.subr.mxu0 0.0
    %1452 = vmatpush1.msra.mxu0 0.0
    %1453 = vmatprep.subr.mxu0 0.0
    %1454 = vmatpush1.msra.mxu0 0.0
    %1455 = vmatprep.subr.mxu0 0.0
    %1456 = vmatpush1.msra.mxu0 0.0
    %1457 = vmatprep.subr.mxu0 0.0
    %1458 = vmatpush1.msra.mxu0 0.0
    %1459 = vmatprep.subr.mxu0 0.0
    %1460 = vmatpush1.msra.mxu0 0.0
    %1461 = vmatprep.subr.mxu0 0.0
    %1462 = vmatpush1.msra.mxu0 0.0
    %1463 = vmatprep.subr.mxu0 0.0
    %1464 = vmatpush1.msra.mxu0 0.0
    %1465 = vmatprep.subr.mxu0 0.0
    %1466 = vmatpush1.msra.mxu0 0.0
    %1467 = vmatprep.subr.mxu0 0.0
    %1468 = vmatpush1.msra.mxu0 0.0
    %1469 = vmatprep.subr.mxu0 0.0
    %1470 = vmatpush1.msra.mxu0 0.0
    %1471 = vmatprep.subr.mxu0 0.0
    %1472 = vmatpush1.msra.mxu0 0.0
    %1473 = vmatprep.subr.mxu0 0.0
    %1474 = vmatpush1.msra.mxu0 0.0
    %1475 = vmatprep.subr.mxu0 0.0
    %1476 = vmatpush1.msra.mxu0 0.0
    %1477 = vmatprep.subr.mxu0 0.0
    %1478 = vmatpush1.msra.mxu0 0.0
    %1479 = vmatprep.subr.mxu0 0.0
    %1480 = vmatpush1.msra.mxu0 0.0
    %1481 = vmatprep.subr.mxu0 0.0
    %1482 = vmatpush1.msra.mxu0 0.0
    %1483 = vmatprep.subr.mxu0 0.0
    %1484 = vmatpush1.msra.mxu0 0.0
    %1485 = vmatprep.mubr.f32.mxu0 0.0
    %1486 = vmatmul.mubr.f32.gmra.mrb[0].mxu0 %v1416
    %v1487 = vpop.f32.mrb[0].mxu0
    %v1488 = vadd.f32 %v1414, %v1487
    %v1489 = vpop.f32.mrb[0].mxu0
    %1490 = vmatprep.mubr.f32.mxu0 0.0
    %1491 = vmatmul.mubr.f32.gmra.mrb[0].mxu0 %v1419
    %v1492 = vpop.f32.mrb[0].mxu0
    %v1493 = vadd.f32 %v1414, %v1492
    %v1494 = vpop.f32.mrb[0].mxu0
    %1495 = vdwg.mxu0
    %1498 = vrot.lane.b32.xlu0 %v1488, 120
    %v1499 = vpop.permute.xlu0 %1498
    %1500 = vrot.lane.b32.xlu0 %v1493, 120
    %v1501 = vpop.permute.xlu0 %1500
    %v1502 = vsel %vm230, %v1488, 0
    %v1504 = vsel %vm230, %v1493, 0
    %v1506 = vsel %vm230, %v1499, 0
    %v1508 = vsel %vm230, %v1501, 0
    %1510 = vmatprep.subr.mxu0 0.0
    %1511 = vmatpush1.xpose.msra.mxu0 %v1506
    %1512 = vmatprep.subr.mxu0 0.0
    %1513 = vmatpush1.xpose.msra.mxu0 %v1508
    %1514 = vmatprep.subr.mxu0 0.0
    %1515 = vmatpush1.xpose.msra.mxu0 0.0
    %1516 = vmatprep.subr.mxu0 0.0
    %1517 = vmatpush1.xpose.msra.mxu0 0.0
    %1518 = vmatprep.subr.mxu0 0.0
    %1519 = vmatpush1.xpose.msra.mxu0 0.0
    %1520 = vmatprep.subr.mxu0 0.0
    %1521 = vmatpush1.xpose.msra.mxu0 0.0
    %1522 = vmatprep.subr.mxu0 0.0
    %1523 = vmatpush1.xpose.msra.mxu0 0.0
    %1524 = vmatprep.subr.mxu0 0.0
    %1525 = vmatpush1.xpose.msra.mxu0 0.0
    %1526 = vmatprep.subr.mxu0 0.0
    %1527 = vmatpush1.xpose.msra.mxu0 0.0
    %1528 = vmatprep.subr.mxu0 0.0
    %1529 = vmatpush1.xpose.msra.mxu0 0.0
    %1530 = vmatprep.subr.mxu0 0.0
    %1531 = vmatpush1.xpose.msra.mxu0 0.0
    %1532 = vmatprep.subr.mxu0 0.0
    %1533 = vmatpush1.xpose.msra.mxu0 0.0
    %1534 = vmatprep.subr.mxu0 0.0
    %1535 = vmatpush1.xpose.msra.mxu0 0.0
    %1536 = vmatprep.subr.mxu0 0.0
    %1537 = vmatpush1.xpose.msra.mxu0 0.0
    %1538 = vmatprep.subr.mxu0 0.0
    %1539 = vmatpush1.xpose.msra.mxu0 0.0
    %1540 = vmatprep.subr.mxu0 0.0
    %1541 = vmatpush1.xpose.msra.mxu0 0.0
    %1542 = vmatprep.subr.mxu0 0.0
    %1543 = vmatpush1.xpose.msra.mxu0 0.0
    %1544 = vmatprep.subr.mxu0 0.0
    %1545 = vmatpush1.xpose.msra.mxu0 0.0
    %1546 = vmatprep.subr.mxu0 0.0
    %1547 = vmatpush1.xpose.msra.mxu0 0.0
    %1548 = vmatprep.subr.mxu0 0.0
    %1549 = vmatpush1.xpose.msra.mxu0 0.0
    %1550 = vmatprep.subr.mxu0 0.0
    %1551 = vmatpush1.xpose.msra.mxu0 0.0
    %1552 = vmatprep.subr.mxu0 0.0
    %1553 = vmatpush1.xpose.msra.mxu0 0.0
    %1554 = vmatprep.subr.mxu0 0.0
    %1555 = vmatpush1.xpose.msra.mxu0 0.0
    %1556 = vmatprep.subr.mxu0 0.0
    %1557 = vmatpush1.xpose.msra.mxu0 0.0
    %1558 = vmatprep.subr.mxu0 0.0
    %1559 = vmatpush1.xpose.msra.mxu0 0.0
    %1560 = vmatprep.subr.mxu0 0.0
    %1561 = vmatpush1.xpose.msra.mxu0 0.0
    %1562 = vmatprep.subr.mxu0 0.0
    %1563 = vmatpush1.xpose.msra.mxu0 0.0
    %1564 = vmatprep.subr.mxu0 0.0
    %1565 = vmatpush1.xpose.msra.mxu0 0.0
    %1566 = vmatprep.subr.mxu0 0.0
    %1567 = vmatpush1.xpose.msra.mxu0 0.0
    %1568 = vmatprep.subr.mxu0 0.0
    %1569 = vmatpush1.xpose.msra.mxu0 0.0
    %1570 = vmatprep.subr.mxu0 0.0
    %1571 = vmatpush1.xpose.msra.mxu0 0.0
    %1572 = vmatprep.subr.mxu0 0.0
    %1573 = vmatpush1.xpose.msra.mxu0 0.0
    %1574 = vmatprep.mubr.f32.mxu0 0.0
    %1575 = vmatmul.mubr.f32.gmra.mrb[0].mxu0 %v1502
    %v1576 = vpop.f32.mrb[0].mxu0
    %v1577 = vadd.f32 0.0, %v1576
    %v1578 = vpop.f32.mrb[0].mxu0
    %1579 = vmatprep.mubr.f32.mxu0 0.0
    %1580 = vmatmul.mubr.f32.gmra.mrb[0].mxu0 %v1504
    %v1581 = vpop.f32.mrb[0].mxu0
    %v1582 = vadd.f32 0.0, %v1581
    %v1583 = vpop.f32.mrb[0].mxu0
    %1584 = vdwg.mxu0
    %v1585 = vmul.f32 %v1577, 0.70710677
    %v1586 = vmul.f32 %v1582, 0.70710677
    %v1587 = vadd.f32 %v1585, %v14
    %v1588 = vadd.f32 %v1586, %v15
    %v1589 = vsel %vm318, %v1587, -inf
    %1590 = vmax.xlane.f32.xlu0 %v1589
    %v1591 = vpop.xlane.xlu0 %1590
    %v1592 = vsel %vm318, %v1588, -inf
    %1593 = vmax.xlane.f32.xlu0 %v1592
    %v1594 = vpop.xlane.xlu0 %1593
    %v1595 = vsub.f32 %v1587, %v1591
    %v1596 = vsub.f32 %v1588, %v1594
    %v1597 = vmul.f32 %v1595, 1.442695
    %v1598 = vpow.pop %v1597
    %v1599 = vmul.f32 %v1596, 1.442695
    %v1600 = vpow.pop %v1599
    %v1601 = vsel %vm318, %v1598, 0.0
    %1602 = vadd.xlane.f32.xlu0 %v1601
    %v1603 = vpop.xlane.xlu0 %1602
    %v1604 = vsel %vm318, %v1600, 0.0
    %1605 = vadd.xlane.f32.xlu0 %v1604
    %v1606 = vpop.xlane.xlu0 %1605
    %v1607 = vrcp.pop %v1603
    %v1608 = vrcp.pop %v1606
    %v1609 = vmul.f32 %v1598, %v1607
    %v1610 = vmul.f32 %v1600, %v1608
    %1611 = vrot.lane.b32.xlu0 %v1488, 112
    %v1612 = vpop.permute.xlu0 %1611
    %1613 = vrot.lane.b32.xlu0 %v1493, 112
    %v1614 = vpop.permute.xlu0 %1613
    %v1618 = vsel %vm318, %v1609, 0
    %v1621 = vsel %vm318, %v1610, 0
    %1623 = vmatprep.subr.mxu0 0.0
    %1624 = vmatpush1.msra.mxu0 %v1612
    %1625 = vmatprep.subr.mxu0 0.0
    %1626 = vmatpush1.msra.mxu0 %v1614
    %1627 = vmatprep.subr.mxu0 0.0
    %1628 = vmatpush1.msra.mxu0 0.0
    %1629 = vmatprep.subr.mxu0 0.0
    %1630 = vmatpush1.msra.mxu0 0.0
    %1631 = vmatprep.subr.mxu0 0.0
    %1632 = vmatpush1.msra.mxu0 0.0
    %1633 = vmatprep.subr.mxu0 0.0
    %1634 = vmatpush1.msra.mxu0 0.0
    %1635 = vmatprep.subr.mxu0 0.0
    %1636 = vmatpush1.msra.mxu0 0.0
    %1637 = vmatprep.subr.mxu0 0.0
    %1638 = vmatpush1.msra.mxu0 0.0
    %1639 = vmatprep.subr.mxu0 0.0
    %1640 = vmatpush1.msra.mxu0 0.0
    %1641 = vmatprep.subr.mxu0 0.0
    %1642 = vmatpush1.msra.mxu0 0.0
    %1643 = vmatprep.subr.mxu0 0.0
    %1644 = vmatpush1.msra.mxu0 0.0
    %1645 = vmatprep.subr.mxu0 0.0
    %1646 = vmatpush1.msra.mxu0 0.0
    %1647 = vmatprep.subr.mxu0 0.0
    %1648 = vmatpush1.msra.mxu0 0.0
    %1649 = vmatprep.subr.mxu0 0.0
    %1650 = vmatpush1.msra.mxu0 0.0
    %1651 = vmatprep.subr.mxu0 0.0
    %1652 = vmatpush1.msra.mxu0 0.0
    %1653 = vmatprep.subr.mxu0 0.0
    %1654 = vmatpush1.msra.mxu0 0.0
    %1655 = vmatprep.subr.mxu0 0.0
    %1656 = vmatpush1.msra.mxu0 0.0
    %1657 = vmatprep.subr.mxu0 0.0
    %1658 = vmatpush1.msra.mxu0 0.0
    %1659 = vmatprep.subr.mxu0 0.0
    %1660 = vmatpush1.msra.mxu0 0.0
    %1661 = vmatprep.subr.mxu0 0.0
    %1662 = vmatpush1.msra.mxu0 0.0
    %1663 = vmatprep.subr.mxu0 0.0
    %1664 = vmatpush1.msra.mxu0 0.0
    %1665 = vmatprep.subr.mxu0 0.0
    %1666 = vmatpush1.msra.mxu0 0.0
    %1667 = vmatprep.subr.mxu0 0.0
    %1668 = vmatpush1.msra.mxu0 0.0
    %1669 = vmatprep.subr.mxu0 0.0
    %1670 = vmatpush1.msra.mxu0 0.0
    %1671 = vmatprep.subr.mxu0 0.0
    %1672 = vmatpush1.msra.mxu0 0.0
    %1673 = vmatprep.subr.mxu0 0.0
    %1674 = vmatpush1.msra.mxu0 0.0
    %1675 = vmatprep.subr.mxu0 0.0
    %1676 = vmatpush1.msra.mxu0 0.0
    %1677 = vmatprep.subr.mxu0 0.0
    %1678 = vmatpush1.msra.mxu0 0.0
    %1679 = vmatprep.subr.mxu0 0.0
    %1680 = vmatpush1.msra.mxu0 0.0
    %1681 = vmatprep.subr.mxu0 0.0
    %1682 = vmatpush1.msra.mxu0 0.0
    %1683 = vmatprep.subr.mxu0 0.0
    %1684 = vmatpush1.msra.mxu0 0.0
    %1685 = vmatprep.subr.mxu0 0.0
    %1686 = vmatpush1.msra.mxu0 0.0
    %1687 = vmatprep.mubr.f32.mxu0 0.0
    %1688 = vmatmul.mubr.f32.gmra.mrb[0].mxu0 %v1618
    %v1689 = vpop.f32.mrb[0].mxu0
    %v1690 = vadd.f32 0.0, %v1689
    %v1691 = vpop.f32.mrb[0].mxu0
    %1692 = vmatprep.mubr.f32.mxu0 0.0
    %1693 = vmatmul.mubr.f32.gmra.mrb[0].mxu0 %v1621
    %v1694 = vpop.f32.mrb[0].mxu0
    %v1695 = vadd.f32 0.0, %v1694
    %v1696 = vpop.f32.mrb[0].mxu0
    %1697 = vdwg.mxu0
    %1698 = vrot.lane.b32.xlu0 %v1488, 126
    %v1699 = vpop.permute.xlu0 %1698
    %1700 = vrot.lane.b32.xlu0 %v1493, 126
    %v1701 = vpop.permute.xlu0 %1700
    %1702 = vrot.lane.b32.xlu0 %v1488, 118
    %v1703 = vpop.permute.xlu0 %1702
    %1704 = vrot.lane.b32.xlu0 %v1493, 118
    %v1705 = vpop.permute.xlu0 %1704
    %v1706 = vsel %vm230, %v1699, 0
    %v1708 = vsel %vm230, %v1701, 0
    %v1710 = vsel %vm230, %v1703, 0
    %v1712 = vsel %vm230, %v1705, 0
    %1714 = vmatprep.subr.mxu0 0.0
    %1715 = vmatpush1.xpose.msra.mxu0 %v1710
    %1716 = vmatprep.subr.mxu0 0.0
    %1717 = vmatpush1.xpose.msra.mxu0 %v1712
    %1718 = vmatprep.subr.mxu0 0.0
    %1719 = vmatpush1.xpose.msra.mxu0 0.0
    %1720 = vmatprep.subr.mxu0 0.0
    %1721 = vmatpush1.xpose.msra.mxu0 0.0
    %1722 = vmatprep.subr.mxu0 0.0
    %1723 = vmatpush1.xpose.msra.mxu0 0.0
    %1724 = vmatprep.subr.mxu0 0.0
    %1725 = vmatpush1.xpose.msra.mxu0 0.0
    %1726 = vmatprep.subr.mxu0 0.0
    %1727 = vmatpush1.xpose.msra.mxu0 0.0
    %1728 = vmatprep.subr.mxu0 0.0
    %1729 = vmatpush1.xpose.msra.mxu0 0.0
    %1730 = vmatprep.subr.mxu0 0.0
    %1731 = vmatpush1.xpose.msra.mxu0 0.0
    %1732 = vmatprep.subr.mxu0 0.0
    %1733 = vmatpush1.xpose.msra.mxu0 0.0
    %1734 = vmatprep.subr.mxu0 0.0
    %1735 = vmatpush1.xpose.msra.mxu0 0.0
    %1736 = vmatprep.subr.mxu0 0.0
    %1737 = vmatpush1.xpose.msra.mxu0 0.0
    %1738 = vmatprep.subr.mxu0 0.0
    %1739 = vmatpush1.xpose.msra.mxu0 0.0
    %1740 = vmatprep.subr.mxu0 0.0
    %1741 = vmatpush1.xpose.msra.mxu0 0.0
    %1742 = vmatprep.subr.mxu0 0.0
    %1743 = vmatpush1.xpose.msra.mxu0 0.0
    %1744 = vmatprep.subr.mxu0 0.0
    %1745 = vmatpush1.xpose.msra.mxu0 0.0
    %1746 = vmatprep.subr.mxu0 0.0
    %1747 = vmatpush1.xpose.msra.mxu0 0.0
    %1748 = vmatprep.subr.mxu0 0.0
    %1749 = vmatpush1.xpose.msra.mxu0 0.0
    %1750 = vmatprep.subr.mxu0 0.0
    %1751 = vmatpush1.xpose.msra.mxu0 0.0
    %1752 = vmatprep.subr.mxu0 0.0
    %1753 = vmatpush1.xpose.msra.mxu0 0.0
    %1754 = vmatprep.subr.mxu0 0.0
    %1755 = vmatpush1.xpose.msra.mxu0 0.0
    %1756 = vmatprep.subr.mxu0 0.0
    %1757 = vmatpush1.xpose.msra.mxu0 0.0
    %1758 = vmatprep.subr.mxu0 0.0
    %1759 = vmatpush1.xpose.msra.mxu0 0.0
    %1760 = vmatprep.subr.mxu0 0.0
    %1761 = vmatpush1.xpose.msra.mxu0 0.0
    %1762 = vmatprep.subr.mxu0 0.0
    %1763 = vmatpush1.xpose.msra.mxu0 0.0
    %1764 = vmatprep.subr.mxu0 0.0
    %1765 = vmatpush1.xpose.msra.mxu0 0.0
    %1766 = vmatprep.subr.mxu0 0.0
    %1767 = vmatpush1.xpose.msra.mxu0 0.0
    %1768 = vmatprep.subr.mxu0 0.0
    %1769 = vmatpush1.xpose.msra.mxu0 0.0
    %1770 = vmatprep.subr.mxu0 0.0
    %1771 = vmatpush1.xpose.msra.mxu0 0.0
    %1772 = vmatprep.subr.mxu0 0.0
    %1773 = vmatpush1.xpose.msra.mxu0 0.0
    %1774 = vmatprep.subr.mxu0 0.0
    %1775 = vmatpush1.xpose.msra.mxu0 0.0
    %1776 = vmatprep.subr.mxu0 0.0
    %1777 = vmatpush1.xpose.msra.mxu0 0.0
    %1778 = vmatprep.mubr.f32.mxu0 0.0
    %1779 = vmatmul.mubr.f32.gmra.mrb[0].mxu0 %v1706
    %v1780 = vpop.f32.mrb[0].mxu0
    %v1781 = vadd.f32 0.0, %v1780
    %v1782 = vpop.f32.mrb[0].mxu0
    %1783 = vmatprep.mubr.f32.mxu0 0.0
    %1784 = vmatmul.mubr.f32.gmra.mrb[0].mxu0 %v1708
    %v1785 = vpop.f32.mrb[0].mxu0
    %v1786 = vadd.f32 0.0, %v1785
    %v1787 = vpop.f32.mrb[0].mxu0
    %1788 = vdwg.mxu0
    %v1789 = vmul.f32 %v1781, 0.70710677
    %v1790 = vmul.f32 %v1786, 0.70710677
    %v1791 = vadd.f32 %v1789, %v14
    %v1792 = vadd.f32 %v1790, %v15
    %v1793 = vsel %vm318, %v1791, -inf
    %1794 = vmax.xlane.f32.xlu0 %v1793
    %v1795 = vpop.xlane.xlu0 %1794
    %v1796 = vsel %vm318, %v1792, -inf
    %1797 = vmax.xlane.f32.xlu0 %v1796
    %v1798 = vpop.xlane.xlu0 %1797
    %v1799 = vsub.f32 %v1791, %v1795
    %v1800 = vsub.f32 %v1792, %v1798
    %v1801 = vmul.f32 %v1799, 1.442695
    %v1802 = vpow.pop %v1801
    %v1803 = vmul.f32 %v1800, 1.442695
    %v1804 = vpow.pop %v1803
    %v1805 = vsel %vm318, %v1802, 0.0
    %1806 = vadd.xlane.f32.xlu0 %v1805
    %v1807 = vpop.xlane.xlu0 %1806
    %v1808 = vsel %vm318, %v1804, 0.0
    %1809 = vadd.xlane.f32.xlu0 %v1808
    %v1810 = vpop.xlane.xlu0 %1809
    %v1811 = vrcp.pop %v1807
    %v1812 = vrcp.pop %v1810
    %v1813 = vmul.f32 %v1802, %v1811
    %v1814 = vmul.f32 %v1804, %v1812
    %1815 = vrot.lane.b32.xlu0 %v1488, 110
    %v1816 = vpop.permute.xlu0 %1815
    %1817 = vrot.lane.b32.xlu0 %v1493, 110
    %v1818 = vpop.permute.xlu0 %1817
    %v1822 = vsel %vm318, %v1813, 0
    %v1825 = vsel %vm318, %v1814, 0
    %1827 = vmatprep.subr.mxu0 0.0
    %1828 = vmatpush1.msra.mxu0 %v1816
    %1829 = vmatprep.subr.mxu0 0.0
    %1830 = vmatpush1.msra.mxu0 %v1818
    %1831 = vmatprep.subr.mxu0 0.0
    %1832 = vmatpush1.msra.mxu0 0.0
    %1833 = vmatprep.subr.mxu0 0.0
    %1834 = vmatpush1.msra.mxu0 0.0
    %1835 = vmatprep.subr.mxu0 0.0
    %1836 = vmatpush1.msra.mxu0 0.0
    %1837 = vmatprep.subr.mxu0 0.0
    %1838 = vmatpush1.msra.mxu0 0.0
    %1839 = vmatprep.subr.mxu0 0.0
    %1840 = vmatpush1.msra.mxu0 0.0
    %1841 = vmatprep.subr.mxu0 0.0
    %1842 = vmatpush1.msra.mxu0 0.0
    %1843 = vmatprep.subr.mxu0 0.0
    %1844 = vmatpush1.msra.mxu0 0.0
    %1845 = vmatprep.subr.mxu0 0.0
    %1846 = vmatpush1.msra.mxu0 0.0
    %1847 = vmatprep.subr.mxu0 0.0
    %1848 = vmatpush1.msra.mxu0 0.0
    %1849 = vmatprep.subr.mxu0 0.0
    %1850 = vmatpush1.msra.mxu0 0.0
    %1851 = vmatprep.subr.mxu0 0.0
    %1852 = vmatpush1.msra.mxu0 0.0
    %1853 = vmatprep.subr.mxu0 0.0
    %1854 = vmatpush1.msra.mxu0 0.0
    %1855 = vmatprep.subr.mxu0 0.0
    %1856 = vmatpush1.msra.mxu0 0.0
    %1857 = vmatprep.subr.mxu0 0.0
    %1858 = vmatpush1.msra.mxu0 0.0
    %1859 = vmatprep.subr.mxu0 0.0
    %1860 = vmatpush1.msra.mxu0 0.0
    %1861 = vmatprep.subr.mxu0 0.0
    %1862 = vmatpush1.msra.mxu0 0.0
    %1863 = vmatprep.subr.mxu0 0.0
    %1864 = vmatpush1.msra.mxu0 0.0
    %1865 = vmatprep.subr.mxu0 0.0
    %1866 = vmatpush1.msra.mxu0 0.0
    %1867 = vmatprep.subr.mxu0 0.0
    %1868 = vmatpush1.msra.mxu0 0.0
    %1869 = vmatprep.subr.mxu0 0.0
    %1870 = vmatpush1.msra.mxu0 0.0
    %1871 = vmatprep.subr.mxu0 0.0
    %1872 = vmatpush1.msra.mxu0 0.0
    %1873 = vmatprep.subr.mxu0 0.0
    %1874 = vmatpush1.msra.mxu0 0.0
    %1875 = vmatprep.subr.mxu0 0.0
    %1876 = vmatpush1.msra.mxu0 0.0
    %1877 = vmatprep.subr.mxu0 0.0
    %1878 = vmatpush1.msra.mxu0 0.0
    %1879 = vmatprep.subr.mxu0 0.0
    %1880 = vmatpush1.msra.mxu0 0.0
    %1881 = vmatprep.subr.mxu0 0.0
    %1882 = vmatpush1.msra.mxu0 0.0
    %1883 = vmatprep.subr.mxu0 0.0
    %1884 = vmatpush1.msra.mxu0 0.0
    %1885 = vmatprep.subr.mxu0 0.0
    %1886 = vmatpush1.msra.mxu0 0.0
    %1887 = vmatprep.subr.mxu0 0.0
    %1888 = vmatpush1.msra.mxu0 0.0
    %1889 = vmatprep.subr.mxu0 0.0
    %1890 = vmatpush1.msra.mxu0 0.0
    %1891 = vmatprep.mubr.f32.mxu0 0.0
    %1892 = vmatmul.mubr.f32.gmra.mrb[0].mxu0 %v1822
    %v1893 = vpop.f32.mrb[0].mxu0
    %v1894 = vadd.f32 0.0, %v1893
    %v1895 = vpop.f32.mrb[0].mxu0
    %1896 = vmatprep.mubr.f32.mxu0 0.0
    %1897 = vmatmul.mubr.f32.gmra.mrb[0].mxu0 %v1825
    %v1898 = vpop.f32.mrb[0].mxu0
    %v1899 = vadd.f32 0.0, %v1898
    %v1900 = vpop.f32.mrb[0].mxu0
    %1901 = vdwg.mxu0
    %1902 = vrot.lane.b32.xlu0 %v1488, 124
    %v1903 = vpop.permute.xlu0 %1902
    %1904 = vrot.lane.b32.xlu0 %v1493, 124
    %v1905 = vpop.permute.xlu0 %1904
    %1906 = vrot.lane.b32.xlu0 %v1488, 116
    %v1907 = vpop.permute.xlu0 %1906
    %1908 = vrot.lane.b32.xlu0 %v1493, 116
    %v1909 = vpop.permute.xlu0 %1908
    %v1910 = vsel %vm230, %v1903, 0
    %v1912 = vsel %vm230, %v1905, 0
    %v1914 = vsel %vm230, %v1907, 0
    %v1916 = vsel %vm230, %v1909, 0
    %1918 = vmatprep.subr.mxu0 0.0
    %1919 = vmatpush1.xpose.msra.mxu0 %v1914
    %1920 = vmatprep.subr.mxu0 0.0
    %1921 = vmatpush1.xpose.msra.mxu0 %v1916
    %1922 = vmatprep.subr.mxu0 0.0
    %1923 = vmatpush1.xpose.msra.mxu0 0.0
    %1924 = vmatprep.subr.mxu0 0.0
    %1925 = vmatpush1.xpose.msra.mxu0 0.0
    %1926 = vmatprep.subr.mxu0 0.0
    %1927 = vmatpush1.xpose.msra.mxu0 0.0
    %1928 = vmatprep.subr.mxu0 0.0
    %1929 = vmatpush1.xpose.msra.mxu0 0.0
    %1930 = vmatprep.subr.mxu0 0.0
    %1931 = vmatpush1.xpose.msra.mxu0 0.0
    %1932 = vmatprep.subr.mxu0 0.0
    %1933 = vmatpush1.xpose.msra.mxu0 0.0
    %1934 = vmatprep.subr.mxu0 0.0
    %1935 = vmatpush1.xpose.msra.mxu0 0.0
    %1936 = vmatprep.subr.mxu0 0.0
    %1937 = vmatpush1.xpose.msra.mxu0 0.0
    %1938 = vmatprep.subr.mxu0 0.0
    %1939 = vmatpush1.xpose.msra.mxu0 0.0
    %1940 = vmatprep.subr.mxu0 0.0
    %1941 = vmatpush1.xpose.msra.mxu0 0.0
    %1942 = vmatprep.subr.mxu0 0.0
    %1943 = vmatpush1.xpose.msra.mxu0 0.0
    %1944 = vmatprep.subr.mxu0 0.0
    %1945 = vmatpush1.xpose.msra.mxu0 0.0
    %1946 = vmatprep.subr.mxu0 0.0
    %1947 = vmatpush1.xpose.msra.mxu0 0.0
    %1948 = vmatprep.subr.mxu0 0.0
    %1949 = vmatpush1.xpose.msra.mxu0 0.0
    %1950 = vmatprep.subr.mxu0 0.0
    %1951 = vmatpush1.xpose.msra.mxu0 0.0
    %1952 = vmatprep.subr.mxu0 0.0
    %1953 = vmatpush1.xpose.msra.mxu0 0.0
    %1954 = vmatprep.subr.mxu0 0.0
    %1955 = vmatpush1.xpose.msra.mxu0 0.0
    %1956 = vmatprep.subr.mxu0 0.0
    %1957 = vmatpush1.xpose.msra.mxu0 0.0
    %1958 = vmatprep.subr.mxu0 0.0
    %1959 = vmatpush1.xpose.msra.mxu0 0.0
    %1960 = vmatprep.subr.mxu0 0.0
    %1961 = vmatpush1.xpose.msra.mxu0 0.0
    %1962 = vmatprep.subr.mxu0 0.0
    %1963 = vmatpush1.xpose.msra.mxu0 0.0
    %1964 = vmatprep.subr.mxu0 0.0
    %1965 = vmatpush1.xpose.msra.mxu0 0.0
    %1966 = vmatprep.subr.mxu0 0.0
    %1967 = vmatpush1.xpose.msra.mxu0 0.0
    %1968 = vmatprep.subr.mxu0 0.0
    %1969 = vmatpush1.xpose.msra.mxu0 0.0
    %1970 = vmatprep.subr.mxu0 0.0
    %1971 = vmatpush1.xpose.msra.mxu0 0.0
    %1972 = vmatprep.subr.mxu0 0.0
    %1973 = vmatpush1.xpose.msra.mxu0 0.0
    %1974 = vmatprep.subr.mxu0 0.0
    %1975 = vmatpush1.xpose.msra.mxu0 0.0
    %1976 = vmatprep.subr.mxu0 0.0
    %1977 = vmatpush1.xpose.msra.mxu0 0.0
    %1978 = vmatprep.subr.mxu0 0.0
    %1979 = vmatpush1.xpose.msra.mxu0 0.0
    %1980 = vmatprep.subr.mxu0 0.0
    %1981 = vmatpush1.xpose.msra.mxu0 0.0
    %1982 = vmatprep.mubr.f32.mxu0 0.0
    %1983 = vmatmul.mubr.f32.gmra.mrb[0].mxu0 %v1910
    %v1984 = vpop.f32.mrb[0].mxu0
    %v1985 = vadd.f32 0.0, %v1984
    %v1986 = vpop.f32.mrb[0].mxu0
    %1987 = vmatprep.mubr.f32.mxu0 0.0
    %1988 = vmatmul.mubr.f32.gmra.mrb[0].mxu0 %v1912
    %v1989 = vpop.f32.mrb[0].mxu0
    %v1990 = vadd.f32 0.0, %v1989
    %v1991 = vpop.f32.mrb[0].mxu0
    %1992 = vdwg.mxu0
    %v1993 = vmul.f32 %v1985, 0.70710677
    %v1994 = vmul.f32 %v1990, 0.70710677
    %v1995 = vadd.f32 %v1993, %v14
    %v1996 = vadd.f32 %v1994, %v15
    %v1997 = vsel %vm318, %v1995, -inf
    %1998 = vmax.xlane.f32.xlu0 %v1997
    %v1999 = vpop.xlane.xlu0 %1998
    %v2000 = vsel %vm318, %v1996, -inf
    %2001 = vmax.xlane.f32.xlu0 %v2000
    %v2002 = vpop.xlane.xlu0 %2001
    %v2003 = vsub.f32 %v1995, %v1999
    %v2004 = vsub.f32 %v1996, %v2002
    %v2005 = vmul.f32 %v2003, 1.442695
    %v2006 = vpow.pop %v2005
    %v2007 = vmul.f32 %v2004, 1.442695
    %v2008 = vpow.pop %v2007
    %v2009 = vsel %vm318, %v2006, 0.0
    %2010 = vadd.xlane.f32.xlu0 %v2009
    %v2011 = vpop.xlane.xlu0 %2010
    %v2012 = vsel %vm318, %v2008, 0.0
    %2013 = vadd.xlane.f32.xlu0 %v2012
    %v2014 = vpop.xlane.xlu0 %2013
    %v2015 = vrcp.pop %v2011
    %v2016 = vrcp.pop %v2014
    %v2017 = vmul.f32 %v2006, %v2015
    %v2018 = vmul.f32 %v2008, %v2016
    %2019 = vrot.lane.b32.xlu0 %v1488, 108
    %v2020 = vpop.permute.xlu0 %2019
    %2021 = vrot.lane.b32.xlu0 %v1493, 108
    %v2022 = vpop.permute.xlu0 %2021
    %v2026 = vsel %vm318, %v2017, 0
    %v2029 = vsel %vm318, %v2018, 0
    %2031 = vmatprep.subr.mxu0 0.0
    %2032 = vmatpush1.msra.mxu0 %v2020
    %2033 = vmatprep.subr.mxu0 0.0
    %2034 = vmatpush1.msra.mxu0 %v2022
    %2035 = vmatprep.subr.mxu0 0.0
    %2036 = vmatpush1.msra.mxu0 0.0
    %2037 = vmatprep.subr.mxu0 0.0
    %2038 = vmatpush1.msra.mxu0 0.0
    %2039 = vmatprep.subr.mxu0 0.0
    %2040 = vmatpush1.msra.mxu0 0.0
    %2041 = vmatprep.subr.mxu0 0.0
    %2042 = vmatpush1.msra.mxu0 0.0
    %2043 = vmatprep.subr.mxu0 0.0
    %2044 = vmatpush1.msra.mxu0 0.0
    %2045 = vmatprep.subr.mxu0 0.0
    %2046 = vmatpush1.msra.mxu0 0.0
    %2047 = vmatprep.subr.mxu0 0.0
    %2048 = vmatpush1.msra.mxu0 0.0
    %2049 = vmatprep.subr.mxu0 0.0
    %2050 = vmatpush1.msra.mxu0 0.0
    %2051 = vmatprep.subr.mxu0 0.0
    %2052 = vmatpush1.msra.mxu0 0.0
    %2053 = vmatprep.subr.mxu0 0.0
    %2054 = vmatpush1.msra.mxu0 0.0
    %2055 = vmatprep.subr.mxu0 0.0
    %2056 = vmatpush1.msra.mxu0 0.0
    %2057 = vmatprep.subr.mxu0 0.0
    %2058 = vmatpush1.msra.mxu0 0.0
    %2059 = vmatprep.subr.mxu0 0.0
    %2060 = vmatpush1.msra.mxu0 0.0
    %2061 = vmatprep.subr.mxu0 0.0
    %2062 = vmatpush1.msra.mxu0 0.0
    %2063 = vmatprep.subr.mxu0 0.0
    %2064 = vmatpush1.msra.mxu0 0.0
    %2065 = vmatprep.subr.mxu0 0.0
    %2066 = vmatpush1.msra.mxu0 0.0
    %2067 = vmatprep.subr.mxu0 0.0
    %2068 = vmatpush1.msra.mxu0 0.0
    %2069 = vmatprep.subr.mxu0 0.0
    %2070 = vmatpush1.msra.mxu0 0.0
    %2071 = vmatprep.subr.mxu0 0.0
    %2072 = vmatpush1.msra.mxu0 0.0
    %2073 = vmatprep.subr.mxu0 0.0
    %2074 = vmatpush1.msra.mxu0 0.0
    %2075 = vmatprep.subr.mxu0 0.0
    %2076 = vmatpush1.msra.mxu0 0.0
    %2077 = vmatprep.subr.mxu0 0.0
    %2078 = vmatpush1.msra.mxu0 0.0
    %2079 = vmatprep.subr.mxu0 0.0
    %2080 = vmatpush1.msra.mxu0 0.0
    %2081 = vmatprep.subr.mxu0 0.0
    %2082 = vmatpush1.msra.mxu0 0.0
    %2083 = vmatprep.subr.mxu0 0.0
    %2084 = vmatpush1.msra.mxu0 0.0
    %2085 = vmatprep.subr.mxu0 0.0
    %2086 = vmatpush1.msra.mxu0 0.0
    %2087 = vmatprep.subr.mxu0 0.0
    %2088 = vmatpush1.msra.mxu0 0.0
    %2089 = vmatprep.subr.mxu0 0.0
    %2090 = vmatpush1.msra.mxu0 0.0
    %2091 = vmatprep.subr.mxu0 0.0
    %2092 = vmatpush1.msra.mxu0 0.0
    %2093 = vmatprep.subr.mxu0 0.0
    %2094 = vmatpush1.msra.mxu0 0.0
    %2095 = vmatprep.mubr.f32.mxu0 0.0
    %2096 = vmatmul.mubr.f32.gmra.mrb[0].mxu0 %v2026
    %v2097 = vpop.f32.mrb[0].mxu0
    %v2098 = vadd.f32 0.0, %v2097
    %v2099 = vpop.f32.mrb[0].mxu0
    %2100 = vmatprep.mubr.f32.mxu0 0.0
    %2101 = vmatmul.mubr.f32.gmra.mrb[0].mxu0 %v2029
    %v2102 = vpop.f32.mrb[0].mxu0
    %v2103 = vadd.f32 0.0, %v2102
    %v2104 = vpop.f32.mrb[0].mxu0
    %2105 = vdwg.mxu0
    %2106 = vrot.lane.b32.xlu0 %v1488, 122
    %v2107 = vpop.permute.xlu0 %2106
    %2108 = vrot.lane.b32.xlu0 %v1493, 122
    %v2109 = vpop.permute.xlu0 %2108
    %2110 = vrot.lane.b32.xlu0 %v1488, 114
    %v2111 = vpop.permute.xlu0 %2110
    %2112 = vrot.lane.b32.xlu0 %v1493, 114
    %v2113 = vpop.permute.xlu0 %2112
    %v2114 = vsel %vm230, %v2107, 0
    %v2116 = vsel %vm230, %v2109, 0
    %v2118 = vsel %vm230, %v2111, 0
    %v2120 = vsel %vm230, %v2113, 0
    %2122 = vmatprep.subr.mxu0 0.0
    %2123 = vmatpush1.xpose.msra.mxu0 %v2118
    %2124 = vmatprep.subr.mxu0 0.0
    %2125 = vmatpush1.xpose.msra.mxu0 %v2120
    %2126 = vmatprep.subr.mxu0 0.0
    %2127 = vmatpush1.xpose.msra.mxu0 0.0
    %2128 = vmatprep.subr.mxu0 0.0
    %2129 = vmatpush1.xpose.msra.mxu0 0.0
    %2130 = vmatprep.subr.mxu0 0.0
    %2131 = vmatpush1.xpose.msra.mxu0 0.0
    %2132 = vmatprep.subr.mxu0 0.0
    %2133 = vmatpush1.xpose.msra.mxu0 0.0
    %2134 = vmatprep.subr.mxu0 0.0
    %2135 = vmatpush1.xpose.msra.mxu0 0.0
    %2136 = vmatprep.subr.mxu0 0.0
    %2137 = vmatpush1.xpose.msra.mxu0 0.0
    %2138 = vmatprep.subr.mxu0 0.0
    %2139 = vmatpush1.xpose.msra.mxu0 0.0
    %2140 = vmatprep.subr.mxu0 0.0
    %2141 = vmatpush1.xpose.msra.mxu0 0.0
    %2142 = vmatprep.subr.mxu0 0.0
    %2143 = vmatpush1.xpose.msra.mxu0 0.0
    %2144 = vmatprep.subr.mxu0 0.0
    %2145 = vmatpush1.xpose.msra.mxu0 0.0
    %2146 = vmatprep.subr.mxu0 0.0
    %2147 = vmatpush1.xpose.msra.mxu0 0.0
    %2148 = vmatprep.subr.mxu0 0.0
    %2149 = vmatpush1.xpose.msra.mxu0 0.0
    %2150 = vmatprep.subr.mxu0 0.0
    %2151 = vmatpush1.xpose.msra.mxu0 0.0
    %2152 = vmatprep.subr.mxu0 0.0
    %2153 = vmatpush1.xpose.msra.mxu0 0.0
    %2154 = vmatprep.subr.mxu0 0.0
    %2155 = vmatpush1.xpose.msra.mxu0 0.0
    %2156 = vmatprep.subr.mxu0 0.0
    %2157 = vmatpush1.xpose.msra.mxu0 0.0
    %2158 = vmatprep.subr.mxu0 0.0
    %2159 = vmatpush1.xpose.msra.mxu0 0.0
    %2160 = vmatprep.subr.mxu0 0.0
    %2161 = vmatpush1.xpose.msra.mxu0 0.0
    %2162 = vmatprep.subr.mxu0 0.0
    %2163 = vmatpush1.xpose.msra.mxu0 0.0
    %2164 = vmatprep.subr.mxu0 0.0
    %2165 = vmatpush1.xpose.msra.mxu0 0.0
    %2166 = vmatprep.subr.mxu0 0.0
    %2167 = vmatpush1.xpose.msra.mxu0 0.0
    %2168 = vmatprep.subr.mxu0 0.0
    %2169 = vmatpush1.xpose.msra.mxu0 0.0
    %2170 = vmatprep.subr.mxu0 0.0
    %2171 = vmatpush1.xpose.msra.mxu0 0.0
    %2172 = vmatprep.subr.mxu0 0.0
    %2173 = vmatpush1.xpose.msra.mxu0 0.0
    %2174 = vmatprep.subr.mxu0 0.0
    %2175 = vmatpush1.xpose.msra.mxu0 0.0
    %2176 = vmatprep.subr.mxu0 0.0
    %2177 = vmatpush1.xpose.msra.mxu0 0.0
    %2178 = vmatprep.subr.mxu0 0.0
    %2179 = vmatpush1.xpose.msra.mxu0 0.0
    %2180 = vmatprep.subr.mxu0 0.0
    %2181 = vmatpush1.xpose.msra.mxu0 0.0
    %2182 = vmatprep.subr.mxu0 0.0
    %2183 = vmatpush1.xpose.msra.mxu0 0.0
    %2184 = vmatprep.subr.mxu0 0.0
    %2185 = vmatpush1.xpose.msra.mxu0 0.0
    %2186 = vmatprep.mubr.f32.mxu0 0.0
    %2187 = vmatmul.mubr.f32.gmra.mrb[0].mxu0 %v2114
    %v2188 = vpop.f32.mrb[0].mxu0
    %v2189 = vadd.f32 0.0, %v2188
    %v2190 = vpop.f32.mrb[0].mxu0
    %2191 = vmatprep.mubr.f32.mxu0 0.0
    %2192 = vmatmul.mubr.f32.gmra.mrb[0].mxu0 %v2116
    %v2193 = vpop.f32.mrb[0].mxu0
    %v2194 = vadd.f32 0.0, %v2193
    %v2195 = vpop.f32.mrb[0].mxu0
    %2196 = vdwg.mxu0
    %v2197 = vmul.f32 %v2189, 0.70710677
    %v2198 = vmul.f32 %v2194, 0.70710677
    %v2199 = vadd.f32 %v2197, %v14
    %v2200 = vadd.f32 %v2198, %v15
    %v2201 = vsel %vm318, %v2199, -inf
    %2202 = vmax.xlane.f32.xlu0 %v2201
    %v2203 = vpop.xlane.xlu0 %2202
    %v2204 = vsel %vm318, %v2200, -inf
    %2205 = vmax.xlane.f32.xlu0 %v2204
    %v2206 = vpop.xlane.xlu0 %2205
    %v2207 = vsub.f32 %v2199, %v2203
    %v2208 = vsub.f32 %v2200, %v2206
    %v2209 = vmul.f32 %v2207, 1.442695
    %v2210 = vpow.pop %v2209
    %v2211 = vmul.f32 %v2208, 1.442695
    %v2212 = vpow.pop %v2211
    %v2213 = vsel %vm318, %v2210, 0.0
    %2214 = vadd.xlane.f32.xlu0 %v2213
    %v2215 = vpop.xlane.xlu0 %2214
    %v2216 = vsel %vm318, %v2212, 0.0
    %2217 = vadd.xlane.f32.xlu0 %v2216
    %v2218 = vpop.xlane.xlu0 %2217
    %v2219 = vrcp.pop %v2215
    %v2220 = vrcp.pop %v2218
    %v2221 = vmul.f32 %v2210, %v2219
    %v2222 = vmul.f32 %v2212, %v2220
    %2223 = vrot.lane.b32.xlu0 %v1488, 106
    %v2224 = vpop.permute.xlu0 %2223
    %2225 = vrot.lane.b32.xlu0 %v1493, 106
    %v2226 = vpop.permute.xlu0 %2225
    %v2230 = vsel %vm318, %v2221, 0
    %v2233 = vsel %vm318, %v2222, 0
    %2235 = vmatprep.subr.mxu0 0.0
    %2236 = vmatpush1.msra.mxu0 %v2224
    %2237 = vmatprep.subr.mxu0 0.0
    %2238 = vmatpush1.msra.mxu0 %v2226
    %2239 = vmatprep.subr.mxu0 0.0
    %2240 = vmatpush1.msra.mxu0 0.0
    %2241 = vmatprep.subr.mxu0 0.0
    %2242 = vmatpush1.msra.mxu0 0.0
    %2243 = vmatprep.subr.mxu0 0.0
    %2244 = vmatpush1.msra.mxu0 0.0
    %2245 = vmatprep.subr.mxu0 0.0
    %2246 = vmatpush1.msra.mxu0 0.0
    %2247 = vmatprep.subr.mxu0 0.0
    %2248 = vmatpush1.msra.mxu0 0.0
    %2249 = vmatprep.subr.mxu0 0.0
    %2250 = vmatpush1.msra.mxu0 0.0
    %2251 = vmatprep.subr.mxu0 0.0
    %2252 = vmatpush1.msra.mxu0 0.0
    %2253 = vmatprep.subr.mxu0 0.0
    %2254 = vmatpush1.msra.mxu0 0.0
    %2255 = vmatprep.subr.mxu0 0.0
    %2256 = vmatpush1.msra.mxu0 0.0
    %2257 = vmatprep.subr.mxu0 0.0
    %2258 = vmatpush1.msra.mxu0 0.0
    %2259 = vmatprep.subr.mxu0 0.0
    %2260 = vmatpush1.msra.mxu0 0.0
    %2261 = vmatprep.subr.mxu0 0.0
    %2262 = vmatpush1.msra.mxu0 0.0
    %2263 = vmatprep.subr.mxu0 0.0
    %2264 = vmatpush1.msra.mxu0 0.0
    %2265 = vmatprep.subr.mxu0 0.0
    %2266 = vmatpush1.msra.mxu0 0.0
    %2267 = vmatprep.subr.mxu0 0.0
    %2268 = vmatpush1.msra.mxu0 0.0
    %2269 = vmatprep.subr.mxu0 0.0
    %2270 = vmatpush1.msra.mxu0 0.0
    %2271 = vmatprep.subr.mxu0 0.0
    %2272 = vmatpush1.msra.mxu0 0.0
    %2273 = vmatprep.subr.mxu0 0.0
    %2274 = vmatpush1.msra.mxu0 0.0
    %2275 = vmatprep.subr.mxu0 0.0
    %2276 = vmatpush1.msra.mxu0 0.0
    %2277 = vmatprep.subr.mxu0 0.0
    %2278 = vmatpush1.msra.mxu0 0.0
    %2279 = vmatprep.subr.mxu0 0.0
    %2280 = vmatpush1.msra.mxu0 0.0
    %2281 = vmatprep.subr.mxu0 0.0
    %2282 = vmatpush1.msra.mxu0 0.0
    %2283 = vmatprep.subr.mxu0 0.0
    %2284 = vmatpush1.msra.mxu0 0.0
    %2285 = vmatprep.subr.mxu0 0.0
    %2286 = vmatpush1.msra.mxu0 0.0
    %2287 = vmatprep.subr.mxu0 0.0
    %2288 = vmatpush1.msra.mxu0 0.0
    %2289 = vmatprep.subr.mxu0 0.0
    %2290 = vmatpush1.msra.mxu0 0.0
    %2291 = vmatprep.subr.mxu0 0.0
    %2292 = vmatpush1.msra.mxu0 0.0
    %2293 = vmatprep.subr.mxu0 0.0
    %2294 = vmatpush1.msra.mxu0 0.0
    %2295 = vmatprep.subr.mxu0 0.0
    %2296 = vmatpush1.msra.mxu0 0.0
    %2297 = vmatprep.subr.mxu0 0.0
    %2298 = vmatpush1.msra.mxu0 0.0
    %2299 = vmatprep.mubr.f32.mxu0 0.0
    %2300 = vmatmul.mubr.f32.gmra.mrb[0].mxu0 %v2230
    %v2301 = vpop.f32.mrb[0].mxu0
    %v2302 = vadd.f32 0.0, %v2301
    %v2303 = vpop.f32.mrb[0].mxu0
    %2304 = vmatprep.mubr.f32.mxu0 0.0
    %2305 = vmatmul.mubr.f32.gmra.mrb[0].mxu0 %v2233
    %v2306 = vpop.f32.mrb[0].mxu0
    %v2307 = vadd.f32 0.0, %v2306
    %v2308 = vpop.f32.mrb[0].mxu0
    %2309 = vdwg.mxu0
    %2312 = vrot.lane.b32.xlu0 %v1894, 2
    %v2313 = vpop.permute.xlu0 %2312
    %2314 = vrot.lane.b32.xlu0 %v1899, 2
    %v2315 = vpop.permute.xlu0 %2314
    %2320 = vrot.lane.b32.xlu0 %v2098, 4
    %v2321 = vpop.permute.xlu0 %2320
    %2322 = vrot.lane.b32.xlu0 %v2103, 4
    %v2323 = vpop.permute.xlu0 %2322
    %2328 = vrot.lane.b32.xlu0 %v2302, 6
    %v2329 = vpop.permute.xlu0 %2328
    %2330 = vrot.lane.b32.xlu0 %v2307, 6
    %v2331 = vpop.permute.xlu0 %2330
    %v2334 = vsel %vm230, %v1690, %v2313
    %v2335 = vsel %vm230, %v1695, %v2315
    %v2336 = vsel %vm1066, %v2334, %v2321
    %v2337 = vsel %vm1066, %v2335, %v2323
    %v2338 = vsel %vm1069, %v2336, %v2329
    %v2339 = vsel %vm1069, %v2337, %v2331
    %v2340 = vlaneseq
    %v2341 = vshrl.u32 %v2340, 7
    %v2342 = vsub.s32 0, %v2341
    %v2343 = vrot.slane %v45, %v2342
    %v2345 = vsel %vm57, %v2338, 0
    %v2348 = vsel %vm57, %v2339, 0
    %2350 = vmatprep.subr.mxu0 0.0
    %2351 = vmatpush1.msra.mxu0 %v24
    %2352 = vmatprep.subr.mxu0 0.0
    %2353 = vmatpush1.msra.mxu0 0.0
    %2354 = vmatprep.subr.mxu0 0.0
    %2355 = vmatpush1.msra.mxu0 0.0
    %2356 = vmatprep.subr.mxu0 0.0
    %2357 = vmatpush1.msra.mxu0 0.0
    %2358 = vmatprep.subr.mxu0 0.0
    %2359 = vmatpush1.msra.mxu0 0.0
    %2360 = vmatprep.subr.mxu0 0.0
    %2361 = vmatpush1.msra.mxu0 0.0
    %2362 = vmatprep.subr.mxu0 0.0
    %2363 = vmatpush1.msra.mxu0 0.0
    %2364 = vmatprep.subr.mxu0 0.0
    %2365 = vmatpush1.msra.mxu0 0.0
    %2366 = vmatprep.subr.mxu0 0.0
    %2367 = vmatpush1.msra.mxu0 0.0
    %2368 = vmatprep.subr.mxu0 0.0
    %2369 = vmatpush1.msra.mxu0 0.0
    %2370 = vmatprep.subr.mxu0 0.0
    %2371 = vmatpush1.msra.mxu0 0.0
    %2372 = vmatprep.subr.mxu0 0.0
    %2373 = vmatpush1.msra.mxu0 0.0
    %2374 = vmatprep.subr.mxu0 0.0
    %2375 = vmatpush1.msra.mxu0 0.0
    %2376 = vmatprep.subr.mxu0 0.0
    %2377 = vmatpush1.msra.mxu0 0.0
    %2378 = vmatprep.subr.mxu0 0.0
    %2379 = vmatpush1.msra.mxu0 0.0
    %2380 = vmatprep.subr.mxu0 0.0
    %2381 = vmatpush1.msra.mxu0 0.0
    %2382 = vmatprep.subr.mxu0 0.0
    %2383 = vmatpush1.msra.mxu0 0.0
    %2384 = vmatprep.subr.mxu0 0.0
    %2385 = vmatpush1.msra.mxu0 0.0
    %2386 = vmatprep.subr.mxu0 0.0
    %2387 = vmatpush1.msra.mxu0 0.0
    %2388 = vmatprep.subr.mxu0 0.0
    %2389 = vmatpush1.msra.mxu0 0.0
    %2390 = vmatprep.subr.mxu0 0.0
    %2391 = vmatpush1.msra.mxu0 0.0
    %2392 = vmatprep.subr.mxu0 0.0
    %2393 = vmatpush1.msra.mxu0 0.0
    %2394 = vmatprep.subr.mxu0 0.0
    %2395 = vmatpush1.msra.mxu0 0.0
    %2396 = vmatprep.subr.mxu0 0.0
    %2397 = vmatpush1.msra.mxu0 0.0
    %2398 = vmatprep.subr.mxu0 0.0
    %2399 = vmatpush1.msra.mxu0 0.0
    %2400 = vmatprep.subr.mxu0 0.0
    %2401 = vmatpush1.msra.mxu0 0.0
    %2402 = vmatprep.subr.mxu0 0.0
    %2403 = vmatpush1.msra.mxu0 0.0
    %2404 = vmatprep.subr.mxu0 0.0
    %2405 = vmatpush1.msra.mxu0 0.0
    %2406 = vmatprep.subr.mxu0 0.0
    %2407 = vmatpush1.msra.mxu0 0.0
    %2408 = vmatprep.subr.mxu0 0.0
    %2409 = vmatpush1.msra.mxu0 0.0
    %2410 = vmatprep.subr.mxu0 0.0
    %2411 = vmatpush1.msra.mxu0 0.0
    %2412 = vmatprep.subr.mxu0 0.0
    %2413 = vmatpush1.msra.mxu0 0.0
    %2414 = vmatprep.mubr.f32.mxu0 0.0
    %2415 = vmatmul.mubr.f32.gmra.mrb[0].mxu0 %v2345
    %v2416 = vpop.f32.mrb[0].mxu0
    %v2417 = vadd.f32 %v2343, %v2416
    %v2418 = vpop.f32.mrb[0].mxu0
    %2419 = vmatprep.mubr.f32.mxu0 0.0
    %2420 = vmatmul.mubr.f32.gmra.mrb[0].mxu0 %v2348
    %v2421 = vpop.f32.mrb[0].mxu0
    %v2422 = vadd.f32 %v2343, %v2421
    %v2423 = vpop.f32.mrb[0].mxu0
    %2424 = vdwg.mxu0
    %v2425 = vadd.f32 %v1409, %v2417
    %v2426 = vadd.f32 %v1410, %v2422
    %v2427 = vsel %vm57, %v2425, 0.0
    %2428 = vadd.xlane.f32.xlu0 %v2427
    %v2429 = vpop.xlane.xlu0 %2428
    %v2430 = vsel %vm57, %v2426, 0.0
    %2431 = vadd.xlane.f32.xlu0 %v2430
    %v2432 = vpop.xlane.xlu0 %2431
    %v2433 = vmul.f32 %v2429, %v1165
    %v2434 = vmul.f32 %v2432, %v1165
    %v2435 = vsub.f32 %v2425, %v2433
    %v2436 = vsub.f32 %v2426, %v2434
    %v2437 = vmul.f32 %v2435, %v2435
    %v2438 = vmul.f32 %v2436, %v2436
    %v2439 = vsel %vm57, %v2437, 0.0
    %2440 = vadd.xlane.f32.xlu0 %v2439
    %v2441 = vpop.xlane.xlu0 %2440
    %v2442 = vsel %vm57, %v2438, 0.0
    %2443 = vadd.xlane.f32.xlu0 %v2442
    %v2444 = vpop.xlane.xlu0 %2443
    %v2445 = vmul.f32 %v2441, %v1165
    %v2446 = vmul.f32 %v2444, %v1165
    %v2447 = vadd.f32 %v2445, 1e-05
    %v2448 = vadd.f32 %v2446, 1e-05
    %v2449 = vrsqrt.pop %v2447
    %v2450 = vrsqrt.pop %v2448
    %v2451 = vmul.f32 %v2435, %v2449
    %v2452 = vmul.f32 %v2436, %v2450
    %v2453 = vlaneseq
    %v2454 = vshrl.u32 %v2453, 7
    %v2455 = vsub.s32 0, %v2454
    %v2456 = vrot.slane %v48, %v2455
    %v2457 = vmul.f32 %v2451, %v2456
    %v2458 = vmul.f32 %v2452, %v2456
    %v2459 = vlaneseq
    %v2460 = vshrl.u32 %v2459, 7
    %v2461 = vsub.s32 0, %v2460
    %v2462 = vrot.slane %v49, %v2461
    %v2463 = vadd.f32 %v2457, %v2462
    %v2464 = vadd.f32 %v2458, %v2462
    %v2465 = vlaneseq
    %v2466 = vshrl.u32 %v2465, 7
    %v2467 = vsub.s32 0, %v2466
    %v2468 = vrot.slane %v46, %v2467
    %v2470 = vsel %vm57, %v2463, 0
    %v2473 = vsel %vm57, %v2464, 0
    %2475 = vmatprep.subr.mxu0 0.0
    %2476 = vmatpush1.msra.mxu0 %v25
    %2477 = vmatprep.subr.mxu0 0.0
    %2478 = vmatpush1.msra.mxu0 0.0
    %2479 = vmatprep.subr.mxu0 0.0
    %2480 = vmatpush1.msra.mxu0 0.0
    %2481 = vmatprep.subr.mxu0 0.0
    %2482 = vmatpush1.msra.mxu0 0.0
    %2483 = vmatprep.subr.mxu0 0.0
    %2484 = vmatpush1.msra.mxu0 0.0
    %2485 = vmatprep.subr.mxu0 0.0
    %2486 = vmatpush1.msra.mxu0 0.0
    %2487 = vmatprep.subr.mxu0 0.0
    %2488 = vmatpush1.msra.mxu0 0.0
    %2489 = vmatprep.subr.mxu0 0.0
    %2490 = vmatpush1.msra.mxu0 0.0
    %2491 = vmatprep.subr.mxu0 0.0
    %2492 = vmatpush1.msra.mxu0 0.0
    %2493 = vmatprep.subr.mxu0 0.0
    %2494 = vmatpush1.msra.mxu0 0.0
    %2495 = vmatprep.subr.mxu0 0.0
    %2496 = vmatpush1.msra.mxu0 0.0
    %2497 = vmatprep.subr.mxu0 0.0
    %2498 = vmatpush1.msra.mxu0 0.0
    %2499 = vmatprep.subr.mxu0 0.0
    %2500 = vmatpush1.msra.mxu0 0.0
    %2501 = vmatprep.subr.mxu0 0.0
    %2502 = vmatpush1.msra.mxu0 0.0
    %2503 = vmatprep.subr.mxu0 0.0
    %2504 = vmatpush1.msra.mxu0 0.0
    %2505 = vmatprep.subr.mxu0 0.0
    %2506 = vmatpush1.msra.mxu0 0.0
    %2507 = vmatprep.subr.mxu0 0.0
    %2508 = vmatpush1.msra.mxu0 0.0
    %2509 = vmatprep.subr.mxu0 0.0
    %2510 = vmatpush1.msra.mxu0 0.0
    %2511 = vmatprep.subr.mxu0 0.0
    %2512 = vmatpush1.msra.mxu0 0.0
    %2513 = vmatprep.subr.mxu0 0.0
    %2514 = vmatpush1.msra.mxu0 0.0
    %2515 = vmatprep.subr.mxu0 0.0
    %2516 = vmatpush1.msra.mxu0 0.0
    %2517 = vmatprep.subr.mxu0 0.0
    %2518 = vmatpush1.msra.mxu0 0.0
    %2519 = vmatprep.subr.mxu0 0.0
    %2520 = vmatpush1.msra.mxu0 0.0
    %2521 = vmatprep.subr.mxu0 0.0
    %2522 = vmatpush1.msra.mxu0 0.0
    %2523 = vmatprep.subr.mxu0 0.0
    %2524 = vmatpush1.msra.mxu0 0.0
    %2525 = vmatprep.subr.mxu0 0.0
    %2526 = vmatpush1.msra.mxu0 0.0
    %2527 = vmatprep.subr.mxu0 0.0
    %2528 = vmatpush1.msra.mxu0 0.0
    %2529 = vmatprep.subr.mxu0 0.0
    %2530 = vmatpush1.msra.mxu0 0.0
    %2531 = vmatprep.subr.mxu0 0.0
    %2532 = vmatpush1.msra.mxu0 0.0
    %2533 = vmatprep.subr.mxu0 0.0
    %2534 = vmatpush1.msra.mxu0 0.0
    %2535 = vmatprep.subr.mxu0 0.0
    %2536 = vmatpush1.msra.mxu0 0.0
    %2537 = vmatprep.subr.mxu0 0.0
    %2538 = vmatpush1.msra.mxu0 0.0
    %2539 = vmatprep.mubr.f32.mxu0 0.0
    %2540 = vmatmul.mubr.f32.gmra.mrb[0].mxu0 %v2470
    %v2541 = vpop.f32.mrb[0].mxu0
    %v2542 = vadd.f32 %v2468, %v2541
    %v2543 = vpop.f32.mrb[0].mxu0
    %2544 = vmatprep.mubr.f32.mxu0 0.0
    %2545 = vmatmul.mubr.f32.gmra.mrb[0].mxu0 %v2473
    %v2546 = vpop.f32.mrb[0].mxu0
    %v2547 = vadd.f32 %v2468, %v2546
    %v2548 = vpop.f32.mrb[0].mxu0
    %2549 = vdwg.mxu0
    %v2550 = vmax.f32 %v2542, 0.0
    %v2551 = vmax.f32 %v2547, 0.0
    %v2552 = vlaneseq
    %v2553 = vshrl.u32 %v2552, 7
    %v2554 = vsub.s32 0, %v2553
    %v2555 = vrot.slane %v47, %v2554
    %v2557 = vsel %vm1289, %v2550, 0
    %v2560 = vsel %vm1289, %v2551, 0
    %2562 = vmatprep.subr.mxu0 0.0
    %2563 = vmatpush1.msra.mxu0 %v26
    %2564 = vmatprep.subr.mxu0 0.0
    %2565 = vmatpush1.msra.mxu0 %v27
    %2566 = vmatprep.subr.mxu0 0.0
    %2567 = vmatpush1.msra.mxu0 %v28
    %2568 = vmatprep.subr.mxu0 0.0
    %2569 = vmatpush1.msra.mxu0 %v29
    %2570 = vmatprep.subr.mxu0 0.0
    %2571 = vmatpush1.msra.mxu0 0.0
    %2572 = vmatprep.subr.mxu0 0.0
    %2573 = vmatpush1.msra.mxu0 0.0
    %2574 = vmatprep.subr.mxu0 0.0
    %2575 = vmatpush1.msra.mxu0 0.0
    %2576 = vmatprep.subr.mxu0 0.0
    %2577 = vmatpush1.msra.mxu0 0.0
    %2578 = vmatprep.subr.mxu0 0.0
    %2579 = vmatpush1.msra.mxu0 0.0
    %2580 = vmatprep.subr.mxu0 0.0
    %2581 = vmatpush1.msra.mxu0 0.0
    %2582 = vmatprep.subr.mxu0 0.0
    %2583 = vmatpush1.msra.mxu0 0.0
    %2584 = vmatprep.subr.mxu0 0.0
    %2585 = vmatpush1.msra.mxu0 0.0
    %2586 = vmatprep.subr.mxu0 0.0
    %2587 = vmatpush1.msra.mxu0 0.0
    %2588 = vmatprep.subr.mxu0 0.0
    %2589 = vmatpush1.msra.mxu0 0.0
    %2590 = vmatprep.subr.mxu0 0.0
    %2591 = vmatpush1.msra.mxu0 0.0
    %2592 = vmatprep.subr.mxu0 0.0
    %2593 = vmatpush1.msra.mxu0 0.0
    %2594 = vmatprep.subr.mxu0 0.0
    %2595 = vmatpush1.msra.mxu0 0.0
    %2596 = vmatprep.subr.mxu0 0.0
    %2597 = vmatpush1.msra.mxu0 0.0
    %2598 = vmatprep.subr.mxu0 0.0
    %2599 = vmatpush1.msra.mxu0 0.0
    %2600 = vmatprep.subr.mxu0 0.0
    %2601 = vmatpush1.msra.mxu0 0.0
    %2602 = vmatprep.subr.mxu0 0.0
    %2603 = vmatpush1.msra.mxu0 0.0
    %2604 = vmatprep.subr.mxu0 0.0
    %2605 = vmatpush1.msra.mxu0 0.0
    %2606 = vmatprep.subr.mxu0 0.0
    %2607 = vmatpush1.msra.mxu0 0.0
    %2608 = vmatprep.subr.mxu0 0.0
    %2609 = vmatpush1.msra.mxu0 0.0
    %2610 = vmatprep.subr.mxu0 0.0
    %2611 = vmatpush1.msra.mxu0 0.0
    %2612 = vmatprep.subr.mxu0 0.0
    %2613 = vmatpush1.msra.mxu0 0.0
    %2614 = vmatprep.subr.mxu0 0.0
    %2615 = vmatpush1.msra.mxu0 0.0
    %2616 = vmatprep.subr.mxu0 0.0
    %2617 = vmatpush1.msra.mxu0 0.0
    %2618 = vmatprep.subr.mxu0 0.0
    %2619 = vmatpush1.msra.mxu0 0.0
    %2620 = vmatprep.subr.mxu0 0.0
    %2621 = vmatpush1.msra.mxu0 0.0
    %2622 = vmatprep.subr.mxu0 0.0
    %2623 = vmatpush1.msra.mxu0 0.0
    %2624 = vmatprep.subr.mxu0 0.0
    %2625 = vmatpush1.msra.mxu0 0.0
    %2626 = vmatprep.mubr.f32.mxu0 0.0
    %2627 = vmatmul.mubr.f32.gmra.mrb[0].mxu0 %v2557
    %v2628 = vpop.f32.mrb[0].mxu0
    %v2629 = vadd.f32 %v2555, %v2628
    %v2630 = vpop.f32.mrb[0].mxu0
    %2631 = vmatprep.mubr.f32.mxu0 0.0
    %2632 = vmatmul.mubr.f32.gmra.mrb[0].mxu0 %v2560
    %v2633 = vpop.f32.mrb[0].mxu0
    %v2634 = vadd.f32 %v2555, %v2633
    %v2635 = vpop.f32.mrb[0].mxu0
    %2636 = vdwg.mxu0
    %v2637 = vadd.f32 %v2463, %v2629
    %v2638 = vadd.f32 %v2464, %v2634
    %v2639 = vsel %vm57, %v2637, 0.0
    %2640 = vadd.xlane.f32.xlu0 %v2639
    %v2641 = vpop.xlane.xlu0 %2640
    %v2642 = vsel %vm57, %v2638, 0.0
    %2643 = vadd.xlane.f32.xlu0 %v2642
    %v2644 = vpop.xlane.xlu0 %2643
    %v2645 = vmul.f32 %v2641, %v1165
    %v2646 = vmul.f32 %v2644, %v1165
    %v2647 = vsub.f32 %v2637, %v2645
    %v2648 = vsub.f32 %v2638, %v2646
    %v2649 = vmul.f32 %v2647, %v2647
    %v2650 = vmul.f32 %v2648, %v2648
    %v2651 = vsel %vm57, %v2649, 0.0
    %2652 = vadd.xlane.f32.xlu0 %v2651
    %v2653 = vpop.xlane.xlu0 %2652
    %v2654 = vsel %vm57, %v2650, 0.0
    %2655 = vadd.xlane.f32.xlu0 %v2654
    %v2656 = vpop.xlane.xlu0 %2655
    %v2657 = vmul.f32 %v2653, %v1165
    %v2658 = vmul.f32 %v2656, %v1165
    %v2659 = vadd.f32 %v2657, 1e-05
    %v2660 = vadd.f32 %v2658, 1e-05
    %v2661 = vrsqrt.pop %v2659
    %v2662 = vrsqrt.pop %v2660
    %v2663 = vmul.f32 %v2647, %v2661
    %v2664 = vmul.f32 %v2648, %v2662
    %v2665 = vlaneseq
    %v2666 = vshrl.u32 %v2665, 7
    %v2667 = vsub.s32 0, %v2666
    %v2668 = vrot.slane %v50, %v2667
    %v2669 = vmul.f32 %v2663, %v2668
    %v2670 = vmul.f32 %v2664, %v2668
    %v2671 = vlaneseq
    %v2672 = vshrl.u32 %v2671, 7
    %v2673 = vsub.s32 0, %v2672
    %v2674 = vrot.slane %v51, %v2673
    %v2675 = vadd.f32 %v2669, %v2674
    %v2676 = vadd.f32 %v2670, %v2674
    %v2677 = vlaneseq
    %v2678 = vshrl.u32 %v2677, 7
    %v2679 = vsub.s32 0, %v2678
    %v2680 = vrot.slane %v52, %v2679
    %v2682 = vsel %vm57, %v2675, 0
    %v2685 = vsel %vm57, %v2676, 0
    %2687 = vmatprep.subr.mxu0 0.0
    %2688 = vmatpush1.msra.mxu0 %v30
    %2689 = vmatprep.subr.mxu0 0.0
    %2690 = vmatpush1.msra.mxu0 0.0
    %2691 = vmatprep.subr.mxu0 0.0
    %2692 = vmatpush1.msra.mxu0 0.0
    %2693 = vmatprep.subr.mxu0 0.0
    %2694 = vmatpush1.msra.mxu0 0.0
    %2695 = vmatprep.subr.mxu0 0.0
    %2696 = vmatpush1.msra.mxu0 0.0
    %2697 = vmatprep.subr.mxu0 0.0
    %2698 = vmatpush1.msra.mxu0 0.0
    %2699 = vmatprep.subr.mxu0 0.0
    %2700 = vmatpush1.msra.mxu0 0.0
    %2701 = vmatprep.subr.mxu0 0.0
    %2702 = vmatpush1.msra.mxu0 0.0
    %2703 = vmatprep.subr.mxu0 0.0
    %2704 = vmatpush1.msra.mxu0 0.0
    %2705 = vmatprep.subr.mxu0 0.0
    %2706 = vmatpush1.msra.mxu0 0.0
    %2707 = vmatprep.subr.mxu0 0.0
    %2708 = vmatpush1.msra.mxu0 0.0
    %2709 = vmatprep.subr.mxu0 0.0
    %2710 = vmatpush1.msra.mxu0 0.0
    %2711 = vmatprep.subr.mxu0 0.0
    %2712 = vmatpush1.msra.mxu0 0.0
    %2713 = vmatprep.subr.mxu0 0.0
    %2714 = vmatpush1.msra.mxu0 0.0
    %2715 = vmatprep.subr.mxu0 0.0
    %2716 = vmatpush1.msra.mxu0 0.0
    %2717 = vmatprep.subr.mxu0 0.0
    %2718 = vmatpush1.msra.mxu0 0.0
    %2719 = vmatprep.subr.mxu0 0.0
    %2720 = vmatpush1.msra.mxu0 0.0
    %2721 = vmatprep.subr.mxu0 0.0
    %2722 = vmatpush1.msra.mxu0 0.0
    %2723 = vmatprep.subr.mxu0 0.0
    %2724 = vmatpush1.msra.mxu0 0.0
    %2725 = vmatprep.subr.mxu0 0.0
    %2726 = vmatpush1.msra.mxu0 0.0
    %2727 = vmatprep.subr.mxu0 0.0
    %2728 = vmatpush1.msra.mxu0 0.0
    %2729 = vmatprep.subr.mxu0 0.0
    %2730 = vmatpush1.msra.mxu0 0.0
    %2731 = vmatprep.subr.mxu0 0.0
    %2732 = vmatpush1.msra.mxu0 0.0
    %2733 = vmatprep.subr.mxu0 0.0
    %2734 = vmatpush1.msra.mxu0 0.0
    %2735 = vmatprep.subr.mxu0 0.0
    %2736 = vmatpush1.msra.mxu0 0.0
    %2737 = vmatprep.subr.mxu0 0.0
    %2738 = vmatpush1.msra.mxu0 0.0
    %2739 = vmatprep.subr.mxu0 0.0
    %2740 = vmatpush1.msra.mxu0 0.0
    %2741 = vmatprep.subr.mxu0 0.0
    %2742 = vmatpush1.msra.mxu0 0.0
    %2743 = vmatprep.subr.mxu0 0.0
    %2744 = vmatpush1.msra.mxu0 0.0
    %2745 = vmatprep.subr.mxu0 0.0
    %2746 = vmatpush1.msra.mxu0 0.0
    %2747 = vmatprep.subr.mxu0 0.0
    %2748 = vmatpush1.msra.mxu0 0.0
    %2749 = vmatprep.subr.mxu0 0.0
    %2750 = vmatpush1.msra.mxu0 0.0
    %2751 = vmatprep.mubr.f32.mxu0 0.0
    %2752 = vmatmul.mubr.f32.gmra.mrb[0].mxu0 %v2682
    %v2753 = vpop.f32.mrb[0].mxu0
    %v2754 = vadd.f32 %v2680, %v2753
    %v2755 = vpop.f32.mrb[0].mxu0
    %2756 = vmatprep.mubr.f32.mxu0 0.0
    %2757 = vmatmul.mubr.f32.gmra.mrb[0].mxu0 %v2685
    %v2758 = vpop.f32.mrb[0].mxu0
    %v2759 = vadd.f32 %v2680, %v2758
    %v2760 = vpop.f32.mrb[0].mxu0
    %2761 = vdwg.mxu0
    %vm2762 = vcmp.gt.f32.partialorder %v2754, 0.0
    %vm2763 = vcmp.gt.f32.partialorder %v2759, 0.0
    %v2764 = vmin.f32 %v2754, 0.0
    %v2765 = vmin.f32 %v2759, 0.0
    %v2766 = vmul.f32 %v2764, 1.442695
    %v2767 = vpow.pop %v2766
    %v2768 = vmul.f32 %v2765, 1.442695
    %v2769 = vpow.pop %v2768
    %v2770 = vsub.f32 %v2767, 1.0
    %v2771 = vsub.f32 %v2769, 1.0
    %v2772 = vsel %vm2762, %v2754, %v2770
    %v2773 = vsel %vm2763, %v2759, %v2771
    %v2774 = vlaneseq
    %v2775 = vshrl.u32 %v2774, 7
    %v2776 = vsub.s32 0, %v2775
    %v2777 = vrot.slane %v53, %v2776
    %2780 = vrot.lane.b32.xlu0 %v2772, 96
    %v2781 = vpop.permute.xlu0 %2780
    %2782 = vrot.lane.b32.xlu0 %v2773, 96
    %v2783 = vpop.permute.xlu0 %2782
    %v2784 = vsel %vm57, %v2781, 0
    %v2786 = vsel %vm57, %v2783, 0
    %2788 = vmatprep.subr.mxu0 0.0
    %2789 = vmatpush1.msra.mxu0 %v31
    %2790 = vmatprep.subr.mxu0 0.0
    %2791 = vmatpush1.msra.mxu0 0.0
    %2792 = vmatprep.subr.mxu0 0.0
    %2793 = vmatpush1.msra.mxu0 0.0
    %2794 = vmatprep.subr.mxu0 0.0
    %2795 = vmatpush1.msra.mxu0 0.0
    %2796 = vmatprep.subr.mxu0 0.0
    %2797 = vmatpush1.msra.mxu0 0.0
    %2798 = vmatprep.subr.mxu0 0.0
    %2799 = vmatpush1.msra.mxu0 0.0
    %2800 = vmatprep.subr.mxu0 0.0
    %2801 = vmatpush1.msra.mxu0 0.0
    %2802 = vmatprep.subr.mxu0 0.0
    %2803 = vmatpush1.msra.mxu0 0.0
    %2804 = vmatprep.subr.mxu0 0.0
    %2805 = vmatpush1.msra.mxu0 0.0
    %2806 = vmatprep.subr.mxu0 0.0
    %2807 = vmatpush1.msra.mxu0 0.0
    %2808 = vmatprep.subr.mxu0 0.0
    %2809 = vmatpush1.msra.mxu0 0.0
    %2810 = vmatprep.subr.mxu0 0.0
    %2811 = vmatpush1.msra.mxu0 0.0
    %2812 = vmatprep.subr.mxu0 0.0
    %2813 = vmatpush1.msra.mxu0 0.0
    %2814 = vmatprep.subr.mxu0 0.0
    %2815 = vmatpush1.msra.mxu0 0.0
    %2816 = vmatprep.subr.mxu0 0.0
    %2817 = vmatpush1.msra.mxu0 0.0
    %2818 = vmatprep.subr.mxu0 0.0
    %2819 = vmatpush1.msra.mxu0 0.0
    %2820 = vmatprep.subr.mxu0 0.0
    %2821 = vmatpush1.msra.mxu0 0.0
    %2822 = vmatprep.subr.mxu0 0.0
    %2823 = vmatpush1.msra.mxu0 0.0
    %2824 = vmatprep.subr.mxu0 0.0
    %2825 = vmatpush1.msra.mxu0 0.0
    %2826 = vmatprep.subr.mxu0 0.0
    %2827 = vmatpush1.msra.mxu0 0.0
    %2828 = vmatprep.subr.mxu0 0.0
    %2829 = vmatpush1.msra.mxu0 0.0
    %2830 = vmatprep.subr.mxu0 0.0
    %2831 = vmatpush1.msra.mxu0 0.0
    %2832 = vmatprep.subr.mxu0 0.0
    %2833 = vmatpush1.msra.mxu0 0.0
    %2834 = vmatprep.subr.mxu0 0.0
    %2835 = vmatpush1.msra.mxu0 0.0
    %2836 = vmatprep.subr.mxu0 0.0
    %2837 = vmatpush1.msra.mxu0 0.0
    %2838 = vmatprep.subr.mxu0 0.0
    %2839 = vmatpush1.msra.mxu0 0.0
    %2840 = vmatprep.subr.mxu0 0.0
    %2841 = vmatpush1.msra.mxu0 0.0
    %2842 = vmatprep.subr.mxu0 0.0
    %2843 = vmatpush1.msra.mxu0 0.0
    %2844 = vmatprep.subr.mxu0 0.0
    %2845 = vmatpush1.msra.mxu0 0.0
    %2846 = vmatprep.subr.mxu0 0.0
    %2847 = vmatpush1.msra.mxu0 0.0
    %2848 = vmatprep.subr.mxu0 0.0
    %2849 = vmatpush1.msra.mxu0 0.0
    %2850 = vmatprep.subr.mxu0 0.0
    %2851 = vmatpush1.msra.mxu0 0.0
    %2852 = vmatprep.mubr.f32.mxu0 0.0
    %2853 = vmatmul.mubr.f32.gmra.mrb[0].mxu0 %v2784
    %v2854 = vpop.f32.mrb[0].mxu0
    %v2855 = vadd.f32 %v2777, %v2854
    %v2856 = vpop.f32.mrb[0].mxu0
    %2857 = vmatprep.mubr.f32.mxu0 0.0
    %2858 = vmatmul.mubr.f32.gmra.mrb[0].mxu0 %v2786
    %v2859 = vpop.f32.mrb[0].mxu0
    %v2860 = vadd.f32 %v2777, %v2859
    %v2861 = vpop.f32.mrb[0].mxu0
    %2862 = vdwg.mxu0
    %v2863 = vlaneseq
    %v2864 = vshrl.u32 %v2863, 7
    %v2865 = vsub.s32 0, %v2864
    %v2866 = vrot.slane %v54, %v2865
    %v2868 = vsel %vm1289, %v2855, 0
    %v2871 = vsel %vm1289, %v2860, 0
    %2873 = vmatprep.subr.mxu0 0.0
    %2874 = vmatpush1.msra.mxu0 %v32
    %2875 = vmatprep.subr.mxu0 0.0
    %2876 = vmatpush1.msra.mxu0 %v33
    %2877 = vmatprep.subr.mxu0 0.0
    %2878 = vmatpush1.msra.mxu0 %v34
    %2879 = vmatprep.subr.mxu0 0.0
    %2880 = vmatpush1.msra.mxu0 %v35
    %2881 = vmatprep.subr.mxu0 0.0
    %2882 = vmatpush1.msra.mxu0 0.0
    %2883 = vmatprep.subr.mxu0 0.0
    %2884 = vmatpush1.msra.mxu0 0.0
    %2885 = vmatprep.subr.mxu0 0.0
    %2886 = vmatpush1.msra.mxu0 0.0
    %2887 = vmatprep.subr.mxu0 0.0
    %2888 = vmatpush1.msra.mxu0 0.0
    %2889 = vmatprep.subr.mxu0 0.0
    %2890 = vmatpush1.msra.mxu0 0.0
    %2891 = vmatprep.subr.mxu0 0.0
    %2892 = vmatpush1.msra.mxu0 0.0
    %2893 = vmatprep.subr.mxu0 0.0
    %2894 = vmatpush1.msra.mxu0 0.0
    %2895 = vmatprep.subr.mxu0 0.0
    %2896 = vmatpush1.msra.mxu0 0.0
    %2897 = vmatprep.subr.mxu0 0.0
    %2898 = vmatpush1.msra.mxu0 0.0
    %2899 = vmatprep.subr.mxu0 0.0
    %2900 = vmatpush1.msra.mxu0 0.0
    %2901 = vmatprep.subr.mxu0 0.0
    %2902 = vmatpush1.msra.mxu0 0.0
    %2903 = vmatprep.subr.mxu0 0.0
    %2904 = vmatpush1.msra.mxu0 0.0
    %2905 = vmatprep.subr.mxu0 0.0
    %2906 = vmatpush1.msra.mxu0 0.0
    %2907 = vmatprep.subr.mxu0 0.0
    %2908 = vmatpush1.msra.mxu0 0.0
    %2909 = vmatprep.subr.mxu0 0.0
    %2910 = vmatpush1.msra.mxu0 0.0
    %2911 = vmatprep.subr.mxu0 0.0
    %2912 = vmatpush1.msra.mxu0 0.0
    %2913 = vmatprep.subr.mxu0 0.0
    %2914 = vmatpush1.msra.mxu0 0.0
    %2915 = vmatprep.subr.mxu0 0.0
    %2916 = vmatpush1.msra.mxu0 0.0
    %2917 = vmatprep.subr.mxu0 0.0
    %2918 = vmatpush1.msra.mxu0 0.0
    %2919 = vmatprep.subr.mxu0 0.0
    %2920 = vmatpush1.msra.mxu0 0.0
    %2921 = vmatprep.subr.mxu0 0.0
    %2922 = vmatpush1.msra.mxu0 0.0
    %2923 = vmatprep.subr.mxu0 0.0
    %2924 = vmatpush1.msra.mxu0 0.0
    %2925 = vmatprep.subr.mxu0 0.0
    %2926 = vmatpush1.msra.mxu0 0.0
    %2927 = vmatprep.subr.mxu0 0.0
    %2928 = vmatpush1.msra.mxu0 0.0
    %2929 = vmatprep.subr.mxu0 0.0
    %2930 = vmatpush1.msra.mxu0 0.0
    %2931 = vmatprep.subr.mxu0 0.0
    %2932 = vmatpush1.msra.mxu0 0.0
    %2933 = vmatprep.subr.mxu0 0.0
    %2934 = vmatpush1.msra.mxu0 0.0
    %2935 = vmatprep.subr.mxu0 0.0
    %2936 = vmatpush1.msra.mxu0 0.0
    %2937 = vmatprep.mubr.f32.mxu0 0.0
    %2938 = vmatmul.mubr.f32.gmra.mrb[0].mxu0 %v2868
    %v2939 = vpop.f32.mrb[0].mxu0
    %v2940 = vadd.f32 %v2866, %v2939
    %v2941 = vpop.f32.mrb[0].mxu0
    %2942 = vmatprep.mubr.f32.mxu0 0.0
    %2943 = vmatmul.mubr.f32.gmra.mrb[0].mxu0 %v2871
    %v2944 = vpop.f32.mrb[0].mxu0
    %v2945 = vadd.f32 %v2866, %v2944
    %v2946 = vpop.f32.mrb[0].mxu0
    %2947 = vdwg.mxu0
    %v2948 = vsub.f32 0.0, %v2940
    %v2949 = vsub.f32 0.0, %v2945
    %v2950 = vmul.f32 %v2948, 1.442695
    %v2951 = vpow.pop %v2950
    %v2952 = vmul.f32 %v2949, 1.442695
    %v2953 = vpow.pop %v2952
    %v2954 = vadd.f32 %v2951, 1.0
    %v2955 = vadd.f32 %v2953, 1.0
    %v2956 = vrcp.pop %v2954
    %v2957 = vrcp.pop %v2955
    %2960 = vrot.lane.b32.xlu0 %v2940, 96
    %v2961 = vpop.permute.xlu0 %2960
    %2962 = vrot.lane.b32.xlu0 %v2945, 96
    %v2963 = vpop.permute.xlu0 %2962
    %v2966 = vmul.f32 %v2956, %v2961
    %v2967 = vmul.f32 %v2957, %v2963
    %v2968 = vadd.f32 %v2966, %v2754
    %v2969 = vadd.f32 %v2967, %v2759
    %v2970 = vlaneseq
    %v2971 = vshrl.u32 %v2970, 7
    %v2972 = vsub.s32 0, %v2971
    %v2973 = vrot.slane %v55, %v2972
    %v2974 = vmul.f32 %v2968, %v2973
    %v2975 = vmul.f32 %v2969, %v2973
    %v2976 = vsel %vm1289, %v2974, 0.0
    %2977 = vadd.xlane.f32.xlu0 %v2976
    %v2978 = vpop.xlane.xlu0 %2977
    %v2979 = vsel %vm1289, %v2975, 0.0
    %2980 = vadd.xlane.f32.xlu0 %v2979
    %v2981 = vpop.xlane.xlu0 %2980
    %s2983 = vtos %v56
    %v2984 = vstv %s2983
    %v2986 = vadd.f32 %v2978, %v2984
    %v2987 = vadd.f32 %v2981, %v2984
    %v2990 = vlaneseq
    %v2991 = vand.u32 %v2990, 127
    %v2992 = vlaneseq
    %v2993 = vshrl.u32 %v2992, 7
    %v2994 = vsub.s32 %v2991, %v2993
    %v2995 = vrot.slane %v2986, %v2994
    %v2996 = vlaneseq
    %v2997 = vshrl.u32 %v2996, 7
    %v2998 = vsub.s32 %v2991, %v2997
    %v2999 = vrot.slane %v2987, %v2998
    %vm3000 = vcmask 1041409
    %v3001 = vsel %vm3000, %v2999, %v2995
    %vm3003 = vcmask 58368
    %3004 = vst.msk [vmem:[#allocation2] sm:$0x3] %vm3003, %v3001
    // Predicated region
    $region6: #{grnformer_forward.1} parent=1 // pred_check
      _
    $region7: #{grnformer_forward.1} parent=1 // pred_check_branch
      %3006 = sbr.rel (0) target = $region9
    $region8: #{grnformer_forward.1} parent=1 // pred_region
      %s3008 = ssub.s32 32, 32
      %3009 = vsyncadd [#allocation3], %s3008
      %s3011 = sshll.u32 [#allocation2], 4
      %s3012 = int_to_ptr.vmem [resolvable:$true] %s3011
      %3014 = dma.vmem_to_hbm [thread:$0]  %s3012, 32, %s1, [#allocation3]
    $region9: #{grnformer_forward.1} parent=1 // pred_fallthru
      _
    // Predicated region
    $region10: #{grnformer_forward.1} parent=1 // pred_check
      _
    $region11: #{grnformer_forward.1} parent=1 // pred_check_branch
      %3016 = sbr.rel (0) target = $region13
    $region12: #{grnformer_forward.1} parent=1 // pred_region
      %3017 = dma.done [#allocation3], 32
    $region13: #{grnformer_forward.1} parent=1 // pred_fallthru
      _
    %3018 = vsyncpa [#allocation3], 1

</llo_original>
